<compile_context>
chip_gen: v7x
topology: tpu7x:2x2x1
jax: 0.10.0
libtpu: 0.0.40
codegen_flags: <defaults>
</compile_context>

<pallas_src>
import math

import jax
import jax.numpy as jnp
from jax.experimental import pallas as pl
from jax.experimental.pallas import tpu as pltpu


# ----------------------------- config (small, synthetic) --------------------
VOCAB = 100
TYPE_VOCAB = 2
MAX_POS = 64
HIDDEN = 128
NUM_HEADS = 4
HEAD_DIM = HIDDEN // NUM_HEADS
INTERMEDIATE = 256
NUM_LAYERS = 2
NUM_LABELS = 5
LABEL_PAD = 128                      # lane-dense padded label dim for the head
LN_EPS = 1e-12                       # HF BERT default
ATTN_SCALE = 1.0 / math.sqrt(HEAD_DIM)
MASK_BIAS = -1e9                     # additive attn mask (HF uses finfo.min; negligible diff)
IGNORE_INDEX = -100                  # HF CrossEntropyLoss ignore_index


# ----------------------------- in-kernel helpers -----------------------------
def _layer_norm(x, g, b):
    mu = jnp.mean(x, axis=-1, keepdims=True)
    xc = x - mu
    var = jnp.mean(xc * xc, axis=-1, keepdims=True)
    return xc * jax.lax.rsqrt(var + LN_EPS) * g + b


def _gelu(x):
    # exact erf GELU, matching HF BERT ("gelu"); erf is an EUP op (free slot)
    return 0.5 * x * (1.0 + jax.lax.erf(x * (1.0 / math.sqrt(2.0))))


# ----------------------------- fused whole-model kernel ----------------------
def _bert_kernel(emb_ref, bias_ref, labels_ref,
                 emb_ln_g_ref, emb_ln_b_ref,
                 qkv_w_ref, qkv_b_ref, o_w_ref, o_b_ref,
                 attn_ln_g_ref, attn_ln_b_ref,
                 ffn_w1_ref, ffn_b1_ref, ffn_w2_ref, ffn_b2_ref,
                 ffn_ln_g_ref, ffn_ln_b_ref,
                 cls_w_ref, cls_b_ref,
                 logits_ref, nll_ref):
    """Single grid step: whole (B*S, HIDDEN) activation pushed through the model.

    bias_ref is a precomputed (B*S, B*S) additive attention bias that is 0 only for
    (query, key) pairs in the same batch element with a non-padded key; this lets the
    batch dimension fold into the matmul M dimension everywhere, including attention.
    """
    x = emb_ref[...].astype(jnp.float32)                         # (BS, H)
    x = _layer_norm(x, emb_ln_g_ref[...], emb_ln_b_ref[...])
    bias = bias_ref[...]                                         # (BS, BS)

    # TODO(synk): for real BERT-base scale, stream per-layer weights via a layer grid
    # axis (double-buffered) instead of keeping all layers resident (v7x: 64 MiB VMEM).
    for l in range(NUM_LAYERS):                                  # static unroll
        # ---- fused QKV projection: one (BS,H)@(H,3H) MXU pass (bf16 in, f32 acc) ----
        qkv = jnp.dot(x.astype(jnp.bfloat16), qkv_w_ref[l],
                      preferred_element_type=jnp.float32) + qkv_b_ref[l]
        q = qkv[:, 0 * HIDDEN:1 * HIDDEN]
        k = qkv[:, 1 * HIDDEN:2 * HIDDEN]
        v = qkv[:, 2 * HIDDEN:3 * HIDDEN]

        # ---- per-head attention; contexts stay in vregs (no VMEM scratch) ----
        ctx_heads = []
        for h in range(NUM_HEADS):                               # static unroll
            sl = slice(h * HEAD_DIM, (h + 1) * HEAD_DIM)
            qh = q[:, sl].astype(jnp.bfloat16)                   # (BS, Dh)
            kh = k[:, sl].astype(jnp.bfloat16)
            vh = v[:, sl].astype(jnp.bfloat16)
            # q . k^T as a contraction of dim 1 of both operands (no transpose)
            s = jax.lax.dot_general(qh, kh, (((1,), (1,)), ((), ())),
                                    preferred_element_type=jnp.float32)
            s = s * ATTN_SCALE + bias                            # (BS, BS)
            m = jnp.max(s, axis=-1, keepdims=True)
            p = jnp.exp(s - m)
            denom = jnp.sum(p, axis=-1, keepdims=True)
            ctx_h = jax.lax.dot_general(p.astype(jnp.bfloat16), vh,
                                        (((1,), (0,)), ((), ())),
                                        preferred_element_type=jnp.float32)
            ctx_heads.append(ctx_h / denom)                      # exact softmax divide
        ctx = jnp.concatenate(ctx_heads, axis=-1)                # (BS, H), in vregs

        # ---- attention output projection + residual + LN ----
        attn_out = jnp.dot(ctx.astype(jnp.bfloat16), o_w_ref[l],
                           preferred_element_type=jnp.float32) + o_b_ref[l]
        x = _layer_norm(x + attn_out, attn_ln_g_ref[l], attn_ln_b_ref[l])

        # ---- feed-forward + residual + LN ----
        h1 = jnp.dot(x.astype(jnp.bfloat16), ffn_w1_ref[l],
                     preferred_element_type=jnp.float32) + ffn_b1_ref[l]
        h1 = _gelu(h1)
        ffn_out = jnp.dot(h1.astype(jnp.bfloat16), ffn_w2_ref[l],
                          preferred_element_type=jnp.float32) + ffn_b2_ref[l]
        x = _layer_norm(x + ffn_out, ffn_ln_g_ref[l], ffn_ln_b_ref[l])

    # ---- classification head (lane-padded to 128) + log-softmax + NLL sum ----
    # Padded weight columns are 0 and padded bias lanes are -1e9, so they vanish in
    # the softmax sum; real 5 columns are sliced off outside.
    logits = jnp.dot(x.astype(jnp.bfloat16), cls_w_ref[...],
                     preferred_element_type=jnp.float32) + cls_b_ref[...]   # (BS, 128)
    logits_ref[...] = logits
    m = jnp.max(logits, axis=-1, keepdims=True)
    lse = jnp.log(jnp.sum(jnp.exp(logits - m), axis=-1, keepdims=True)) + m
    logz = logits - lse
    # one-hot built in-kernel from the int32 label column; ignore_index (-100) never
    # matches the iota, so those rows contribute exactly 0.
    iota = jax.lax.broadcasted_iota(jnp.int32, logits.shape, 1)
    onehot = (labels_ref[...] == iota).astype(jnp.float32)                  # (BS, 128)
    per_tok = jnp.sum(onehot * logz, axis=-1, keepdims=True)                # (BS, 1)
    nll_ref[0, 0] = -jnp.sum(per_tok)                                       # scalar (SMEM)


# ----------------------------- parameter init --------------------------------
def init_params(key):
    def normal(key, shape, scale=0.02):
        return (scale * jax.random.normal(key, shape)).astype(jnp.float32)

    keys = iter(jax.random.split(key, 64))
    L = NUM_LAYERS
    bf = lambda a: a.astype(jnp.bfloat16)          # matmul weights stored bf16 at init
    cls_w = normal(next(keys), (HIDDEN, NUM_LABELS))
    cls_w_pad = jnp.zeros((HIDDEN, LABEL_PAD), jnp.float32).at[:, :NUM_LABELS].set(cls_w)
    cls_b_pad = jnp.full((1, LABEL_PAD), MASK_BIAS, jnp.float32).at[:, :NUM_LABELS].set(0.0)
    return {
        "word_emb": normal(next(keys), (VOCAB, HIDDEN)),
        "pos_emb": normal(next(keys), (MAX_POS, HIDDEN)),
        "type_emb": normal(next(keys), (TYPE_VOCAB, HIDDEN)),
        "emb_ln_g": jnp.ones((1, HIDDEN), jnp.float32),
        "emb_ln_b": jnp.zeros((1, HIDDEN), jnp.float32),
        # per-layer weights stacked along a leading layer axis; Q/K/V fused; bf16
        "qkv_w": bf(normal(next(keys), (L, HIDDEN, 3 * HIDDEN))),
        "qkv_b": jnp.zeros((L, 1, 3 * HIDDEN), jnp.float32),
        "o_w": bf(normal(next(keys), (L, HIDDEN, HIDDEN))),
        "o_b": jnp.zeros((L, 1, HIDDEN), jnp.float32),
        "attn_ln_g": jnp.ones((L, 1, HIDDEN), jnp.float32),
        "attn_ln_b": jnp.zeros((L, 1, HIDDEN), jnp.float32),
        "ffn_w1": bf(normal(next(keys), (L, HIDDEN, INTERMEDIATE))),
        "ffn_b1": jnp.zeros((L, 1, INTERMEDIATE), jnp.float32),
        "ffn_w2": bf(normal(next(keys), (L, INTERMEDIATE, HIDDEN))),
        "ffn_b2": jnp.zeros((L, 1, HIDDEN), jnp.float32),
        "ffn_ln_g": jnp.ones((L, 1, HIDDEN), jnp.float32),
        "ffn_ln_b": jnp.zeros((L, 1, HIDDEN), jnp.float32),
        "cls_w_pad": bf(cls_w_pad),
        "cls_b_pad": cls_b_pad,
    }


# ----------------------------- model forward ---------------------------------
def bert_forward(params, input_ids, attention_mask, labels):
    """Returns (loss, logits), matching HF BertForTokenClassification with
    return_dict=False (dropout disabled / eval mode)."""
    B, S = input_ids.shape
    BS = B * S
    L = NUM_LAYERS

    # ---- embeddings (gathers are index glue; stay in plain JAX) ----
    emb = (jnp.take(params["word_emb"], input_ids, axis=0)
           + params["pos_emb"][None, :S, :]
           + params["type_emb"][0][None, None, :]).astype(jnp.float32)      # (B,S,H)
    emb_flat = emb.reshape(BS, HIDDEN)                                      # batch folded into M

    # Block-diagonal (same-batch) + key-padding additive attention bias, (BS, BS):
    # 0 where query & key are in the same batch element and the key is not padding,
    # MASK_BIAS everywhere else.  Lets attention run on the folded (BS, .) layout.
    batch_idx = jnp.repeat(jnp.arange(B, dtype=jnp.int32), S)               # (BS,)
    same_batch = batch_idx[:, None] == batch_idx[None, :]
    key_valid = attention_mask.reshape(BS) > 0
    attn_ok = jnp.logical_and(same_batch, key_valid[None, :])
    bias = jnp.where(attn_ok, 0.0, MASK_BIAS).astype(jnp.float32)           # (BS, BS)

    labels_col = labels.reshape(BS, 1).astype(jnp.int32)                    # (BS, 1)

    def full(shape):                                # whole-array blocks, resident in VMEM
        return pl.BlockSpec(shape, lambda i: (0,) * len(shape))

    in_specs = [
        full((BS, HIDDEN)),                                       # embeddings (flattened)
        full((BS, BS)),                                           # additive attention bias
        full((BS, 1)),                                            # int32 label column
        full((1, HIDDEN)), full((1, HIDDEN)),                     # emb LN
        full((L, HIDDEN, 3 * HIDDEN)), full((L, 1, 3 * HIDDEN)),  # fused QKV
        full((L, HIDDEN, HIDDEN)), full((L, 1, HIDDEN)),          # attn out proj
        full((L, 1, HIDDEN)), full((L, 1, HIDDEN)),               # attn LN
        full((L, HIDDEN, INTERMEDIATE)), full((L, 1, INTERMEDIATE)),
        full((L, INTERMEDIATE, HIDDEN)), full((L, 1, HIDDEN)),
        full((L, 1, HIDDEN)), full((L, 1, HIDDEN)),               # ffn LN
        full((HIDDEN, LABEL_PAD)), full((1, LABEL_PAD)),          # classifier (padded)
    ]
    out_specs = (
        full((BS, LABEL_PAD)),                                    # padded logits (lane-dense)
        pl.BlockSpec(memory_space=pltpu.MemorySpace.SMEM),        # scalar NLL sum
    )
    out_shape = (
        jax.ShapeDtypeStruct((BS, LABEL_PAD), jnp.float32),
        jax.ShapeDtypeStruct((1, 1), jnp.float32),
    )

    logits_pad, nll_sum = pl.pallas_call(
        _bert_kernel,
        out_shape=out_shape,
        grid=(1,),
        in_specs=in_specs,
        out_specs=out_specs,
        compiler_params=pltpu.CompilerParams(
            dimension_semantics=("arbitrary",)),
    )(
        emb_flat, bias, labels_col,
        params["emb_ln_g"], params["emb_ln_b"],
        params["qkv_w"], params["qkv_b"],
        params["o_w"], params["o_b"],
        params["attn_ln_g"], params["attn_ln_b"],
        params["ffn_w1"], params["ffn_b1"],
        params["ffn_w2"], params["ffn_b2"],
        params["ffn_ln_g"], params["ffn_ln_b"],
        params["cls_w_pad"], params["cls_b_pad"],
    )

    logits = logits_pad[:, :NUM_LABELS].reshape(B, S, NUM_LABELS)

    # CrossEntropyLoss: mean over non-ignored labels (ignore_index rows contribute 0
    # to the in-kernel NLL sum because their one-hot rows are all-zero).
    # TODO(synk): PyTorch returns NaN when ALL labels are ignore_index; here loss=0.
    valid = jnp.logical_and(labels != IGNORE_INDEX, labels >= 0)
    n_valid = jnp.maximum(jnp.sum(valid.astype(jnp.float32)), 1.0)
    loss = nll_sum[0, 0] / n_valid
    return loss, logits


# ----------------------------- main ------------------------------------------
if __name__ == "__main__":
    key = jax.random.PRNGKey(0)
    k_param, k_ids, k_lbl = jax.random.split(key, 3)

    B, S = 2, 8
    params = init_params(k_param)
    input_ids = jax.random.randint(k_ids, (B, S), 0, VOCAB, dtype=jnp.int32)
    # mask: last two tokens of batch 1 are padding
    attention_mask = jnp.ones((B, S), jnp.int32).at[1, -2:].set(0)
    labels = jax.random.randint(k_lbl, (B, S), 0, NUM_LABELS, dtype=jnp.int32)

    loss, logits = jax.jit(bert_forward)(params, input_ids, attention_mask, labels)
    jax.block_until_ready((loss, logits))

    assert logits.shape == (B, S, NUM_LABELS)
    assert loss.shape == ()
    assert bool(jnp.isfinite(loss)) and bool(jnp.all(jnp.isfinite(logits)))
    print("KERNEL_OK")
</pallas_src>

<mosaic_0001>
module attributes {stable_mosaic.version = 11 : i64} {
  func.func @_bert_kernel(%arg0: i32, %arg1: memref<16x128xf32, #tpu.memory_space<vmem>>, %arg2: memref<16x16xf32, #tpu.memory_space<vmem>>, %arg3: memref<16x1xi32, #tpu.memory_space<vmem>>, %arg4: memref<1x128xf32, #tpu.memory_space<vmem>>, %arg5: memref<1x128xf32, #tpu.memory_space<vmem>>, %arg6: memref<2x128x384xbf16, #tpu.memory_space<vmem>>, %arg7: memref<2x1x384xf32, #tpu.memory_space<vmem>>, %arg8: memref<2x128x128xbf16, #tpu.memory_space<vmem>>, %arg9: memref<2x1x128xf32, #tpu.memory_space<vmem>>, %arg10: memref<2x1x128xf32, #tpu.memory_space<vmem>>, %arg11: memref<2x1x128xf32, #tpu.memory_space<vmem>>, %arg12: memref<2x128x256xbf16, #tpu.memory_space<vmem>>, %arg13: memref<2x1x256xf32, #tpu.memory_space<vmem>>, %arg14: memref<2x256x128xbf16, #tpu.memory_space<vmem>>, %arg15: memref<2x1x128xf32, #tpu.memory_space<vmem>>, %arg16: memref<2x1x128xf32, #tpu.memory_space<vmem>>, %arg17: memref<2x1x128xf32, #tpu.memory_space<vmem>>, %arg18: memref<128x128xbf16, #tpu.memory_space<vmem>>, %arg19: memref<1x128xf32, #tpu.memory_space<vmem>>, %arg20: memref<16x128xf32, #tpu.memory_space<vmem>>, %arg21: memref<1x1xf32, #tpu.memory_space<smem>>) attributes {dimension_semantics = [#tpu.dimension_semantics<arbitrary>], iteration_bounds = array<i64: 1>, scalar_prefetch = 0 : i64, scratch_operands = 0 : i64, tpu.core_type = #tpu.core_type<tc>, window_params = [{pipeline_mode = #tpu.pipeline_mode<synchronous>, transform_indices = @transform_0, window_bounds = array<i64: 16, 128>}, {pipeline_mode = #tpu.pipeline_mode<synchronous>, transform_indices = @transform_1, window_bounds = array<i64: 16, 16>}, {pipeline_mode = #tpu.pipeline_mode<synchronous>, transform_indices = @transform_2, window_bounds = array<i64: 16, 1>}, {pipeline_mode = #tpu.pipeline_mode<synchronous>, transform_indices = @transform_3, window_bounds = array<i64: 1, 128>}, {pipeline_mode = #tpu.pipeline_mode<synchronous>, transform_indices = @transform_4, window_bounds = array<i64: 1, 128>}, {pipeline_mode = #tpu.pipeline_mode<synchronous>, transform_indices = @transform_5, window_bounds = array<i64: 2, 128, 384>}, {pipeline_mode = #tpu.pipeline_mode<synchronous>, transform_indices = @transform_6, window_bounds = array<i64: 2, 1, 384>}, {pipeline_mode = #tpu.pipeline_mode<synchronous>, transform_indices = @transform_7, window_bounds = array<i64: 2, 128, 128>}, {pipeline_mode = #tpu.pipeline_mode<synchronous>, transform_indices = @transform_8, window_bounds = array<i64: 2, 1, 128>}, {pipeline_mode = #tpu.pipeline_mode<synchronous>, transform_indices = @transform_9, window_bounds = array<i64: 2, 1, 128>}, {pipeline_mode = #tpu.pipeline_mode<synchronous>, transform_indices = @transform_10, window_bounds = array<i64: 2, 1, 128>}, {pipeline_mode = #tpu.pipeline_mode<synchronous>, transform_indices = @transform_11, window_bounds = array<i64: 2, 128, 256>}, {pipeline_mode = #tpu.pipeline_mode<synchronous>, transform_indices = @transform_12, window_bounds = array<i64: 2, 1, 256>}, {pipeline_mode = #tpu.pipeline_mode<synchronous>, transform_indices = @transform_13, window_bounds = array<i64: 2, 256, 128>}, {pipeline_mode = #tpu.pipeline_mode<synchronous>, transform_indices = @transform_14, window_bounds = array<i64: 2, 1, 128>}, {pipeline_mode = #tpu.pipeline_mode<synchronous>, transform_indices = @transform_15, window_bounds = array<i64: 2, 1, 128>}, {pipeline_mode = #tpu.pipeline_mode<synchronous>, transform_indices = @transform_16, window_bounds = array<i64: 2, 1, 128>}, {pipeline_mode = #tpu.pipeline_mode<synchronous>, transform_indices = @transform_17, window_bounds = array<i64: 128, 128>}, {pipeline_mode = #tpu.pipeline_mode<synchronous>, transform_indices = @transform_18, window_bounds = array<i64: 1, 128>}, {pipeline_mode = #tpu.pipeline_mode<synchronous>, transform_indices = @transform_19, window_bounds = array<i64: 16, 128>}, {transform_indices = @transform_20, window_bounds = array<i64: 1, 1>}]} {
    %c0 = arith.constant 0 : index
    %c0_0 = arith.constant 0 : index
    %0 = vector.load %arg1[%c0, %c0_0] : memref<16x128xf32, #tpu.memory_space<vmem>>, vector<16x128xf32>
    %c0_1 = arith.constant 0 : index
    %c0_2 = arith.constant 0 : index
    %1 = vector.load %arg4[%c0_1, %c0_2] : memref<1x128xf32, #tpu.memory_space<vmem>>, vector<1x128xf32>
    %c0_3 = arith.constant 0 : index
    %c0_4 = arith.constant 0 : index
    %2 = vector.load %arg5[%c0_3, %c0_4] : memref<1x128xf32, #tpu.memory_space<vmem>>, vector<1x128xf32>
    %cst = arith.constant dense<0.000000e+00> : vector<16xf32>
    %3 = vector.multi_reduction <add>, %0, %cst [1] : vector<16x128xf32> to vector<16xf32>
    %4 = vector.shape_cast %3 : vector<16xf32> to vector<16x1xf32>
    %cst_5 = arith.constant 1.280000e+02 : f32
    %5 = vector.broadcast %cst_5 : f32 to vector<16x1xf32>
    %6 = arith.divf %4, %5 : vector<16x1xf32>
    %7 = vector.broadcast %6 : vector<16x1xf32> to vector<16x128xf32>
    %8 = arith.subf %0, %7 : vector<16x128xf32>
    %9 = arith.mulf %8, %8 : vector<16x128xf32>
    %cst_6 = arith.constant dense<0.000000e+00> : vector<16xf32>
    %10 = vector.multi_reduction <add>, %9, %cst_6 [1] : vector<16x128xf32> to vector<16xf32>
    %11 = vector.shape_cast %10 : vector<16xf32> to vector<16x1xf32>
    %cst_7 = arith.constant 1.280000e+02 : f32
    %12 = vector.broadcast %cst_7 : f32 to vector<16x1xf32>
    %13 = arith.divf %11, %12 : vector<16x1xf32>
    %cst_8 = arith.constant 9.99999996E-13 : f32
    %14 = vector.broadcast %cst_8 : f32 to vector<16x1xf32>
    %15 = arith.addf %13, %14 : vector<16x1xf32>
    %16 = math.rsqrt %15 : vector<16x1xf32>
    %17 = vector.broadcast %16 : vector<16x1xf32> to vector<16x128xf32>
    %18 = arith.mulf %8, %17 : vector<16x128xf32>
    %19 = vector.broadcast %1 : vector<1x128xf32> to vector<16x128xf32>
    %20 = arith.mulf %18, %19 : vector<16x128xf32>
    %21 = vector.broadcast %2 : vector<1x128xf32> to vector<16x128xf32>
    %22 = arith.addf %20, %21 : vector<16x128xf32>
    %c0_9 = arith.constant 0 : index
    %c0_10 = arith.constant 0 : index
    %23 = vector.load %arg2[%c0_9, %c0_10] : memref<16x16xf32, #tpu.memory_space<vmem>>, vector<16x16xf32>
    %24 = arith.truncf %22 : vector<16x128xf32> to vector<16x128xbf16>
    %c0_11 = arith.constant 0 : index
    %c0_12 = arith.constant 0 : index
    %c0_13 = arith.constant 0 : index
    %25 = vector.load %arg6[%c0_11, %c0_12, %c0_13] : memref<2x128x384xbf16, #tpu.memory_space<vmem>>, vector<1x128x384xbf16>
    %26 = vector.shape_cast %25 : vector<1x128x384xbf16> to vector<128x384xbf16>
    %cst_14 = arith.constant dense<0.000000e+00> : vector<16x384xf32>
    %27 = tpu.matmul %24, %26, %cst_14 {dimension_numbers = #tpu.dot_dimension_numbers<[1], [0], [0], [1], [0, 0, 1, 1], [], []>} : vector<16x128xbf16>, vector<128x384xbf16>, vector<16x384xf32> -> vector<16x384xf32>
    %c0_15 = arith.constant 0 : index
    %c0_16 = arith.constant 0 : index
    %c0_17 = arith.constant 0 : index
    %28 = vector.load %arg7[%c0_15, %c0_16, %c0_17] : memref<2x1x384xf32, #tpu.memory_space<vmem>>, vector<1x1x384xf32>
    %29 = vector.shape_cast %28 : vector<1x1x384xf32> to vector<1x384xf32>
    %30 = vector.broadcast %29 : vector<1x384xf32> to vector<16x384xf32>
    %31 = arith.addf %27, %30 : vector<16x384xf32>
    %32 = vector.extract_strided_slice %31 {offsets = [0, 0], sizes = [16, 128], strides = [1, 1]} : vector<16x384xf32> to vector<16x128xf32>
    %33 = vector.extract_strided_slice %31 {offsets = [0, 128], sizes = [16, 128], strides = [1, 1]} : vector<16x384xf32> to vector<16x128xf32>
    %34 = vector.extract_strided_slice %31 {offsets = [0, 256], sizes = [16, 128], strides = [1, 1]} : vector<16x384xf32> to vector<16x128xf32>
    %35 = vector.extract_strided_slice %32 {offsets = [0, 0], sizes = [16, 32], strides = [1, 1]} : vector<16x128xf32> to vector<16x32xf32>
    %36 = arith.truncf %35 : vector<16x32xf32> to vector<16x32xbf16>
    %37 = vector.extract_strided_slice %33 {offsets = [0, 0], sizes = [16, 32], strides = [1, 1]} : vector<16x128xf32> to vector<16x32xf32>
    %38 = arith.truncf %37 : vector<16x32xf32> to vector<16x32xbf16>
    %39 = vector.extract_strided_slice %34 {offsets = [0, 0], sizes = [16, 32], strides = [1, 1]} : vector<16x128xf32> to vector<16x32xf32>
    %40 = arith.truncf %39 : vector<16x32xf32> to vector<16x32xbf16>
    %cst_18 = arith.constant dense<0.000000e+00> : vector<16x16xf32>
    %41 = tpu.matmul %36, %38, %cst_18 {dimension_numbers = #tpu.dot_dimension_numbers<[1], [1], [0], [0], [0, 0, 1, 0], [], []>} : vector<16x32xbf16>, vector<16x32xbf16>, vector<16x16xf32> -> vector<16x16xf32>
    %cst_19 = arith.constant 0.176776692 : f32
    %42 = vector.broadcast %cst_19 : f32 to vector<16x16xf32>
    %43 = arith.mulf %41, %42 : vector<16x16xf32>
    %44 = arith.addf %43, %23 : vector<16x16xf32>
    %cst_20 = arith.constant dense<0xFF800000> : vector<16xf32>
    %45 = vector.multi_reduction <maximumf>, %44, %cst_20 [1] : vector<16x16xf32> to vector<16xf32>
    %46 = vector.shape_cast %45 : vector<16xf32> to vector<16x1xf32>
    %47 = vector.broadcast %46 : vector<16x1xf32> to vector<16x16xf32>
    %48 = arith.subf %44, %47 : vector<16x16xf32>
    %49 = math.exp %48 : vector<16x16xf32>
    %cst_21 = arith.constant dense<0.000000e+00> : vector<16xf32>
    %50 = vector.multi_reduction <add>, %49, %cst_21 [1] : vector<16x16xf32> to vector<16xf32>
    %51 = vector.shape_cast %50 : vector<16xf32> to vector<16x1xf32>
    %52 = arith.truncf %49 : vector<16x16xf32> to vector<16x16xbf16>
    %cst_22 = arith.constant dense<0.000000e+00> : vector<16x32xf32>
    %53 = tpu.matmul %52, %40, %cst_22 {dimension_numbers = #tpu.dot_dimension_numbers<[1], [0], [0], [1], [0, 0, 1, 1], [], []>} : vector<16x16xbf16>, vector<16x32xbf16>, vector<16x32xf32> -> vector<16x32xf32>
    %54 = vector.broadcast %51 : vector<16x1xf32> to vector<16x32xf32>
    %55 = arith.divf %53, %54 : vector<16x32xf32>
    %56 = vector.extract_strided_slice %32 {offsets = [0, 32], sizes = [16, 32], strides = [1, 1]} : vector<16x128xf32> to vector<16x32xf32>
    %57 = arith.truncf %56 : vector<16x32xf32> to vector<16x32xbf16>
    %58 = vector.extract_strided_slice %33 {offsets = [0, 32], sizes = [16, 32], strides = [1, 1]} : vector<16x128xf32> to vector<16x32xf32>
    %59 = arith.truncf %58 : vector<16x32xf32> to vector<16x32xbf16>
    %60 = vector.extract_strided_slice %34 {offsets = [0, 32], sizes = [16, 32], strides = [1, 1]} : vector<16x128xf32> to vector<16x32xf32>
    %61 = arith.truncf %60 : vector<16x32xf32> to vector<16x32xbf16>
    %cst_23 = arith.constant dense<0.000000e+00> : vector<16x16xf32>
    %62 = tpu.matmul %57, %59, %cst_23 {dimension_numbers = #tpu.dot_dimension_numbers<[1], [1], [0], [0], [0, 0, 1, 0], [], []>} : vector<16x32xbf16>, vector<16x32xbf16>, vector<16x16xf32> -> vector<16x16xf32>
    %cst_24 = arith.constant 0.176776692 : f32
    %63 = vector.broadcast %cst_24 : f32 to vector<16x16xf32>
    %64 = arith.mulf %62, %63 : vector<16x16xf32>
    %65 = arith.addf %64, %23 : vector<16x16xf32>
    %cst_25 = arith.constant dense<0xFF800000> : vector<16xf32>
    %66 = vector.multi_reduction <maximumf>, %65, %cst_25 [1] : vector<16x16xf32> to vector<16xf32>
    %67 = vector.shape_cast %66 : vector<16xf32> to vector<16x1xf32>
    %68 = vector.broadcast %67 : vector<16x1xf32> to vector<16x16xf32>
    %69 = arith.subf %65, %68 : vector<16x16xf32>
    %70 = math.exp %69 : vector<16x16xf32>
    %cst_26 = arith.constant dense<0.000000e+00> : vector<16xf32>
    %71 = vector.multi_reduction <add>, %70, %cst_26 [1] : vector<16x16xf32> to vector<16xf32>
    %72 = vector.shape_cast %71 : vector<16xf32> to vector<16x1xf32>
    %73 = arith.truncf %70 : vector<16x16xf32> to vector<16x16xbf16>
    %cst_27 = arith.constant dense<0.000000e+00> : vector<16x32xf32>
    %74 = tpu.matmul %73, %61, %cst_27 {dimension_numbers = #tpu.dot_dimension_numbers<[1], [0], [0], [1], [0, 0, 1, 1], [], []>} : vector<16x16xbf16>, vector<16x32xbf16>, vector<16x32xf32> -> vector<16x32xf32>
    %75 = vector.broadcast %72 : vector<16x1xf32> to vector<16x32xf32>
    %76 = arith.divf %74, %75 : vector<16x32xf32>
    %77 = vector.extract_strided_slice %32 {offsets = [0, 64], sizes = [16, 32], strides = [1, 1]} : vector<16x128xf32> to vector<16x32xf32>
    %78 = arith.truncf %77 : vector<16x32xf32> to vector<16x32xbf16>
    %79 = vector.extract_strided_slice %33 {offsets = [0, 64], sizes = [16, 32], strides = [1, 1]} : vector<16x128xf32> to vector<16x32xf32>
    %80 = arith.truncf %79 : vector<16x32xf32> to vector<16x32xbf16>
    %81 = vector.extract_strided_slice %34 {offsets = [0, 64], sizes = [16, 32], strides = [1, 1]} : vector<16x128xf32> to vector<16x32xf32>
    %82 = arith.truncf %81 : vector<16x32xf32> to vector<16x32xbf16>
    %cst_28 = arith.constant dense<0.000000e+00> : vector<16x16xf32>
    %83 = tpu.matmul %78, %80, %cst_28 {dimension_numbers = #tpu.dot_dimension_numbers<[1], [1], [0], [0], [0, 0, 1, 0], [], []>} : vector<16x32xbf16>, vector<16x32xbf16>, vector<16x16xf32> -> vector<16x16xf32>
    %cst_29 = arith.constant 0.176776692 : f32
    %84 = vector.broadcast %cst_29 : f32 to vector<16x16xf32>
    %85 = arith.mulf %83, %84 : vector<16x16xf32>
    %86 = arith.addf %85, %23 : vector<16x16xf32>
    %cst_30 = arith.constant dense<0xFF800000> : vector<16xf32>
    %87 = vector.multi_reduction <maximumf>, %86, %cst_30 [1] : vector<16x16xf32> to vector<16xf32>
    %88 = vector.shape_cast %87 : vector<16xf32> to vector<16x1xf32>
    %89 = vector.broadcast %88 : vector<16x1xf32> to vector<16x16xf32>
    %90 = arith.subf %86, %89 : vector<16x16xf32>
    %91 = math.exp %90 : vector<16x16xf32>
    %cst_31 = arith.constant dense<0.000000e+00> : vector<16xf32>
    %92 = vector.multi_reduction <add>, %91, %cst_31 [1] : vector<16x16xf32> to vector<16xf32>
    %93 = vector.shape_cast %92 : vector<16xf32> to vector<16x1xf32>
    %94 = arith.truncf %91 : vector<16x16xf32> to vector<16x16xbf16>
    %cst_32 = arith.constant dense<0.000000e+00> : vector<16x32xf32>
    %95 = tpu.matmul %94, %82, %cst_32 {dimension_numbers = #tpu.dot_dimension_numbers<[1], [0], [0], [1], [0, 0, 1, 1], [], []>} : vector<16x16xbf16>, vector<16x32xbf16>, vector<16x32xf32> -> vector<16x32xf32>
    %96 = vector.broadcast %93 : vector<16x1xf32> to vector<16x32xf32>
    %97 = arith.divf %95, %96 : vector<16x32xf32>
    %98 = vector.extract_strided_slice %32 {offsets = [0, 96], sizes = [16, 32], strides = [1, 1]} : vector<16x128xf32> to vector<16x32xf32>
    %99 = arith.truncf %98 : vector<16x32xf32> to vector<16x32xbf16>
    %100 = vector.extract_strided_slice %33 {offsets = [0, 96], sizes = [16, 32], strides = [1, 1]} : vector<16x128xf32> to vector<16x32xf32>
    %101 = arith.truncf %100 : vector<16x32xf32> to vector<16x32xbf16>
    %102 = vector.extract_strided_slice %34 {offsets = [0, 96], sizes = [16, 32], strides = [1, 1]} : vector<16x128xf32> to vector<16x32xf32>
    %103 = arith.truncf %102 : vector<16x32xf32> to vector<16x32xbf16>
    %cst_33 = arith.constant dense<0.000000e+00> : vector<16x16xf32>
    %104 = tpu.matmul %99, %101, %cst_33 {dimension_numbers = #tpu.dot_dimension_numbers<[1], [1], [0], [0], [0, 0, 1, 0], [], []>} : vector<16x32xbf16>, vector<16x32xbf16>, vector<16x16xf32> -> vector<16x16xf32>
    %cst_34 = arith.constant 0.176776692 : f32
    %105 = vector.broadcast %cst_34 : f32 to vector<16x16xf32>
    %106 = arith.mulf %104, %105 : vector<16x16xf32>
    %107 = arith.addf %106, %23 : vector<16x16xf32>
    %cst_35 = arith.constant dense<0xFF800000> : vector<16xf32>
    %108 = vector.multi_reduction <maximumf>, %107, %cst_35 [1] : vector<16x16xf32> to vector<16xf32>
    %109 = vector.shape_cast %108 : vector<16xf32> to vector<16x1xf32>
    %110 = vector.broadcast %109 : vector<16x1xf32> to vector<16x16xf32>
    %111 = arith.subf %107, %110 : vector<16x16xf32>
    %112 = math.exp %111 : vector<16x16xf32>
    %cst_36 = arith.constant dense<0.000000e+00> : vector<16xf32>
    %113 = vector.multi_reduction <add>, %112, %cst_36 [1] : vector<16x16xf32> to vector<16xf32>
    %114 = vector.shape_cast %113 : vector<16xf32> to vector<16x1xf32>
    %115 = arith.truncf %112 : vector<16x16xf32> to vector<16x16xbf16>
    %cst_37 = arith.constant dense<0.000000e+00> : vector<16x32xf32>
    %116 = tpu.matmul %115, %103, %cst_37 {dimension_numbers = #tpu.dot_dimension_numbers<[1], [0], [0], [1], [0, 0, 1, 1], [], []>} : vector<16x16xbf16>, vector<16x32xbf16>, vector<16x32xf32> -> vector<16x32xf32>
    %117 = vector.broadcast %114 : vector<16x1xf32> to vector<16x32xf32>
    %118 = arith.divf %116, %117 : vector<16x32xf32>
    %119 = tpu.concatenate %55, %76, %97, %118 in 1 : vector<16x32xf32>, vector<16x32xf32>, vector<16x32xf32>, vector<16x32xf32> -> vector<16x128xf32>
    %120 = arith.truncf %119 : vector<16x128xf32> to vector<16x128xbf16>
    %c0_38 = arith.constant 0 : index
    %c0_39 = arith.constant 0 : index
    %c0_40 = arith.constant 0 : index
    %121 = vector.load %arg8[%c0_38, %c0_39, %c0_40] : memref<2x128x128xbf16, #tpu.memory_space<vmem>>, vector<1x128x128xbf16>
    %122 = vector.shape_cast %121 : vector<1x128x128xbf16> to vector<128x128xbf16>
    %cst_41 = arith.constant dense<0.000000e+00> : vector<16x128xf32>
    %123 = tpu.matmul %120, %122, %cst_41 {dimension_numbers = #tpu.dot_dimension_numbers<[1], [0], [0], [1], [0, 0, 1, 1], [], []>} : vector<16x128xbf16>, vector<128x128xbf16>, vector<16x128xf32> -> vector<16x128xf32>
    %c0_42 = arith.constant 0 : index
    %c0_43 = arith.constant 0 : index
    %c0_44 = arith.constant 0 : index
    %124 = vector.load %arg9[%c0_42, %c0_43, %c0_44] : memref<2x1x128xf32, #tpu.memory_space<vmem>>, vector<1x1x128xf32>
    %125 = vector.shape_cast %124 : vector<1x1x128xf32> to vector<1x128xf32>
    %126 = vector.broadcast %125 : vector<1x128xf32> to vector<16x128xf32>
    %127 = arith.addf %123, %126 : vector<16x128xf32>
    %128 = arith.addf %22, %127 : vector<16x128xf32>
    %c0_45 = arith.constant 0 : index
    %c0_46 = arith.constant 0 : index
    %c0_47 = arith.constant 0 : index
    %129 = vector.load %arg10[%c0_45, %c0_46, %c0_47] : memref<2x1x128xf32, #tpu.memory_space<vmem>>, vector<1x1x128xf32>
    %130 = vector.shape_cast %129 : vector<1x1x128xf32> to vector<1x128xf32>
    %c0_48 = arith.constant 0 : index
    %c0_49 = arith.constant 0 : index
    %c0_50 = arith.constant 0 : index
    %131 = vector.load %arg11[%c0_48, %c0_49, %c0_50] : memref<2x1x128xf32, #tpu.memory_space<vmem>>, vector<1x1x128xf32>
    %132 = vector.shape_cast %131 : vector<1x1x128xf32> to vector<1x128xf32>
    %cst_51 = arith.constant dense<0.000000e+00> : vector<16xf32>
    %133 = vector.multi_reduction <add>, %128, %cst_51 [1] : vector<16x128xf32> to vector<16xf32>
    %134 = vector.shape_cast %133 : vector<16xf32> to vector<16x1xf32>
    %cst_52 = arith.constant 1.280000e+02 : f32
    %135 = vector.broadcast %cst_52 : f32 to vector<16x1xf32>
    %136 = arith.divf %134, %135 : vector<16x1xf32>
    %137 = vector.broadcast %136 : vector<16x1xf32> to vector<16x128xf32>
    %138 = arith.subf %128, %137 : vector<16x128xf32>
    %139 = arith.mulf %138, %138 : vector<16x128xf32>
    %cst_53 = arith.constant dense<0.000000e+00> : vector<16xf32>
    %140 = vector.multi_reduction <add>, %139, %cst_53 [1] : vector<16x128xf32> to vector<16xf32>
    %141 = vector.shape_cast %140 : vector<16xf32> to vector<16x1xf32>
    %cst_54 = arith.constant 1.280000e+02 : f32
    %142 = vector.broadcast %cst_54 : f32 to vector<16x1xf32>
    %143 = arith.divf %141, %142 : vector<16x1xf32>
    %cst_55 = arith.constant 9.99999996E-13 : f32
    %144 = vector.broadcast %cst_55 : f32 to vector<16x1xf32>
    %145 = arith.addf %143, %144 : vector<16x1xf32>
    %146 = math.rsqrt %145 : vector<16x1xf32>
    %147 = vector.broadcast %146 : vector<16x1xf32> to vector<16x128xf32>
    %148 = arith.mulf %138, %147 : vector<16x128xf32>
    %149 = vector.broadcast %130 : vector<1x128xf32> to vector<16x128xf32>
    %150 = arith.mulf %148, %149 : vector<16x128xf32>
    %151 = vector.broadcast %132 : vector<1x128xf32> to vector<16x128xf32>
    %152 = arith.addf %150, %151 : vector<16x128xf32>
    %153 = arith.truncf %152 : vector<16x128xf32> to vector<16x128xbf16>
    %c0_56 = arith.constant 0 : index
    %c0_57 = arith.constant 0 : index
    %c0_58 = arith.constant 0 : index
    %154 = vector.load %arg12[%c0_56, %c0_57, %c0_58] : memref<2x128x256xbf16, #tpu.memory_space<vmem>>, vector<1x128x256xbf16>
    %155 = vector.shape_cast %154 : vector<1x128x256xbf16> to vector<128x256xbf16>
    %cst_59 = arith.constant dense<0.000000e+00> : vector<16x256xf32>
    %156 = tpu.matmul %153, %155, %cst_59 {dimension_numbers = #tpu.dot_dimension_numbers<[1], [0], [0], [1], [0, 0, 1, 1], [], []>} : vector<16x128xbf16>, vector<128x256xbf16>, vector<16x256xf32> -> vector<16x256xf32>
    %c0_60 = arith.constant 0 : index
    %c0_61 = arith.constant 0 : index
    %c0_62 = arith.constant 0 : index
    %157 = vector.load %arg13[%c0_60, %c0_61, %c0_62] : memref<2x1x256xf32, #tpu.memory_space<vmem>>, vector<1x1x256xf32>
    %158 = vector.shape_cast %157 : vector<1x1x256xf32> to vector<1x256xf32>
    %159 = vector.broadcast %158 : vector<1x256xf32> to vector<16x256xf32>
    %160 = arith.addf %156, %159 : vector<16x256xf32>
    %cst_63 = arith.constant 5.000000e-01 : f32
    %161 = vector.broadcast %cst_63 : f32 to vector<16x256xf32>
    %162 = arith.mulf %161, %160 : vector<16x256xf32>
    %cst_64 = arith.constant 0.707106769 : f32
    %163 = vector.broadcast %cst_64 : f32 to vector<16x256xf32>
    %164 = arith.mulf %160, %163 : vector<16x256xf32>
    %165 = math.erf %164 : vector<16x256xf32>
    %cst_65 = arith.constant 1.000000e+00 : f32
    %166 = vector.broadcast %cst_65 : f32 to vector<16x256xf32>
    %167 = arith.addf %166, %165 : vector<16x256xf32>
    %168 = arith.mulf %162, %167 : vector<16x256xf32>
    %169 = arith.truncf %168 : vector<16x256xf32> to vector<16x256xbf16>
    %c0_66 = arith.constant 0 : index
    %c0_67 = arith.constant 0 : index
    %c0_68 = arith.constant 0 : index
    %170 = vector.load %arg14[%c0_66, %c0_67, %c0_68] : memref<2x256x128xbf16, #tpu.memory_space<vmem>>, vector<1x256x128xbf16>
    %171 = vector.shape_cast %170 : vector<1x256x128xbf16> to vector<256x128xbf16>
    %cst_69 = arith.constant dense<0.000000e+00> : vector<16x128xf32>
    %172 = tpu.matmul %169, %171, %cst_69 {dimension_numbers = #tpu.dot_dimension_numbers<[1], [0], [0], [1], [0, 0, 1, 1], [], []>} : vector<16x256xbf16>, vector<256x128xbf16>, vector<16x128xf32> -> vector<16x128xf32>
    %c0_70 = arith.constant 0 : index
    %c0_71 = arith.constant 0 : index
    %c0_72 = arith.constant 0 : index
    %173 = vector.load %arg15[%c0_70, %c0_71, %c0_72] : memref<2x1x128xf32, #tpu.memory_space<vmem>>, vector<1x1x128xf32>
    %174 = vector.shape_cast %173 : vector<1x1x128xf32> to vector<1x128xf32>
    %175 = vector.broadcast %174 : vector<1x128xf32> to vector<16x128xf32>
    %176 = arith.addf %172, %175 : vector<16x128xf32>
    %177 = arith.addf %152, %176 : vector<16x128xf32>
    %c0_73 = arith.constant 0 : index
    %c0_74 = arith.constant 0 : index
    %c0_75 = arith.constant 0 : index
    %178 = vector.load %arg16[%c0_73, %c0_74, %c0_75] : memref<2x1x128xf32, #tpu.memory_space<vmem>>, vector<1x1x128xf32>
    %179 = vector.shape_cast %178 : vector<1x1x128xf32> to vector<1x128xf32>
    %c0_76 = arith.constant 0 : index
    %c0_77 = arith.constant 0 : index
    %c0_78 = arith.constant 0 : index
    %180 = vector.load %arg17[%c0_76, %c0_77, %c0_78] : memref<2x1x128xf32, #tpu.memory_space<vmem>>, vector<1x1x128xf32>
    %181 = vector.shape_cast %180 : vector<1x1x128xf32> to vector<1x128xf32>
    %cst_79 = arith.constant dense<0.000000e+00> : vector<16xf32>
    %182 = vector.multi_reduction <add>, %177, %cst_79 [1] : vector<16x128xf32> to vector<16xf32>
    %183 = vector.shape_cast %182 : vector<16xf32> to vector<16x1xf32>
    %cst_80 = arith.constant 1.280000e+02 : f32
    %184 = vector.broadcast %cst_80 : f32 to vector<16x1xf32>
    %185 = arith.divf %183, %184 : vector<16x1xf32>
    %186 = vector.broadcast %185 : vector<16x1xf32> to vector<16x128xf32>
    %187 = arith.subf %177, %186 : vector<16x128xf32>
    %188 = arith.mulf %187, %187 : vector<16x128xf32>
    %cst_81 = arith.constant dense<0.000000e+00> : vector<16xf32>
    %189 = vector.multi_reduction <add>, %188, %cst_81 [1] : vector<16x128xf32> to vector<16xf32>
    %190 = vector.shape_cast %189 : vector<16xf32> to vector<16x1xf32>
    %cst_82 = arith.constant 1.280000e+02 : f32
    %191 = vector.broadcast %cst_82 : f32 to vector<16x1xf32>
    %192 = arith.divf %190, %191 : vector<16x1xf32>
    %cst_83 = arith.constant 9.99999996E-13 : f32
    %193 = vector.broadcast %cst_83 : f32 to vector<16x1xf32>
    %194 = arith.addf %192, %193 : vector<16x1xf32>
    %195 = math.rsqrt %194 : vector<16x1xf32>
    %196 = vector.broadcast %195 : vector<16x1xf32> to vector<16x128xf32>
    %197 = arith.mulf %187, %196 : vector<16x128xf32>
    %198 = vector.broadcast %179 : vector<1x128xf32> to vector<16x128xf32>
    %199 = arith.mulf %197, %198 : vector<16x128xf32>
    %200 = vector.broadcast %181 : vector<1x128xf32> to vector<16x128xf32>
    %201 = arith.addf %199, %200 : vector<16x128xf32>
    %202 = arith.truncf %201 : vector<16x128xf32> to vector<16x128xbf16>
    %c1 = arith.constant 1 : index
    %c0_84 = arith.constant 0 : index
    %c0_85 = arith.constant 0 : index
    %203 = vector.load %arg6[%c1, %c0_84, %c0_85] : memref<2x128x384xbf16, #tpu.memory_space<vmem>>, vector<1x128x384xbf16>
    %204 = vector.shape_cast %203 : vector<1x128x384xbf16> to vector<128x384xbf16>
    %cst_86 = arith.constant dense<0.000000e+00> : vector<16x384xf32>
    %205 = tpu.matmul %202, %204, %cst_86 {dimension_numbers = #tpu.dot_dimension_numbers<[1], [0], [0], [1], [0, 0, 1, 1], [], []>} : vector<16x128xbf16>, vector<128x384xbf16>, vector<16x384xf32> -> vector<16x384xf32>
    %c1_87 = arith.constant 1 : index
    %c0_88 = arith.constant 0 : index
    %c0_89 = arith.constant 0 : index
    %206 = vector.load %arg7[%c1_87, %c0_88, %c0_89] : memref<2x1x384xf32, #tpu.memory_space<vmem>>, vector<1x1x384xf32>
    %207 = vector.shape_cast %206 : vector<1x1x384xf32> to vector<1x384xf32>
    %208 = vector.broadcast %207 : vector<1x384xf32> to vector<16x384xf32>
    %209 = arith.addf %205, %208 : vector<16x384xf32>
    %210 = vector.extract_strided_slice %209 {offsets = [0, 0], sizes = [16, 128], strides = [1, 1]} : vector<16x384xf32> to vector<16x128xf32>
    %211 = vector.extract_strided_slice %209 {offsets = [0, 128], sizes = [16, 128], strides = [1, 1]} : vector<16x384xf32> to vector<16x128xf32>
    %212 = vector.extract_strided_slice %209 {offsets = [0, 256], sizes = [16, 128], strides = [1, 1]} : vector<16x384xf32> to vector<16x128xf32>
    %213 = vector.extract_strided_slice %210 {offsets = [0, 0], sizes = [16, 32], strides = [1, 1]} : vector<16x128xf32> to vector<16x32xf32>
    %214 = arith.truncf %213 : vector<16x32xf32> to vector<16x32xbf16>
    %215 = vector.extract_strided_slice %211 {offsets = [0, 0], sizes = [16, 32], strides = [1, 1]} : vector<16x128xf32> to vector<16x32xf32>
    %216 = arith.truncf %215 : vector<16x32xf32> to vector<16x32xbf16>
    %217 = vector.extract_strided_slice %212 {offsets = [0, 0], sizes = [16, 32], strides = [1, 1]} : vector<16x128xf32> to vector<16x32xf32>
    %218 = arith.truncf %217 : vector<16x32xf32> to vector<16x32xbf16>
    %cst_90 = arith.constant dense<0.000000e+00> : vector<16x16xf32>
    %219 = tpu.matmul %214, %216, %cst_90 {dimension_numbers = #tpu.dot_dimension_numbers<[1], [1], [0], [0], [0, 0, 1, 0], [], []>} : vector<16x32xbf16>, vector<16x32xbf16>, vector<16x16xf32> -> vector<16x16xf32>
    %cst_91 = arith.constant 0.176776692 : f32
    %220 = vector.broadcast %cst_91 : f32 to vector<16x16xf32>
    %221 = arith.mulf %219, %220 : vector<16x16xf32>
    %222 = arith.addf %221, %23 : vector<16x16xf32>
    %cst_92 = arith.constant dense<0xFF800000> : vector<16xf32>
    %223 = vector.multi_reduction <maximumf>, %222, %cst_92 [1] : vector<16x16xf32> to vector<16xf32>
    %224 = vector.shape_cast %223 : vector<16xf32> to vector<16x1xf32>
    %225 = vector.broadcast %224 : vector<16x1xf32> to vector<16x16xf32>
    %226 = arith.subf %222, %225 : vector<16x16xf32>
    %227 = math.exp %226 : vector<16x16xf32>
    %cst_93 = arith.constant dense<0.000000e+00> : vector<16xf32>
    %228 = vector.multi_reduction <add>, %227, %cst_93 [1] : vector<16x16xf32> to vector<16xf32>
    %229 = vector.shape_cast %228 : vector<16xf32> to vector<16x1xf32>
    %230 = arith.truncf %227 : vector<16x16xf32> to vector<16x16xbf16>
    %cst_94 = arith.constant dense<0.000000e+00> : vector<16x32xf32>
    %231 = tpu.matmul %230, %218, %cst_94 {dimension_numbers = #tpu.dot_dimension_numbers<[1], [0], [0], [1], [0, 0, 1, 1], [], []>} : vector<16x16xbf16>, vector<16x32xbf16>, vector<16x32xf32> -> vector<16x32xf32>
    %232 = vector.broadcast %229 : vector<16x1xf32> to vector<16x32xf32>
    %233 = arith.divf %231, %232 : vector<16x32xf32>
    %234 = vector.extract_strided_slice %210 {offsets = [0, 32], sizes = [16, 32], strides = [1, 1]} : vector<16x128xf32> to vector<16x32xf32>
    %235 = arith.truncf %234 : vector<16x32xf32> to vector<16x32xbf16>
    %236 = vector.extract_strided_slice %211 {offsets = [0, 32], sizes = [16, 32], strides = [1, 1]} : vector<16x128xf32> to vector<16x32xf32>
    %237 = arith.truncf %236 : vector<16x32xf32> to vector<16x32xbf16>
    %238 = vector.extract_strided_slice %212 {offsets = [0, 32], sizes = [16, 32], strides = [1, 1]} : vector<16x128xf32> to vector<16x32xf32>
    %239 = arith.truncf %238 : vector<16x32xf32> to vector<16x32xbf16>
    %cst_95 = arith.constant dense<0.000000e+00> : vector<16x16xf32>
    %240 = tpu.matmul %235, %237, %cst_95 {dimension_numbers = #tpu.dot_dimension_numbers<[1], [1], [0], [0], [0, 0, 1, 0], [], []>} : vector<16x32xbf16>, vector<16x32xbf16>, vector<16x16xf32> -> vector<16x16xf32>
    %cst_96 = arith.constant 0.176776692 : f32
    %241 = vector.broadcast %cst_96 : f32 to vector<16x16xf32>
    %242 = arith.mulf %240, %241 : vector<16x16xf32>
    %243 = arith.addf %242, %23 : vector<16x16xf32>
    %cst_97 = arith.constant dense<0xFF800000> : vector<16xf32>
    %244 = vector.multi_reduction <maximumf>, %243, %cst_97 [1] : vector<16x16xf32> to vector<16xf32>
    %245 = vector.shape_cast %244 : vector<16xf32> to vector<16x1xf32>
    %246 = vector.broadcast %245 : vector<16x1xf32> to vector<16x16xf32>
    %247 = arith.subf %243, %246 : vector<16x16xf32>
    %248 = math.exp %247 : vector<16x16xf32>
    %cst_98 = arith.constant dense<0.000000e+00> : vector<16xf32>
    %249 = vector.multi_reduction <add>, %248, %cst_98 [1] : vector<16x16xf32> to vector<16xf32>
    %250 = vector.shape_cast %249 : vector<16xf32> to vector<16x1xf32>
    %251 = arith.truncf %248 : vector<16x16xf32> to vector<16x16xbf16>
    %cst_99 = arith.constant dense<0.000000e+00> : vector<16x32xf32>
    %252 = tpu.matmul %251, %239, %cst_99 {dimension_numbers = #tpu.dot_dimension_numbers<[1], [0], [0], [1], [0, 0, 1, 1], [], []>} : vector<16x16xbf16>, vector<16x32xbf16>, vector<16x32xf32> -> vector<16x32xf32>
    %253 = vector.broadcast %250 : vector<16x1xf32> to vector<16x32xf32>
    %254 = arith.divf %252, %253 : vector<16x32xf32>
    %255 = vector.extract_strided_slice %210 {offsets = [0, 64], sizes = [16, 32], strides = [1, 1]} : vector<16x128xf32> to vector<16x32xf32>
    %256 = arith.truncf %255 : vector<16x32xf32> to vector<16x32xbf16>
    %257 = vector.extract_strided_slice %211 {offsets = [0, 64], sizes = [16, 32], strides = [1, 1]} : vector<16x128xf32> to vector<16x32xf32>
    %258 = arith.truncf %257 : vector<16x32xf32> to vector<16x32xbf16>
    %259 = vector.extract_strided_slice %212 {offsets = [0, 64], sizes = [16, 32], strides = [1, 1]} : vector<16x128xf32> to vector<16x32xf32>
    %260 = arith.truncf %259 : vector<16x32xf32> to vector<16x32xbf16>
    %cst_100 = arith.constant dense<0.000000e+00> : vector<16x16xf32>
    %261 = tpu.matmul %256, %258, %cst_100 {dimension_numbers = #tpu.dot_dimension_numbers<[1], [1], [0], [0], [0, 0, 1, 0], [], []>} : vector<16x32xbf16>, vector<16x32xbf16>, vector<16x16xf32> -> vector<16x16xf32>
    %cst_101 = arith.constant 0.176776692 : f32
    %262 = vector.broadcast %cst_101 : f32 to vector<16x16xf32>
    %263 = arith.mulf %261, %262 : vector<16x16xf32>
    %264 = arith.addf %263, %23 : vector<16x16xf32>
    %cst_102 = arith.constant dense<0xFF800000> : vector<16xf32>
    %265 = vector.multi_reduction <maximumf>, %264, %cst_102 [1] : vector<16x16xf32> to vector<16xf32>
    %266 = vector.shape_cast %265 : vector<16xf32> to vector<16x1xf32>
    %267 = vector.broadcast %266 : vector<16x1xf32> to vector<16x16xf32>
    %268 = arith.subf %264, %267 : vector<16x16xf32>
    %269 = math.exp %268 : vector<16x16xf32>
    %cst_103 = arith.constant dense<0.000000e+00> : vector<16xf32>
    %270 = vector.multi_reduction <add>, %269, %cst_103 [1] : vector<16x16xf32> to vector<16xf32>
    %271 = vector.shape_cast %270 : vector<16xf32> to vector<16x1xf32>
    %272 = arith.truncf %269 : vector<16x16xf32> to vector<16x16xbf16>
    %cst_104 = arith.constant dense<0.000000e+00> : vector<16x32xf32>
    %273 = tpu.matmul %272, %260, %cst_104 {dimension_numbers = #tpu.dot_dimension_numbers<[1], [0], [0], [1], [0, 0, 1, 1], [], []>} : vector<16x16xbf16>, vector<16x32xbf16>, vector<16x32xf32> -> vector<16x32xf32>
    %274 = vector.broadcast %271 : vector<16x1xf32> to vector<16x32xf32>
    %275 = arith.divf %273, %274 : vector<16x32xf32>
    %276 = vector.extract_strided_slice %210 {offsets = [0, 96], sizes = [16, 32], strides = [1, 1]} : vector<16x128xf32> to vector<16x32xf32>
    %277 = arith.truncf %276 : vector<16x32xf32> to vector<16x32xbf16>
    %278 = vector.extract_strided_slice %211 {offsets = [0, 96], sizes = [16, 32], strides = [1, 1]} : vector<16x128xf32> to vector<16x32xf32>
    %279 = arith.truncf %278 : vector<16x32xf32> to vector<16x32xbf16>
    %280 = vector.extract_strided_slice %212 {offsets = [0, 96], sizes = [16, 32], strides = [1, 1]} : vector<16x128xf32> to vector<16x32xf32>
    %281 = arith.truncf %280 : vector<16x32xf32> to vector<16x32xbf16>
    %cst_105 = arith.constant dense<0.000000e+00> : vector<16x16xf32>
    %282 = tpu.matmul %277, %279, %cst_105 {dimension_numbers = #tpu.dot_dimension_numbers<[1], [1], [0], [0], [0, 0, 1, 0], [], []>} : vector<16x32xbf16>, vector<16x32xbf16>, vector<16x16xf32> -> vector<16x16xf32>
    %cst_106 = arith.constant 0.176776692 : f32
    %283 = vector.broadcast %cst_106 : f32 to vector<16x16xf32>
    %284 = arith.mulf %282, %283 : vector<16x16xf32>
    %285 = arith.addf %284, %23 : vector<16x16xf32>
    %cst_107 = arith.constant dense<0xFF800000> : vector<16xf32>
    %286 = vector.multi_reduction <maximumf>, %285, %cst_107 [1] : vector<16x16xf32> to vector<16xf32>
    %287 = vector.shape_cast %286 : vector<16xf32> to vector<16x1xf32>
    %288 = vector.broadcast %287 : vector<16x1xf32> to vector<16x16xf32>
    %289 = arith.subf %285, %288 : vector<16x16xf32>
    %290 = math.exp %289 : vector<16x16xf32>
    %cst_108 = arith.constant dense<0.000000e+00> : vector<16xf32>
    %291 = vector.multi_reduction <add>, %290, %cst_108 [1] : vector<16x16xf32> to vector<16xf32>
    %292 = vector.shape_cast %291 : vector<16xf32> to vector<16x1xf32>
    %293 = arith.truncf %290 : vector<16x16xf32> to vector<16x16xbf16>
    %cst_109 = arith.constant dense<0.000000e+00> : vector<16x32xf32>
    %294 = tpu.matmul %293, %281, %cst_109 {dimension_numbers = #tpu.dot_dimension_numbers<[1], [0], [0], [1], [0, 0, 1, 1], [], []>} : vector<16x16xbf16>, vector<16x32xbf16>, vector<16x32xf32> -> vector<16x32xf32>
    %295 = vector.broadcast %292 : vector<16x1xf32> to vector<16x32xf32>
    %296 = arith.divf %294, %295 : vector<16x32xf32>
    %297 = tpu.concatenate %233, %254, %275, %296 in 1 : vector<16x32xf32>, vector<16x32xf32>, vector<16x32xf32>, vector<16x32xf32> -> vector<16x128xf32>
    %298 = arith.truncf %297 : vector<16x128xf32> to vector<16x128xbf16>
    %c1_110 = arith.constant 1 : index
    %c0_111 = arith.constant 0 : index
    %c0_112 = arith.constant 0 : index
    %299 = vector.load %arg8[%c1_110, %c0_111, %c0_112] : memref<2x128x128xbf16, #tpu.memory_space<vmem>>, vector<1x128x128xbf16>
    %300 = vector.shape_cast %299 : vector<1x128x128xbf16> to vector<128x128xbf16>
    %cst_113 = arith.constant dense<0.000000e+00> : vector<16x128xf32>
    %301 = tpu.matmul %298, %300, %cst_113 {dimension_numbers = #tpu.dot_dimension_numbers<[1], [0], [0], [1], [0, 0, 1, 1], [], []>} : vector<16x128xbf16>, vector<128x128xbf16>, vector<16x128xf32> -> vector<16x128xf32>
    %c1_114 = arith.constant 1 : index
    %c0_115 = arith.constant 0 : index
    %c0_116 = arith.constant 0 : index
    %302 = vector.load %arg9[%c1_114, %c0_115, %c0_116] : memref<2x1x128xf32, #tpu.memory_space<vmem>>, vector<1x1x128xf32>
    %303 = vector.shape_cast %302 : vector<1x1x128xf32> to vector<1x128xf32>
    %304 = vector.broadcast %303 : vector<1x128xf32> to vector<16x128xf32>
    %305 = arith.addf %301, %304 : vector<16x128xf32>
    %306 = arith.addf %201, %305 : vector<16x128xf32>
    %c1_117 = arith.constant 1 : index
    %c0_118 = arith.constant 0 : index
    %c0_119 = arith.constant 0 : index
    %307 = vector.load %arg10[%c1_117, %c0_118, %c0_119] : memref<2x1x128xf32, #tpu.memory_space<vmem>>, vector<1x1x128xf32>
    %308 = vector.shape_cast %307 : vector<1x1x128xf32> to vector<1x128xf32>
    %c1_120 = arith.constant 1 : index
    %c0_121 = arith.constant 0 : index
    %c0_122 = arith.constant 0 : index
    %309 = vector.load %arg11[%c1_120, %c0_121, %c0_122] : memref<2x1x128xf32, #tpu.memory_space<vmem>>, vector<1x1x128xf32>
    %310 = vector.shape_cast %309 : vector<1x1x128xf32> to vector<1x128xf32>
    %cst_123 = arith.constant dense<0.000000e+00> : vector<16xf32>
    %311 = vector.multi_reduction <add>, %306, %cst_123 [1] : vector<16x128xf32> to vector<16xf32>
    %312 = vector.shape_cast %311 : vector<16xf32> to vector<16x1xf32>
    %cst_124 = arith.constant 1.280000e+02 : f32
    %313 = vector.broadcast %cst_124 : f32 to vector<16x1xf32>
    %314 = arith.divf %312, %313 : vector<16x1xf32>
    %315 = vector.broadcast %314 : vector<16x1xf32> to vector<16x128xf32>
    %316 = arith.subf %306, %315 : vector<16x128xf32>
    %317 = arith.mulf %316, %316 : vector<16x128xf32>
    %cst_125 = arith.constant dense<0.000000e+00> : vector<16xf32>
    %318 = vector.multi_reduction <add>, %317, %cst_125 [1] : vector<16x128xf32> to vector<16xf32>
    %319 = vector.shape_cast %318 : vector<16xf32> to vector<16x1xf32>
    %cst_126 = arith.constant 1.280000e+02 : f32
    %320 = vector.broadcast %cst_126 : f32 to vector<16x1xf32>
    %321 = arith.divf %319, %320 : vector<16x1xf32>
    %cst_127 = arith.constant 9.99999996E-13 : f32
    %322 = vector.broadcast %cst_127 : f32 to vector<16x1xf32>
    %323 = arith.addf %321, %322 : vector<16x1xf32>
    %324 = math.rsqrt %323 : vector<16x1xf32>
    %325 = vector.broadcast %324 : vector<16x1xf32> to vector<16x128xf32>
    %326 = arith.mulf %316, %325 : vector<16x128xf32>
    %327 = vector.broadcast %308 : vector<1x128xf32> to vector<16x128xf32>
    %328 = arith.mulf %326, %327 : vector<16x128xf32>
    %329 = vector.broadcast %310 : vector<1x128xf32> to vector<16x128xf32>
    %330 = arith.addf %328, %329 : vector<16x128xf32>
    %331 = arith.truncf %330 : vector<16x128xf32> to vector<16x128xbf16>
    %c1_128 = arith.constant 1 : index
    %c0_129 = arith.constant 0 : index
    %c0_130 = arith.constant 0 : index
    %332 = vector.load %arg12[%c1_128, %c0_129, %c0_130] : memref<2x128x256xbf16, #tpu.memory_space<vmem>>, vector<1x128x256xbf16>
    %333 = vector.shape_cast %332 : vector<1x128x256xbf16> to vector<128x256xbf16>
    %cst_131 = arith.constant dense<0.000000e+00> : vector<16x256xf32>
    %334 = tpu.matmul %331, %333, %cst_131 {dimension_numbers = #tpu.dot_dimension_numbers<[1], [0], [0], [1], [0, 0, 1, 1], [], []>} : vector<16x128xbf16>, vector<128x256xbf16>, vector<16x256xf32> -> vector<16x256xf32>
    %c1_132 = arith.constant 1 : index
    %c0_133 = arith.constant 0 : index
    %c0_134 = arith.constant 0 : index
    %335 = vector.load %arg13[%c1_132, %c0_133, %c0_134] : memref<2x1x256xf32, #tpu.memory_space<vmem>>, vector<1x1x256xf32>
    %336 = vector.shape_cast %335 : vector<1x1x256xf32> to vector<1x256xf32>
    %337 = vector.broadcast %336 : vector<1x256xf32> to vector<16x256xf32>
    %338 = arith.addf %334, %337 : vector<16x256xf32>
    %cst_135 = arith.constant 5.000000e-01 : f32
    %339 = vector.broadcast %cst_135 : f32 to vector<16x256xf32>
    %340 = arith.mulf %339, %338 : vector<16x256xf32>
    %cst_136 = arith.constant 0.707106769 : f32
    %341 = vector.broadcast %cst_136 : f32 to vector<16x256xf32>
    %342 = arith.mulf %338, %341 : vector<16x256xf32>
    %343 = math.erf %342 : vector<16x256xf32>
    %cst_137 = arith.constant 1.000000e+00 : f32
    %344 = vector.broadcast %cst_137 : f32 to vector<16x256xf32>
    %345 = arith.addf %344, %343 : vector<16x256xf32>
    %346 = arith.mulf %340, %345 : vector<16x256xf32>
    %347 = arith.truncf %346 : vector<16x256xf32> to vector<16x256xbf16>
    %c1_138 = arith.constant 1 : index
    %c0_139 = arith.constant 0 : index
    %c0_140 = arith.constant 0 : index
    %348 = vector.load %arg14[%c1_138, %c0_139, %c0_140] : memref<2x256x128xbf16, #tpu.memory_space<vmem>>, vector<1x256x128xbf16>
    %349 = vector.shape_cast %348 : vector<1x256x128xbf16> to vector<256x128xbf16>
    %cst_141 = arith.constant dense<0.000000e+00> : vector<16x128xf32>
    %350 = tpu.matmul %347, %349, %cst_141 {dimension_numbers = #tpu.dot_dimension_numbers<[1], [0], [0], [1], [0, 0, 1, 1], [], []>} : vector<16x256xbf16>, vector<256x128xbf16>, vector<16x128xf32> -> vector<16x128xf32>
    %c1_142 = arith.constant 1 : index
    %c0_143 = arith.constant 0 : index
    %c0_144 = arith.constant 0 : index
    %351 = vector.load %arg15[%c1_142, %c0_143, %c0_144] : memref<2x1x128xf32, #tpu.memory_space<vmem>>, vector<1x1x128xf32>
    %352 = vector.shape_cast %351 : vector<1x1x128xf32> to vector<1x128xf32>
    %353 = vector.broadcast %352 : vector<1x128xf32> to vector<16x128xf32>
    %354 = arith.addf %350, %353 : vector<16x128xf32>
    %355 = arith.addf %330, %354 : vector<16x128xf32>
    %c1_145 = arith.constant 1 : index
    %c0_146 = arith.constant 0 : index
    %c0_147 = arith.constant 0 : index
    %356 = vector.load %arg16[%c1_145, %c0_146, %c0_147] : memref<2x1x128xf32, #tpu.memory_space<vmem>>, vector<1x1x128xf32>
    %357 = vector.shape_cast %356 : vector<1x1x128xf32> to vector<1x128xf32>
    %c1_148 = arith.constant 1 : index
    %c0_149 = arith.constant 0 : index
    %c0_150 = arith.constant 0 : index
    %358 = vector.load %arg17[%c1_148, %c0_149, %c0_150] : memref<2x1x128xf32, #tpu.memory_space<vmem>>, vector<1x1x128xf32>
    %359 = vector.shape_cast %358 : vector<1x1x128xf32> to vector<1x128xf32>
    %cst_151 = arith.constant dense<0.000000e+00> : vector<16xf32>
    %360 = vector.multi_reduction <add>, %355, %cst_151 [1] : vector<16x128xf32> to vector<16xf32>
    %361 = vector.shape_cast %360 : vector<16xf32> to vector<16x1xf32>
    %cst_152 = arith.constant 1.280000e+02 : f32
    %362 = vector.broadcast %cst_152 : f32 to vector<16x1xf32>
    %363 = arith.divf %361, %362 : vector<16x1xf32>
    %364 = vector.broadcast %363 : vector<16x1xf32> to vector<16x128xf32>
    %365 = arith.subf %355, %364 : vector<16x128xf32>
    %366 = arith.mulf %365, %365 : vector<16x128xf32>
    %cst_153 = arith.constant dense<0.000000e+00> : vector<16xf32>
    %367 = vector.multi_reduction <add>, %366, %cst_153 [1] : vector<16x128xf32> to vector<16xf32>
    %368 = vector.shape_cast %367 : vector<16xf32> to vector<16x1xf32>
    %cst_154 = arith.constant 1.280000e+02 : f32
    %369 = vector.broadcast %cst_154 : f32 to vector<16x1xf32>
    %370 = arith.divf %368, %369 : vector<16x1xf32>
    %cst_155 = arith.constant 9.99999996E-13 : f32
    %371 = vector.broadcast %cst_155 : f32 to vector<16x1xf32>
    %372 = arith.addf %370, %371 : vector<16x1xf32>
    %373 = math.rsqrt %372 : vector<16x1xf32>
    %374 = vector.broadcast %373 : vector<16x1xf32> to vector<16x128xf32>
    %375 = arith.mulf %365, %374 : vector<16x128xf32>
    %376 = vector.broadcast %357 : vector<1x128xf32> to vector<16x128xf32>
    %377 = arith.mulf %375, %376 : vector<16x128xf32>
    %378 = vector.broadcast %359 : vector<1x128xf32> to vector<16x128xf32>
    %379 = arith.addf %377, %378 : vector<16x128xf32>
    %380 = arith.truncf %379 : vector<16x128xf32> to vector<16x128xbf16>
    %c0_156 = arith.constant 0 : index
    %c0_157 = arith.constant 0 : index
    %381 = vector.load %arg18[%c0_156, %c0_157] : memref<128x128xbf16, #tpu.memory_space<vmem>>, vector<128x128xbf16>
    %cst_158 = arith.constant dense<0.000000e+00> : vector<16x128xf32>
    %382 = tpu.matmul %380, %381, %cst_158 {dimension_numbers = #tpu.dot_dimension_numbers<[1], [0], [0], [1], [0, 0, 1, 1], [], []>} : vector<16x128xbf16>, vector<128x128xbf16>, vector<16x128xf32> -> vector<16x128xf32>
    %c0_159 = arith.constant 0 : index
    %c0_160 = arith.constant 0 : index
    %383 = vector.load %arg19[%c0_159, %c0_160] : memref<1x128xf32, #tpu.memory_space<vmem>>, vector<1x128xf32>
    %384 = vector.broadcast %383 : vector<1x128xf32> to vector<16x128xf32>
    %385 = arith.addf %382, %384 : vector<16x128xf32>
    %c0_161 = arith.constant 0 : index
    %c0_162 = arith.constant 0 : index
    %386 = vector.load %arg20[%c0_161, %c0_162] : memref<16x128xf32, #tpu.memory_space<vmem>>, vector<16x128xf32>
    tpu.vector_store %arg20[%c0_161, %c0_162], %385 {strides = array<i32>} : memref<16x128xf32, #tpu.memory_space<vmem>>, vector<16x128xf32>,
    %cst_163 = arith.constant dense<0xFF800000> : vector<16xf32>
    %387 = vector.multi_reduction <maximumf>, %385, %cst_163 [1] : vector<16x128xf32> to vector<16xf32>
    %388 = vector.shape_cast %387 : vector<16xf32> to vector<16x1xf32>
    %389 = vector.broadcast %388 : vector<16x1xf32> to vector<16x128xf32>
    %390 = arith.subf %385, %389 : vector<16x128xf32>
    %391 = math.exp %390 : vector<16x128xf32>
    %cst_164 = arith.constant dense<0.000000e+00> : vector<16xf32>
    %392 = vector.multi_reduction <add>, %391, %cst_164 [1] : vector<16x128xf32> to vector<16xf32>
    %393 = vector.shape_cast %392 : vector<16xf32> to vector<16x1xf32>
    %394 = math.log %393 : vector<16x1xf32>
    %395 = arith.addf %394, %388 : vector<16x1xf32>
    %396 = vector.broadcast %395 : vector<16x1xf32> to vector<16x128xf32>
    %397 = arith.subf %385, %396 : vector<16x128xf32>
    %398 = tpu.iota {dimensions = array<i32: 1>} : vector<16x128xi32>
    %c0_165 = arith.constant 0 : index
    %c0_166 = arith.constant 0 : index
    %399 = vector.load %arg3[%c0_165, %c0_166] : memref<16x1xi32, #tpu.memory_space<vmem>>, vector<16x1xi32>
    %400 = vector.broadcast %399 : vector<16x1xi32> to vector<16x128xi32>
    %401 = arith.cmpi eq, %400, %398 : vector<16x128xi32>
    %402 = arith.extui %401 : vector<16x128xi1> to vector<16x128xi32>
    %403 = arith.sitofp %402 : vector<16x128xi32> to vector<16x128xf32>
    %404 = arith.mulf %403, %397 : vector<16x128xf32>
    %cst_167 = arith.constant dense<0.000000e+00> : vector<16xf32>
    %405 = vector.multi_reduction <add>, %404, %cst_167 [1] : vector<16x128xf32> to vector<16xf32>
    %406 = vector.shape_cast %405 : vector<16xf32> to vector<16x1xf32>
    %407 = vector.shape_cast %406 : vector<16x1xf32> to vector<1x16x1xf32>
    %cst_168 = arith.constant dense<0.000000e+00> : vector<1xf32>
    %408 = vector.multi_reduction <add>, %407, %cst_168 [1, 2] : vector<1x16x1xf32> to vector<1xf32>
    %409 = vector.shape_cast %408 : vector<1xf32> to vector<1x1x1xf32>
    %410 = vector.extract %409[0, 0, 0] : f32 from vector<1x1x1xf32>
    %cst_169 = arith.constant 0.000000e+00 : f32
    %411 = arith.subf %cst_169, %410 : f32
    %c0_170 = arith.constant 0 : index
    %c0_171 = arith.constant 0 : index
    %412 = memref.load %arg21[%c0_170, %c0_171] : memref<1x1xf32, #tpu.memory_space<smem>>
    memref.store %411, %arg21[%c0_170, %c0_171] : memref<1x1xf32, #tpu.memory_space<smem>>
    return
  }
  func.func @transform_0(%arg0: i32) -> (i32, i32) {
    %c0_i32 = arith.constant 0 : i32
    %c0_i32_0 = arith.constant 0 : i32
    %c0_i32_1 = arith.constant 0 : i32
    return %c0_i32, %c0_i32_0 : i32, i32
  }
  func.func @transform_1(%arg0: i32) -> (i32, i32) {
    %c0_i32 = arith.constant 0 : i32
    %c0_i32_0 = arith.constant 0 : i32
    %c0_i32_1 = arith.constant 0 : i32
    return %c0_i32, %c0_i32_0 : i32, i32
  }
  func.func @transform_2(%arg0: i32) -> (i32, i32) {
    %c0_i32 = arith.constant 0 : i32
    %c0_i32_0 = arith.constant 0 : i32
    %c0_i32_1 = arith.constant 0 : i32
    return %c0_i32, %c0_i32_0 : i32, i32
  }
  func.func @transform_3(%arg0: i32) -> (i32, i32) {
    %c0_i32 = arith.constant 0 : i32
    %c0_i32_0 = arith.constant 0 : i32
    %c0_i32_1 = arith.constant 0 : i32
    return %c0_i32, %c0_i32_0 : i32, i32
  }
  func.func @transform_4(%arg0: i32) -> (i32, i32) {
    %c0_i32 = arith.constant 0 : i32
    %c0_i32_0 = arith.constant 0 : i32
    %c0_i32_1 = arith.constant 0 : i32
    return %c0_i32, %c0_i32_0 : i32, i32
  }
  func.func @transform_5(%arg0: i32) -> (i32, i32, i32) {
    %c0_i32 = arith.constant 0 : i32
    %c0_i32_0 = arith.constant 0 : i32
    %c0_i32_1 = arith.constant 0 : i32
    %c0_i32_2 = arith.constant 0 : i32
    return %c0_i32, %c0_i32_0, %c0_i32_1 : i32, i32, i32
  }
  func.func @transform_6(%arg0: i32) -> (i32, i32, i32) {
    %c0_i32 = arith.constant 0 : i32
    %c0_i32_0 = arith.constant 0 : i32
    %c0_i32_1 = arith.constant 0 : i32
    %c0_i32_2 = arith.constant 0 : i32
    return %c0_i32, %c0_i32_0, %c0_i32_1 : i32, i32, i32
  }
  func.func @transform_7(%arg0: i32) -> (i32, i32, i32) {
    %c0_i32 = arith.constant 0 : i32
    %c0_i32_0 = arith.constant 0 : i32
    %c0_i32_1 = arith.constant 0 : i32
    %c0_i32_2 = arith.constant 0 : i32
    return %c0_i32, %c0_i32_0, %c0_i32_1 : i32, i32, i32
  }
  func.func @transform_8(%arg0: i32) -> (i32, i32, i32) {
    %c0_i32 = arith.constant 0 : i32
    %c0_i32_0 = arith.constant 0 : i32
    %c0_i32_1 = arith.constant 0 : i32
    %c0_i32_2 = arith.constant 0 : i32
    return %c0_i32, %c0_i32_0, %c0_i32_1 : i32, i32, i32
  }
  func.func @transform_9(%arg0: i32) -> (i32, i32, i32) {
    %c0_i32 = arith.constant 0 : i32
    %c0_i32_0 = arith.constant 0 : i32
    %c0_i32_1 = arith.constant 0 : i32
    %c0_i32_2 = arith.constant 0 : i32
    return %c0_i32, %c0_i32_0, %c0_i32_1 : i32, i32, i32
  }
  func.func @transform_10(%arg0: i32) -> (i32, i32, i32) {
    %c0_i32 = arith.constant 0 : i32
    %c0_i32_0 = arith.constant 0 : i32
    %c0_i32_1 = arith.constant 0 : i32
    %c0_i32_2 = arith.constant 0 : i32
    return %c0_i32, %c0_i32_0, %c0_i32_1 : i32, i32, i32
  }
  func.func @transform_11(%arg0: i32) -> (i32, i32, i32) {
    %c0_i32 = arith.constant 0 : i32
    %c0_i32_0 = arith.constant 0 : i32
    %c0_i32_1 = arith.constant 0 : i32
    %c0_i32_2 = arith.constant 0 : i32
    return %c0_i32, %c0_i32_0, %c0_i32_1 : i32, i32, i32
  }
  func.func @transform_12(%arg0: i32) -> (i32, i32, i32) {
    %c0_i32 = arith.constant 0 : i32
    %c0_i32_0 = arith.constant 0 : i32
    %c0_i32_1 = arith.constant 0 : i32
    %c0_i32_2 = arith.constant 0 : i32
    return %c0_i32, %c0_i32_0, %c0_i32_1 : i32, i32, i32
  }
  func.func @transform_13(%arg0: i32) -> (i32, i32, i32) {
    %c0_i32 = arith.constant 0 : i32
    %c0_i32_0 = arith.constant 0 : i32
    %c0_i32_1 = arith.constant 0 : i32
    %c0_i32_2 = arith.constant 0 : i32
    return %c0_i32, %c0_i32_0, %c0_i32_1 : i32, i32, i32
  }
  func.func @transform_14(%arg0: i32) -> (i32, i32, i32) {
    %c0_i32 = arith.constant 0 : i32
    %c0_i32_0 = arith.constant 0 : i32
    %c0_i32_1 = arith.constant 0 : i32
    %c0_i32_2 = arith.constant 0 : i32
    return %c0_i32, %c0_i32_0, %c0_i32_1 : i32, i32, i32
  }
  func.func @transform_15(%arg0: i32) -> (i32, i32, i32) {
    %c0_i32 = arith.constant 0 : i32
    %c0_i32_0 = arith.constant 0 : i32
    %c0_i32_1 = arith.constant 0 : i32
    %c0_i32_2 = arith.constant 0 : i32
    return %c0_i32, %c0_i32_0, %c0_i32_1 : i32, i32, i32
  }
  func.func @transform_16(%arg0: i32) -> (i32, i32, i32) {
    %c0_i32 = arith.constant 0 : i32
    %c0_i32_0 = arith.constant 0 : i32
    %c0_i32_1 = arith.constant 0 : i32
    %c0_i32_2 = arith.constant 0 : i32
    return %c0_i32, %c0_i32_0, %c0_i32_1 : i32, i32, i32
  }
  func.func @transform_17(%arg0: i32) -> (i32, i32) {
    %c0_i32 = arith.constant 0 : i32
    %c0_i32_0 = arith.constant 0 : i32
    %c0_i32_1 = arith.constant 0 : i32
    return %c0_i32, %c0_i32_0 : i32, i32
  }
  func.func @transform_18(%arg0: i32) -> (i32, i32) {
    %c0_i32 = arith.constant 0 : i32
    %c0_i32_0 = arith.constant 0 : i32
    %c0_i32_1 = arith.constant 0 : i32
    return %c0_i32, %c0_i32_0 : i32, i32
  }
  func.func @transform_19(%arg0: i32) -> (i32, i32) {
    %c0_i32 = arith.constant 0 : i32
    %c0_i32_0 = arith.constant 0 : i32
    %c0_i32_1 = arith.constant 0 : i32
    return %c0_i32, %c0_i32_0 : i32, i32
  }
  func.func @transform_20(%arg0: i32) -> (i32, i32) {
    %c0_i32 = arith.constant 0 : i32
    %c0_i32_0 = arith.constant 0 : i32
    %c0_i32_1 = arith.constant 0 : i32
    return %c0_i32, %c0_i32_0 : i32, i32
  }
}

</mosaic_0001>

<llo_original>
// kernel: bert_forward.1
$region0: #{bert_forward.1}
  #allocation0 [shape = 'u32[]', space=smem, size = 0x4, offset = 0x4, fixed_abs, tag = 'smem constant byte address 0x4 - core index']
  #allocation1 [shape = 'u32[144,128]{1,0:T(1,128)}', space=vmem, size = 0x12000, scoped, tag = 'internal scratch']
  %s0 = inlined_call_operand.vmem [shape: f32[16,128], index: 0, kind: input, shape index: {}]
  %s1 = inlined_call_operand.vmem [shape: f32[16,16], index: 1, kind: input, shape index: {}]
  %s2 = inlined_call_operand.vmem [shape: s32[16,1], index: 2, kind: input, shape index: {}]
  %s3 = inlined_call_operand.vmem [shape: f32[1,128], index: 3, kind: input, shape index: {}]
  %s4 = inlined_call_operand.hbm [shape: f32[1,128], index: 4, kind: input, shape index: {}]
  %s5 = inlined_call_operand.hbm [shape: bf16[2,128,384], index: 5, kind: input, shape index: {}]
  %s6 = inlined_call_operand.hbm [shape: f32[2,1,384], index: 6, kind: input, shape index: {}]
  %s7 = inlined_call_operand.hbm [shape: bf16[2,128,128], index: 7, kind: input, shape index: {}]
  %s8 = inlined_call_operand.hbm [shape: f32[2,1,128], index: 8, kind: input, shape index: {}]
  %s9 = inlined_call_operand.vmem [shape: f32[2,1,128], index: 9, kind: input, shape index: {}]
  %s10 = inlined_call_operand.vmem [shape: f32[2,1,128], index: 10, kind: input, shape index: {}]
  %s11 = inlined_call_operand.vmem [shape: bf16[2,128,256], index: 11, kind: input, shape index: {}]
  %s12 = inlined_call_operand.hbm [shape: f32[2,1,256], index: 12, kind: input, shape index: {}]
  %s13 = inlined_call_operand.hbm [shape: bf16[2,256,128], index: 13, kind: input, shape index: {}]
  %s14 = inlined_call_operand.hbm [shape: f32[2,1,128], index: 14, kind: input, shape index: {}]
  %s15 = inlined_call_operand.hbm [shape: f32[2,1,128], index: 15, kind: input, shape index: {}]
  %s16 = inlined_call_operand.hbm [shape: f32[2,1,128], index: 16, kind: input, shape index: {}]
  %s17 = inlined_call_operand.vmem [shape: bf16[128,128], index: 17, kind: input, shape index: {}]
  %s18 = inlined_call_operand.hbm [shape: f32[1,128], index: 18, kind: input, shape index: {}]
  %s19 = inlined_call_operand.vmem [shape: f32[16,128], index: 19, kind: output, shape index: {0}]
  %s20 = inlined_call_operand.hbm [shape: f32[1,1], index: 20, kind: output, shape index: {1}]
  %21 = xla_tuple %s19, %s20
  %s22 = sld [smem:[#allocation0]]
  $region138: #{bert_forward.1} parent=0
    _
  %s24 = ssub.s32 1, %s22
  %s25 = scalar_select 0, %s24, %s22
  $region1: #{bert_forward.1} parent=0
    #allocation2 [shape = 'u8[512]{0}', space=vmem, size = 0x400, scoped, tag = 'input window, operand 4, single buffered']
    #allocation3 [shape = 's32[1]{0}', space=sflag, size = 0x4, scoped, tag = 'scoped memory for bert_forward.1']
    #allocation4 [shape = 's32[1]{0}', space=sflag, size = 0x4, scoped, tag = 'scoped memory for bert_forward.1']
    #allocation5 [shape = 'u8[196608]{0}', space=vmem, size = 0x30000, scoped, tag = 'input window, operand 5, single buffered']
    #allocation6 [shape = 's32[1]{0}', space=sflag, size = 0x4, scoped, tag = 'scoped memory for bert_forward.1']
    #allocation7 [shape = 'u8[3072]{0}', space=vmem, size = 0xc00, scoped, tag = 'input window, operand 6, single buffered']
    #allocation8 [shape = 'u8[65536]{0}', space=vmem, size = 0x10000, scoped, tag = 'input window, operand 7, single buffered']
    #allocation9 [shape = 's32[1]{0}', space=sflag, size = 0x4, scoped, tag = 'scoped memory for bert_forward.1']
    #allocation10 [shape = 'u8[1024]{0}', space=vmem, size = 0x400, scoped, tag = 'input window, operand 8, single buffered']
    #allocation11 [shape = 'u8[2048]{0}', space=vmem, size = 0x800, scoped, tag = 'input window, operand 12, single buffered']
    #allocation12 [shape = 's32[1]{0}', space=sflag, size = 0x4, scoped, tag = 'scoped memory for bert_forward.1']
    #allocation13 [shape = 'u8[131072]{0}', space=vmem, size = 0x20000, scoped, tag = 'input window, operand 13, single buffered']
    #allocation14 [shape = 'u8[1024]{0}', space=vmem, size = 0x400, scoped, tag = 'input window, operand 14, single buffered']
    #allocation15 [shape = 's32[1]{0}', space=sflag, size = 0x4, scoped, tag = 'scoped memory for bert_forward.1']
    #allocation16 [shape = 'u8[1024]{0}', space=vmem, size = 0x400, scoped, tag = 'input window, operand 15, single buffered']
    #allocation17 [shape = 'u8[1024]{0}', space=vmem, size = 0x400, scoped, tag = 'input window, operand 16, single buffered']
    #allocation18 [shape = 's32[1]{0}', space=sflag, size = 0x4, scoped, tag = 'scoped memory for bert_forward.1']
    #allocation19 [shape = 'u8[512]{0}', space=vmem, size = 0x400, scoped, tag = 'input window, operand 18, single buffered']
    #allocation20 [shape = 'u8[512]{0}', space=smem, size = 0x200, scoped, tag = 'output window, operand 1, single buffered']
    %26 = vsyncpa [#allocation3], 0
    %27 = vsyncpa [#allocation6], 0
    %28 = vsyncpa [#allocation9], 0
    %29 = vsyncpa [#allocation12], 0
    %30 = vsyncpa [#allocation15], 0
    %31 = vsyncpa [#allocation18], 0
    %32 = vsyncpa [#allocation4], 0
    // Predicated region
    $region2: #{bert_forward.1} parent=1 // pred_check
      _
    $region3: #{bert_forward.1} parent=1 // pred_check_branch
      %34 = sbr.rel (0) target = $region5
    $region4: #{bert_forward.1} parent=1 // pred_region
      _
    $region5: #{bert_forward.1} parent=1 // pred_fallthru
      _
    // Predicated region
    $region6: #{bert_forward.1} parent=1 // pred_check
      _
    $region7: #{bert_forward.1} parent=1 // pred_check_branch
      %36 = sbr.rel (0) target = $region9
    $region8: #{bert_forward.1} parent=1 // pred_region
      _
    $region9: #{bert_forward.1} parent=1 // pred_fallthru
      _
    // Predicated region
    $region10: #{bert_forward.1} parent=1 // pred_check
      _
    $region11: #{bert_forward.1} parent=1 // pred_check_branch
      %38 = sbr.rel (0) target = $region13
    $region12: #{bert_forward.1} parent=1 // pred_region
      _
    $region13: #{bert_forward.1} parent=1 // pred_fallthru
      _
    // Predicated region
    $region14: #{bert_forward.1} parent=1 // pred_check
      _
    $region15: #{bert_forward.1} parent=1 // pred_check_branch
      %40 = sbr.rel (0) target = $region17
    $region16: #{bert_forward.1} parent=1 // pred_region
      _
    $region17: #{bert_forward.1} parent=1 // pred_fallthru
      _
    // Predicated region
    $region18: #{bert_forward.1} parent=1 // pred_check
      _
    $region19: #{bert_forward.1} parent=1 // pred_check_branch
      %42 = sbr.rel (0) target = $region21
    $region20: #{bert_forward.1} parent=1 // pred_region
      %s44 = ssub.s32 16, 16
      %45 = vsyncadd [#allocation3], %s44
      %s47 = sshll.u32 [#allocation2], 4
      %s48 = int_to_ptr.vmem [resolvable:$true] %s47
      %50 = dma.hbm_to_vmem [thread:$0]  %s4, 16, %s48, [#allocation3]
    $region21: #{bert_forward.1} parent=1 // pred_fallthru
      _
    // Predicated region
    $region22: #{bert_forward.1} parent=1 // pred_check
      _
    $region23: #{bert_forward.1} parent=1 // pred_check_branch
      %52 = sbr.rel (0) target = $region25
    $region24: #{bert_forward.1} parent=1 // pred_region
      %s54 = ssub.s32 6144, 6144
      %55 = vsyncadd [#allocation6], %s54
      %s56 = sshll.u32 [#allocation5], 4
      %s57 = int_to_ptr.vmem [resolvable:$true] %s56
      %62 = dma.hbm_to_vmem [thread:$0]  %s5, 6144, %s57, [#allocation6], 192, 192, 12
    $region25: #{bert_forward.1} parent=1 // pred_fallthru
      _
    // Predicated region
    $region26: #{bert_forward.1} parent=1 // pred_check
      _
    $region27: #{bert_forward.1} parent=1 // pred_check_branch
      %64 = sbr.rel (0) target = $region29
    $region28: #{bert_forward.1} parent=1 // pred_region
      %s66 = ssub.s32 96, 96
      %67 = vsyncadd [#allocation6], %s66
      %s68 = sshll.u32 [#allocation7], 4
      %s69 = int_to_ptr.vmem [resolvable:$true] %s68
      %74 = dma.hbm_to_vmem [thread:$0]  %s6, 96, %s69, [#allocation6], 48, 48, 3
    $region29: #{bert_forward.1} parent=1 // pred_fallthru
      _
    // Predicated region
    $region30: #{bert_forward.1} parent=1 // pred_check
      _
    $region31: #{bert_forward.1} parent=1 // pred_check_branch
      %76 = sbr.rel (0) target = $region33
    $region32: #{bert_forward.1} parent=1 // pred_region
      %s78 = ssub.s32 2048, 2048
      %79 = vsyncadd [#allocation9], %s78
      %s80 = sshll.u32 [#allocation8], 4
      %s81 = int_to_ptr.vmem [resolvable:$true] %s80
      %86 = dma.hbm_to_vmem [thread:$0]  %s7, 2048, %s81, [#allocation9], 64, 64, 4
    $region33: #{bert_forward.1} parent=1 // pred_fallthru
      _
    // Predicated region
    $region34: #{bert_forward.1} parent=1 // pred_check
      _
    $region35: #{bert_forward.1} parent=1 // pred_check_branch
      %88 = sbr.rel (0) target = $region37
    $region36: #{bert_forward.1} parent=1 // pred_region
      %s90 = ssub.s32 32, 32
      %91 = vsyncadd [#allocation9], %s90
      %s92 = sshll.u32 [#allocation10], 4
      %s93 = int_to_ptr.vmem [resolvable:$true] %s92
      %98 = dma.hbm_to_vmem [thread:$0]  %s8, 32, %s93, [#allocation9], 16, 16, 1
    $region37: #{bert_forward.1} parent=1 // pred_fallthru
      _
    // Predicated region
    $region38: #{bert_forward.1} parent=1 // pred_check
      _
    $region39: #{bert_forward.1} parent=1 // pred_check_branch
      %100 = sbr.rel (0) target = $region41
    $region40: #{bert_forward.1} parent=1 // pred_region
      _
    $region41: #{bert_forward.1} parent=1 // pred_fallthru
      _
    // Predicated region
    $region42: #{bert_forward.1} parent=1 // pred_check
      _
    $region43: #{bert_forward.1} parent=1 // pred_check_branch
      %102 = sbr.rel (0) target = $region45
    $region44: #{bert_forward.1} parent=1 // pred_region
      _
    $region45: #{bert_forward.1} parent=1 // pred_fallthru
      _
    // Predicated region
    $region46: #{bert_forward.1} parent=1 // pred_check
      _
    $region47: #{bert_forward.1} parent=1 // pred_check_branch
      %104 = sbr.rel (0) target = $region49
    $region48: #{bert_forward.1} parent=1 // pred_region
      _
    $region49: #{bert_forward.1} parent=1 // pred_fallthru
      _
    // Predicated region
    $region50: #{bert_forward.1} parent=1 // pred_check
      _
    $region51: #{bert_forward.1} parent=1 // pred_check_branch
      %106 = sbr.rel (0) target = $region53
    $region52: #{bert_forward.1} parent=1 // pred_region
      %s108 = ssub.s32 64, 64
      %109 = vsyncadd [#allocation12], %s108
      %s110 = sshll.u32 [#allocation11], 4
      %s111 = int_to_ptr.vmem [resolvable:$true] %s110
      %116 = dma.hbm_to_vmem [thread:$0]  %s12, 64, %s111, [#allocation12], 32, 32, 2
    $region53: #{bert_forward.1} parent=1 // pred_fallthru
      _
    // Predicated region
    $region54: #{bert_forward.1} parent=1 // pred_check
      _
    $region55: #{bert_forward.1} parent=1 // pred_check_branch
      %118 = sbr.rel (0) target = $region57
    $region56: #{bert_forward.1} parent=1 // pred_region
      %s120 = ssub.s32 4096, 4096
      %121 = vsyncadd [#allocation12], %s120
      %s122 = sshll.u32 [#allocation13], 4
      %s123 = int_to_ptr.vmem [resolvable:$true] %s122
      %128 = dma.hbm_to_vmem [thread:$0]  %s13, 4096, %s123, [#allocation12], 64, 64, 4
    $region57: #{bert_forward.1} parent=1 // pred_fallthru
      _
    // Predicated region
    $region58: #{bert_forward.1} parent=1 // pred_check
      _
    $region59: #{bert_forward.1} parent=1 // pred_check_branch
      %130 = sbr.rel (0) target = $region61
    $region60: #{bert_forward.1} parent=1 // pred_region
      %s132 = ssub.s32 32, 32
      %133 = vsyncadd [#allocation15], %s132
      %s134 = sshll.u32 [#allocation14], 4
      %s135 = int_to_ptr.vmem [resolvable:$true] %s134
      %140 = dma.hbm_to_vmem [thread:$0]  %s14, 32, %s135, [#allocation15], 16, 16, 1
    $region61: #{bert_forward.1} parent=1 // pred_fallthru
      _
    // Predicated region
    $region62: #{bert_forward.1} parent=1 // pred_check
      _
    $region63: #{bert_forward.1} parent=1 // pred_check_branch
      %142 = sbr.rel (0) target = $region65
    $region64: #{bert_forward.1} parent=1 // pred_region
      %s144 = ssub.s32 32, 32
      %145 = vsyncadd [#allocation15], %s144
      %s146 = sshll.u32 [#allocation16], 4
      %s147 = int_to_ptr.vmem [resolvable:$true] %s146
      %152 = dma.hbm_to_vmem [thread:$0]  %s15, 32, %s147, [#allocation15], 16, 16, 1
    $region65: #{bert_forward.1} parent=1 // pred_fallthru
      _
    // Predicated region
    $region66: #{bert_forward.1} parent=1 // pred_check
      _
    $region67: #{bert_forward.1} parent=1 // pred_check_branch
      %154 = sbr.rel (0) target = $region69
    $region68: #{bert_forward.1} parent=1 // pred_region
      %s156 = ssub.s32 32, 32
      %157 = vsyncadd [#allocation18], %s156
      %s158 = sshll.u32 [#allocation17], 4
      %s159 = int_to_ptr.vmem [resolvable:$true] %s158
      %164 = dma.hbm_to_vmem [thread:$0]  %s16, 32, %s159, [#allocation18], 16, 16, 1
    $region69: #{bert_forward.1} parent=1 // pred_fallthru
      _
    // Predicated region
    $region70: #{bert_forward.1} parent=1 // pred_check
      _
    $region71: #{bert_forward.1} parent=1 // pred_check_branch
      %166 = sbr.rel (0) target = $region73
    $region72: #{bert_forward.1} parent=1 // pred_region
      _
    $region73: #{bert_forward.1} parent=1 // pred_fallthru
      _
    // Predicated region
    $region74: #{bert_forward.1} parent=1 // pred_check
      _
    $region75: #{bert_forward.1} parent=1 // pred_check_branch
      %168 = sbr.rel (0) target = $region77
    $region76: #{bert_forward.1} parent=1 // pred_region
      %s170 = ssub.s32 16, 16
      %171 = vsyncadd [#allocation18], %s170
      %s173 = sshll.u32 [#allocation19], 4
      %s174 = int_to_ptr.vmem [resolvable:$true] %s173
      %176 = dma.hbm_to_vmem [thread:$0]  %s18, 16, %s174, [#allocation18]
    $region77: #{bert_forward.1} parent=1 // pred_fallthru
      _
    // Predicated region
    $region78: #{bert_forward.1} parent=1 // pred_check
      _
    $region79: #{bert_forward.1} parent=1 // pred_check_branch
      %178 = sbr.rel (0) target = $region81
    $region80: #{bert_forward.1} parent=1 // pred_region
      %179 = dma.done [#allocation3], 16
    $region81: #{bert_forward.1} parent=1 // pred_fallthru
      _
    // Predicated region
    $region82: #{bert_forward.1} parent=1 // pred_check
      _
    $region83: #{bert_forward.1} parent=1 // pred_check_branch
      %181 = sbr.rel (0) target = $region85
    $region84: #{bert_forward.1} parent=1 // pred_region
      %182 = dma.done [#allocation6], 6144
    $region85: #{bert_forward.1} parent=1 // pred_fallthru
      _
    // Predicated region
    $region86: #{bert_forward.1} parent=1 // pred_check
      _
    $region87: #{bert_forward.1} parent=1 // pred_check_branch
      %184 = sbr.rel (0) target = $region89
    $region88: #{bert_forward.1} parent=1 // pred_region
      %185 = dma.done [#allocation6], 96
    $region89: #{bert_forward.1} parent=1 // pred_fallthru
      _
    // Predicated region
    $region90: #{bert_forward.1} parent=1 // pred_check
      _
    $region91: #{bert_forward.1} parent=1 // pred_check_branch
      %187 = sbr.rel (0) target = $region93
    $region92: #{bert_forward.1} parent=1 // pred_region
      %188 = dma.done [#allocation9], 2048
    $region93: #{bert_forward.1} parent=1 // pred_fallthru
      _
    // Predicated region
    $region94: #{bert_forward.1} parent=1 // pred_check
      _
    $region95: #{bert_forward.1} parent=1 // pred_check_branch
      %190 = sbr.rel (0) target = $region97
    $region96: #{bert_forward.1} parent=1 // pred_region
      %191 = dma.done [#allocation9], 32
    $region97: #{bert_forward.1} parent=1 // pred_fallthru
      _
    // Predicated region
    $region98: #{bert_forward.1} parent=1 // pred_check
      _
    $region99: #{bert_forward.1} parent=1 // pred_check_branch
      %193 = sbr.rel (0) target = $region101
    $region100: #{bert_forward.1} parent=1 // pred_region
      %194 = dma.done [#allocation12], 64
    $region101: #{bert_forward.1} parent=1 // pred_fallthru
      _
    // Predicated region
    $region102: #{bert_forward.1} parent=1 // pred_check
      _
    $region103: #{bert_forward.1} parent=1 // pred_check_branch
      %196 = sbr.rel (0) target = $region105
    $region104: #{bert_forward.1} parent=1 // pred_region
      %197 = dma.done [#allocation12], 4096
    $region105: #{bert_forward.1} parent=1 // pred_fallthru
      _
    // Predicated region
    $region106: #{bert_forward.1} parent=1 // pred_check
      _
    $region107: #{bert_forward.1} parent=1 // pred_check_branch
      %199 = sbr.rel (0) target = $region109
    $region108: #{bert_forward.1} parent=1 // pred_region
      %200 = dma.done [#allocation15], 32
    $region109: #{bert_forward.1} parent=1 // pred_fallthru
      _
    // Predicated region
    $region110: #{bert_forward.1} parent=1 // pred_check
      _
    $region111: #{bert_forward.1} parent=1 // pred_check_branch
      %202 = sbr.rel (0) target = $region113
    $region112: #{bert_forward.1} parent=1 // pred_region
      %203 = dma.done [#allocation15], 32
    $region113: #{bert_forward.1} parent=1 // pred_fallthru
      _
    // Predicated region
    $region114: #{bert_forward.1} parent=1 // pred_check
      _
    $region115: #{bert_forward.1} parent=1 // pred_check_branch
      %205 = sbr.rel (0) target = $region117
    $region116: #{bert_forward.1} parent=1 // pred_region
      %206 = dma.done [#allocation18], 32
    $region117: #{bert_forward.1} parent=1 // pred_fallthru
      _
    // Predicated region
    $region118: #{bert_forward.1} parent=1 // pred_check
      _
    $region119: #{bert_forward.1} parent=1 // pred_check_branch
      %208 = sbr.rel (0) target = $region121
    $region120: #{bert_forward.1} parent=1 // pred_region
      %209 = dma.done [#allocation18], 16
    $region121: #{bert_forward.1} parent=1 // pred_fallthru
      _
    %v211 = vld [vmem:[%s0] sm:$0xff]
    %v212 = vld [vmem:[%s0 + $0x8] sm:$0xff]
    %v213 = vld [vmem:[%s3] sm:$0x1]
    %v214 = vld [vmem:[#allocation2] sm:$0x1]
    %215 = vadd.xlane.f32.xlu0 %v211
    %v216 = vpop.xlane.xlu0 %215
    %217 = vadd.xlane.f32.xlu0 %v212
    %v218 = vpop.xlane.xlu0 %217
    %v219 = vrcp.pop 128.0
    %v220 = vmul.f32 %v216, %v219
    %v221 = vmul.f32 %v218, %v219
    %v222 = vsub.f32 %v211, %v220
    %v223 = vsub.f32 %v212, %v221
    %v224 = vmul.f32 %v222, %v222
    %v225 = vmul.f32 %v223, %v223
    %226 = vadd.xlane.f32.xlu0 %v224
    %v227 = vpop.xlane.xlu0 %226
    %228 = vadd.xlane.f32.xlu0 %v225
    %v229 = vpop.xlane.xlu0 %228
    %v230 = vmul.f32 %v227, %v219
    %v231 = vmul.f32 %v229, %v219
    %v232 = vadd.f32 %v230, 1e-12
    %v233 = vadd.f32 %v231, 1e-12
    %v234 = vrsqrt.pop %v232
    %v235 = vrsqrt.pop %v233
    %v236 = vmul.f32 %v222, %v234
    %v237 = vmul.f32 %v223, %v235
    %v239 = vlaneseq
    %v240 = vshrl.u32 %v239, 7
    %v241 = vsub.s32 0, %v240
    %v242 = vrot.slane %v213, %v241
    %v244 = vmul.f32 %v236, %v242
    %v245 = vmul.f32 %v237, %v242
    %v247 = vlaneseq
    %v248 = vshrl.u32 %v247, 7
    %v249 = vsub.s32 0, %v248
    %v250 = vrot.slane %v214, %v249
    %v252 = vadd.f32 %v244, %v250
    %v253 = vadd.f32 %v245, %v250
    %v254 = vld [vmem:[%s1] sm:$0xff]
    %v255 = vld [vmem:[%s1 + $0x8] sm:$0xff]
    %v256 = vpack.c.bf16 %v253, %v252
    %v257 = vld [vmem:[#allocation5] sm:$0xff]
    %v258 = vld [vmem:[#allocation5 + $0x8] sm:$0xf]
    %v259 = vld [vmem:[#allocation5 + $0xc] sm:$0xff]
    %v260 = vld [vmem:[#allocation5 + $0x14] sm:$0xf]
    %v261 = vld [vmem:[#allocation5 + $0x18] sm:$0xff]
    %v262 = vld [vmem:[#allocation5 + $0x20] sm:$0xf]
    %v263 = vld [vmem:[#allocation5 + $0x24] sm:$0xff]
    %v264 = vld [vmem:[#allocation5 + $0x2c] sm:$0xf]
    %v265 = vld [vmem:[#allocation5 + $0x30] sm:$0xff]
    %v266 = vld [vmem:[#allocation5 + $0x38] sm:$0xf]
    %v267 = vld [vmem:[#allocation5 + $0x3c] sm:$0xff]
    %v268 = vld [vmem:[#allocation5 + $0x44] sm:$0xf]
    %v269 = vld [vmem:[#allocation5 + $0x48] sm:$0xff]
    %v270 = vld [vmem:[#allocation5 + $0x50] sm:$0xf]
    %v271 = vld [vmem:[#allocation5 + $0x54] sm:$0xff]
    %v272 = vld [vmem:[#allocation5 + $0x5c] sm:$0xf]
    %v273 = vld [vmem:[#allocation5 + $0x60] sm:$0xff]
    %v274 = vld [vmem:[#allocation5 + $0x68] sm:$0xf]
    %v275 = vld [vmem:[#allocation5 + $0x6c] sm:$0xff]
    %v276 = vld [vmem:[#allocation5 + $0x74] sm:$0xf]
    %v277 = vld [vmem:[#allocation5 + $0x78] sm:$0xff]
    %v278 = vld [vmem:[#allocation5 + $0x80] sm:$0xf]
    %v279 = vld [vmem:[#allocation5 + $0x84] sm:$0xff]
    %v280 = vld [vmem:[#allocation5 + $0x8c] sm:$0xf]
    %v281 = vld [vmem:[#allocation5 + $0x90] sm:$0xff]
    %v282 = vld [vmem:[#allocation5 + $0x98] sm:$0xf]
    %v283 = vld [vmem:[#allocation5 + $0x9c] sm:$0xff]
    %v284 = vld [vmem:[#allocation5 + $0xa4] sm:$0xf]
    %v285 = vld [vmem:[#allocation5 + $0xa8] sm:$0xff]
    %v286 = vld [vmem:[#allocation5 + $0xb0] sm:$0xf]
    %v287 = vld [vmem:[#allocation5 + $0xb4] sm:$0xff]
    %v288 = vld [vmem:[#allocation5 + $0xbc] sm:$0xf]
    %v289 = vld [vmem:[#allocation7] sm:$0x7]
    %v291 = vlaneseq
    %v292 = vshrl.u32 %v291, 7
    %v293 = vsub.s32 0, %v292
    %v294 = vrot.slane %v289, %v293
    %v295 = vlaneseq
    %v296 = vshrl.u32 %v295, 7
    %v297 = vsub.s32 1, %v296
    %v298 = vrot.slane %v289, %v297
    %v299 = vlaneseq
    %v300 = vshrl.u32 %v299, 7
    %v301 = vsub.s32 2, %v300
    %v302 = vrot.slane %v289, %v301
    %v338 = vunpack.c.l.b16 %v257
    %v339 = vunpack.c.h.b16 %v257
    %v340 = vunpack.c.l.b16 %v258
    %v341 = vunpack.c.l.b16 %v259
    %v342 = vunpack.c.h.b16 %v259
    %v343 = vunpack.c.l.b16 %v260
    %v344 = vunpack.c.l.b16 %v261
    %v345 = vunpack.c.h.b16 %v261
    %v346 = vunpack.c.l.b16 %v262
    %v347 = vunpack.c.l.b16 %v263
    %v348 = vunpack.c.h.b16 %v263
    %v349 = vunpack.c.l.b16 %v264
    %v350 = vunpack.c.l.b16 %v265
    %v351 = vunpack.c.h.b16 %v265
    %v352 = vunpack.c.l.b16 %v266
    %v353 = vunpack.c.l.b16 %v267
    %v354 = vunpack.c.h.b16 %v267
    %v355 = vunpack.c.l.b16 %v268
    %v356 = vunpack.c.l.b16 %v269
    %v357 = vunpack.c.h.b16 %v269
    %v358 = vunpack.c.l.b16 %v270
    %v359 = vunpack.c.l.b16 %v271
    %v360 = vunpack.c.h.b16 %v271
    %v361 = vunpack.c.l.b16 %v272
    %v362 = vunpack.c.l.b16 %v273
    %v363 = vunpack.c.h.b16 %v273
    %v364 = vunpack.c.l.b16 %v274
    %v365 = vunpack.c.l.b16 %v275
    %v366 = vunpack.c.h.b16 %v275
    %v367 = vunpack.c.l.b16 %v276
    %v368 = vunpack.c.l.b16 %v277
    %v369 = vunpack.c.h.b16 %v277
    %v370 = vunpack.c.l.b16 %v278
    %v371 = vunpack.c.l.b16 %v279
    %v372 = vunpack.c.h.b16 %v279
    %v373 = vunpack.c.l.b16 %v280
    %v374 = vunpack.c.l.b16 %v281
    %v375 = vunpack.c.h.b16 %v281
    %v376 = vunpack.c.l.b16 %v282
    %v377 = vunpack.c.l.b16 %v283
    %v378 = vunpack.c.h.b16 %v283
    %v379 = vunpack.c.l.b16 %v284
    %v380 = vunpack.c.l.b16 %v285
    %v381 = vunpack.c.h.b16 %v285
    %v382 = vunpack.c.l.b16 %v286
    %v383 = vunpack.c.l.b16 %v287
    %v384 = vunpack.c.h.b16 %v287
    %v385 = vunpack.c.l.b16 %v288
    %v386 = vpack.c.b16 %v341, %v338
    %v387 = vpack.c.b16 %v342, %v339
    %v388 = vpack.c.b16 %v343, %v340
    %v389 = vpack.c.b16 %v347, %v344
    %v390 = vpack.c.b16 %v348, %v345
    %v391 = vpack.c.b16 %v349, %v346
    %v392 = vpack.c.b16 %v353, %v350
    %v393 = vpack.c.b16 %v354, %v351
    %v394 = vpack.c.b16 %v355, %v352
    %v395 = vpack.c.b16 %v359, %v356
    %v396 = vpack.c.b16 %v360, %v357
    %v397 = vpack.c.b16 %v361, %v358
    %v398 = vpack.c.b16 %v365, %v362
    %v399 = vpack.c.b16 %v366, %v363
    %v400 = vpack.c.b16 %v367, %v364
    %v401 = vpack.c.b16 %v371, %v368
    %v402 = vpack.c.b16 %v372, %v369
    %v403 = vpack.c.b16 %v373, %v370
    %v404 = vpack.c.b16 %v377, %v374
    %v405 = vpack.c.b16 %v378, %v375
    %v406 = vpack.c.b16 %v379, %v376
    %v407 = vpack.c.b16 %v383, %v380
    %v408 = vpack.c.b16 %v384, %v381
    %v409 = vpack.c.b16 %v385, %v382
    %434 = vmatprep.subr.bf16.mxu0 %v387
    %435 = vmatpush1.bf16.msra.mxu0 %v386
    %436 = vmatprep.subr.bf16.mxu0 %v390
    %437 = vmatpush1.bf16.msra.mxu0 %v389
    %438 = vmatprep.subr.bf16.mxu0 %v393
    %439 = vmatpush1.bf16.msra.mxu0 %v392
    %440 = vmatprep.subr.bf16.mxu0 %v396
    %441 = vmatpush1.bf16.msra.mxu0 %v395
    %442 = vmatprep.subr.bf16.mxu0 %v399
    %443 = vmatpush1.bf16.msra.mxu0 %v398
    %444 = vmatprep.subr.bf16.mxu0 %v402
    %445 = vmatpush1.bf16.msra.mxu0 %v401
    %446 = vmatprep.subr.bf16.mxu0 %v405
    %447 = vmatpush1.bf16.msra.mxu0 %v404
    %448 = vmatprep.subr.bf16.mxu0 %v408
    %449 = vmatpush1.bf16.msra.mxu0 %v407
    %450 = vmatprep.subr.bf16.mxu0 0
    %451 = vmatpush1.bf16.msra.mxu0 0
    %452 = vmatprep.subr.bf16.mxu0 0
    %453 = vmatpush1.bf16.msra.mxu0 0
    %454 = vmatprep.subr.bf16.mxu0 0
    %455 = vmatpush1.bf16.msra.mxu0 0
    %456 = vmatprep.subr.bf16.mxu0 0
    %457 = vmatpush1.bf16.msra.mxu0 0
    %458 = vmatprep.subr.bf16.mxu0 0
    %459 = vmatpush1.bf16.msra.mxu0 0
    %460 = vmatprep.subr.bf16.mxu0 0
    %461 = vmatpush1.bf16.msra.mxu0 0
    %462 = vmatprep.subr.bf16.mxu0 0
    %463 = vmatpush1.bf16.msra.mxu0 0
    %464 = vmatprep.subr.bf16.mxu0 0
    %465 = vmatpush1.bf16.msra.mxu0 0
    %466 = vmatprep.mubr.bf16.mxu0 0
    %467 = vmatmul.mubr.bf16.gmra.mrb[0].mxu0 %v256
    %v468 = vpop.f32.mrb[0].mxu0
    %v469 = vadd.f32 %v294, %v468
    %v470 = vpop.f32.mrb[0].mxu0
    %v471 = vadd.f32 %v298, %v470
    %v472 = vpop.f32.mrb[0].mxu0
    %v473 = vadd.f32 %v294, %v472
    %v474 = vpop.f32.mrb[0].mxu0
    %v475 = vadd.f32 %v298, %v474
    %476 = vdwg.mxu0
    %477 = vmatprep.subr.bf16.mxu0 0
    %478 = vmatpush1.bf16.msra.mxu0 %v388
    %479 = vmatprep.subr.bf16.mxu0 0
    %480 = vmatpush1.bf16.msra.mxu0 %v391
    %481 = vmatprep.subr.bf16.mxu0 0
    %482 = vmatpush1.bf16.msra.mxu0 %v394
    %483 = vmatprep.subr.bf16.mxu0 0
    %484 = vmatpush1.bf16.msra.mxu0 %v397
    %485 = vmatprep.subr.bf16.mxu0 0
    %486 = vmatpush1.bf16.msra.mxu0 %v400
    %487 = vmatprep.subr.bf16.mxu0 0
    %488 = vmatpush1.bf16.msra.mxu0 %v403
    %489 = vmatprep.subr.bf16.mxu0 0
    %490 = vmatpush1.bf16.msra.mxu0 %v406
    %491 = vmatprep.subr.bf16.mxu0 0
    %492 = vmatpush1.bf16.msra.mxu0 %v409
    %493 = vmatprep.subr.bf16.mxu0 0
    %494 = vmatpush1.bf16.msra.mxu0 0
    %495 = vmatprep.subr.bf16.mxu0 0
    %496 = vmatpush1.bf16.msra.mxu0 0
    %497 = vmatprep.subr.bf16.mxu0 0
    %498 = vmatpush1.bf16.msra.mxu0 0
    %499 = vmatprep.subr.bf16.mxu0 0
    %500 = vmatpush1.bf16.msra.mxu0 0
    %501 = vmatprep.subr.bf16.mxu0 0
    %502 = vmatpush1.bf16.msra.mxu0 0
    %503 = vmatprep.subr.bf16.mxu0 0
    %504 = vmatpush1.bf16.msra.mxu0 0
    %505 = vmatprep.subr.bf16.mxu0 0
    %506 = vmatpush1.bf16.msra.mxu0 0
    %507 = vmatprep.subr.bf16.mxu0 0
    %508 = vmatpush1.bf16.msra.mxu0 0
    %509 = vmatprep.mubr.bf16.mxu0 0
    %510 = vmatmul.mubr.bf16.gmra.mrb[0].mxu0 %v256
    %v511 = vpop.f32.mrb[0].mxu0
    %v512 = vadd.f32 %v302, %v511
    %v513 = vpop.f32.mrb[0].mxu0
    %v514 = vpop.f32.mrb[0].mxu0
    %v515 = vadd.f32 %v302, %v514
    %v516 = vpop.f32.mrb[0].mxu0
    %517 = vdwg.mxu0
    %v518 = vpack.c.bf16 %v473, %v469
    %v519 = vpack.c.bf16 %v475, %v471
    %v520 = vpack.c.bf16 %v515, %v512
    %vm521 = vcmask 261120
    %v523 = vsel %vm521, %v518, 0
    %v526 = vsel %vm521, %v519, 0
    %528 = vmatprep.subr.bf16.mxu0 0
    %529 = vmatpush1.bf16.xpose.msra.mxu0 %v526
    %530 = vmatprep.subr.bf16.mxu0 0
    %531 = vmatpush1.bf16.xpose.msra.mxu0 0
    %532 = vmatprep.subr.bf16.mxu0 0
    %533 = vmatpush1.bf16.xpose.msra.mxu0 0
    %534 = vmatprep.subr.bf16.mxu0 0
    %535 = vmatpush1.bf16.xpose.msra.mxu0 0
    %536 = vmatprep.subr.bf16.mxu0 0
    %537 = vmatpush1.bf16.xpose.msra.mxu0 0
    %538 = vmatprep.subr.bf16.mxu0 0
    %539 = vmatpush1.bf16.xpose.msra.mxu0 0
    %540 = vmatprep.subr.bf16.mxu0 0
    %541 = vmatpush1.bf16.xpose.msra.mxu0 0
    %542 = vmatprep.subr.bf16.mxu0 0
    %543 = vmatpush1.bf16.xpose.msra.mxu0 0
    %544 = vmatprep.subr.bf16.mxu0 0
    %545 = vmatpush1.bf16.xpose.msra.mxu0 0
    %546 = vmatprep.subr.bf16.mxu0 0
    %547 = vmatpush1.bf16.xpose.msra.mxu0 0
    %548 = vmatprep.subr.bf16.mxu0 0
    %549 = vmatpush1.bf16.xpose.msra.mxu0 0
    %550 = vmatprep.subr.bf16.mxu0 0
    %551 = vmatpush1.bf16.xpose.msra.mxu0 0
    %552 = vmatprep.subr.bf16.mxu0 0
    %553 = vmatpush1.bf16.xpose.msra.mxu0 0
    %554 = vmatprep.subr.bf16.mxu0 0
    %555 = vmatpush1.bf16.xpose.msra.mxu0 0
    %556 = vmatprep.subr.bf16.mxu0 0
    %557 = vmatpush1.bf16.xpose.msra.mxu0 0
    %558 = vmatprep.subr.bf16.mxu0 0
    %559 = vmatpush1.bf16.xpose.msra.mxu0 0
    %560 = vmatprep.mubr.bf16.mxu0 0
    %561 = vmatmul.mubr.bf16.gmra.mrb[0].mxu0 %v523
    %v562 = vpop.f32.mrb[0].mxu0
    %v563 = vadd.f32 0.0, %v562
    %v564 = vpop.f32.mrb[0].mxu0
    %v565 = vpop.f32.mrb[0].mxu0
    %v566 = vadd.f32 0.0, %v565
    %v567 = vpop.f32.mrb[0].mxu0
    %568 = vdwg.mxu0
    %v569 = vmul.f32 %v563, 0.17677669
    %v570 = vmul.f32 %v566, 0.17677669
    %v571 = vadd.f32 %v569, %v254
    %v572 = vadd.f32 %v570, %v255
    %vm573 = vcmask 130048
    %v574 = vsel %vm573, %v571, -inf
    %575 = vmax.xlane.f32.xlu0 %v574
    %v576 = vpop.xlane.xlu0 %575
    %v577 = vsel %vm573, %v572, -inf
    %578 = vmax.xlane.f32.xlu0 %v577
    %v579 = vpop.xlane.xlu0 %578
    %v580 = vsub.f32 %v571, %v576
    %v581 = vsub.f32 %v572, %v579
    %v582 = vmul.f32 %v580, 1.442695
    %v583 = vpow.pop %v582
    %v584 = vmul.f32 %v581, 1.442695
    %v585 = vpow.pop %v584
    %v586 = vsel %vm573, %v583, 0.0
    %587 = vadd.xlane.f32.xlu0 %v586
    %v588 = vpop.xlane.xlu0 %587
    %v589 = vsel %vm573, %v585, 0.0
    %590 = vadd.xlane.f32.xlu0 %v589
    %v591 = vpop.xlane.xlu0 %590
    %v592 = vpack.c.bf16 %v585, %v583
    %v594 = vsel %vm573, %v592, 0
    %596 = vmatprep.subr.bf16.mxu0 0
    %597 = vmatpush1.bf16.msra.mxu0 %v520
    %598 = vmatprep.subr.bf16.mxu0 0
    %599 = vmatpush1.bf16.msra.mxu0 0
    %600 = vmatprep.subr.bf16.mxu0 0
    %601 = vmatpush1.bf16.msra.mxu0 0
    %602 = vmatprep.subr.bf16.mxu0 0
    %603 = vmatpush1.bf16.msra.mxu0 0
    %604 = vmatprep.subr.bf16.mxu0 0
    %605 = vmatpush1.bf16.msra.mxu0 0
    %606 = vmatprep.subr.bf16.mxu0 0
    %607 = vmatpush1.bf16.msra.mxu0 0
    %608 = vmatprep.subr.bf16.mxu0 0
    %609 = vmatpush1.bf16.msra.mxu0 0
    %610 = vmatprep.subr.bf16.mxu0 0
    %611 = vmatpush1.bf16.msra.mxu0 0
    %612 = vmatprep.subr.bf16.mxu0 0
    %613 = vmatpush1.bf16.msra.mxu0 0
    %614 = vmatprep.subr.bf16.mxu0 0
    %615 = vmatpush1.bf16.msra.mxu0 0
    %616 = vmatprep.subr.bf16.mxu0 0
    %617 = vmatpush1.bf16.msra.mxu0 0
    %618 = vmatprep.subr.bf16.mxu0 0
    %619 = vmatpush1.bf16.msra.mxu0 0
    %620 = vmatprep.subr.bf16.mxu0 0
    %621 = vmatpush1.bf16.msra.mxu0 0
    %622 = vmatprep.subr.bf16.mxu0 0
    %623 = vmatpush1.bf16.msra.mxu0 0
    %624 = vmatprep.subr.bf16.mxu0 0
    %625 = vmatpush1.bf16.msra.mxu0 0
    %626 = vmatprep.subr.bf16.mxu0 0
    %627 = vmatpush1.bf16.msra.mxu0 0
    %628 = vmatprep.mubr.bf16.mxu0 0
    %629 = vmatmul.mubr.bf16.gmra.mrb[0].mxu0 %v594
    %v630 = vpop.f32.mrb[0].mxu0
    %v631 = vadd.f32 0.0, %v630
    %v632 = vpop.f32.mrb[0].mxu0
    %v633 = vpop.f32.mrb[0].mxu0
    %v634 = vadd.f32 0.0, %v633
    %v635 = vpop.f32.mrb[0].mxu0
    %636 = vdwg.mxu0
    %v637 = vrcp.pop %v588
    %v638 = vmul.f32 %v631, %v637
    %v639 = vrcp.pop %v591
    %v640 = vmul.f32 %v634, %v639
    %642 = vrot.lane.b32.xlu0 %v518, 96
    %v643 = vpop.permute.xlu0 %642
    %645 = vrot.lane.b32.xlu0 %v519, 96
    %v646 = vpop.permute.xlu0 %645
    %v648 = vsel %vm521, %v643, 0
    %v651 = vsel %vm521, %v646, 0
    %653 = vmatprep.subr.bf16.mxu0 0
    %654 = vmatpush1.bf16.xpose.msra.mxu0 %v651
    %655 = vmatprep.subr.bf16.mxu0 0
    %656 = vmatpush1.bf16.xpose.msra.mxu0 0
    %657 = vmatprep.subr.bf16.mxu0 0
    %658 = vmatpush1.bf16.xpose.msra.mxu0 0
    %659 = vmatprep.subr.bf16.mxu0 0
    %660 = vmatpush1.bf16.xpose.msra.mxu0 0
    %661 = vmatprep.subr.bf16.mxu0 0
    %662 = vmatpush1.bf16.xpose.msra.mxu0 0
    %663 = vmatprep.subr.bf16.mxu0 0
    %664 = vmatpush1.bf16.xpose.msra.mxu0 0
    %665 = vmatprep.subr.bf16.mxu0 0
    %666 = vmatpush1.bf16.xpose.msra.mxu0 0
    %667 = vmatprep.subr.bf16.mxu0 0
    %668 = vmatpush1.bf16.xpose.msra.mxu0 0
    %669 = vmatprep.subr.bf16.mxu0 0
    %670 = vmatpush1.bf16.xpose.msra.mxu0 0
    %671 = vmatprep.subr.bf16.mxu0 0
    %672 = vmatpush1.bf16.xpose.msra.mxu0 0
    %673 = vmatprep.subr.bf16.mxu0 0
    %674 = vmatpush1.bf16.xpose.msra.mxu0 0
    %675 = vmatprep.subr.bf16.mxu0 0
    %676 = vmatpush1.bf16.xpose.msra.mxu0 0
    %677 = vmatprep.subr.bf16.mxu0 0
    %678 = vmatpush1.bf16.xpose.msra.mxu0 0
    %679 = vmatprep.subr.bf16.mxu0 0
    %680 = vmatpush1.bf16.xpose.msra.mxu0 0
    %681 = vmatprep.subr.bf16.mxu0 0
    %682 = vmatpush1.bf16.xpose.msra.mxu0 0
    %683 = vmatprep.subr.bf16.mxu0 0
    %684 = vmatpush1.bf16.xpose.msra.mxu0 0
    %685 = vmatprep.mubr.bf16.mxu0 0
    %686 = vmatmul.mubr.bf16.gmra.mrb[0].mxu0 %v648
    %v687 = vpop.f32.mrb[0].mxu0
    %v688 = vadd.f32 0.0, %v687
    %v689 = vpop.f32.mrb[0].mxu0
    %v690 = vpop.f32.mrb[0].mxu0
    %v691 = vadd.f32 0.0, %v690
    %v692 = vpop.f32.mrb[0].mxu0
    %693 = vdwg.mxu0
    %v694 = vmul.f32 %v688, 0.17677669
    %v695 = vmul.f32 %v691, 0.17677669
    %v696 = vadd.f32 %v694, %v254
    %v697 = vadd.f32 %v695, %v255
    %v698 = vsel %vm573, %v696, -inf
    %699 = vmax.xlane.f32.xlu0 %v698
    %v700 = vpop.xlane.xlu0 %699
    %v701 = vsel %vm573, %v697, -inf
    %702 = vmax.xlane.f32.xlu0 %v701
    %v703 = vpop.xlane.xlu0 %702
    %v704 = vsub.f32 %v696, %v700
    %v705 = vsub.f32 %v697, %v703
    %v706 = vmul.f32 %v704, 1.442695
    %v707 = vpow.pop %v706
    %v708 = vmul.f32 %v705, 1.442695
    %v709 = vpow.pop %v708
    %v710 = vsel %vm573, %v707, 0.0
    %711 = vadd.xlane.f32.xlu0 %v710
    %v712 = vpop.xlane.xlu0 %711
    %v713 = vsel %vm573, %v709, 0.0
    %714 = vadd.xlane.f32.xlu0 %v713
    %v715 = vpop.xlane.xlu0 %714
    %v716 = vpack.c.bf16 %v709, %v707
    %718 = vrot.lane.b32.xlu0 %v520, 96
    %v719 = vpop.permute.xlu0 %718
    %v722 = vsel %vm573, %v716, 0
    %724 = vmatprep.subr.bf16.mxu0 0
    %725 = vmatpush1.bf16.msra.mxu0 %v719
    %726 = vmatprep.subr.bf16.mxu0 0
    %727 = vmatpush1.bf16.msra.mxu0 0
    %728 = vmatprep.subr.bf16.mxu0 0
    %729 = vmatpush1.bf16.msra.mxu0 0
    %730 = vmatprep.subr.bf16.mxu0 0
    %731 = vmatpush1.bf16.msra.mxu0 0
    %732 = vmatprep.subr.bf16.mxu0 0
    %733 = vmatpush1.bf16.msra.mxu0 0
    %734 = vmatprep.subr.bf16.mxu0 0
    %735 = vmatpush1.bf16.msra.mxu0 0
    %736 = vmatprep.subr.bf16.mxu0 0
    %737 = vmatpush1.bf16.msra.mxu0 0
    %738 = vmatprep.subr.bf16.mxu0 0
    %739 = vmatpush1.bf16.msra.mxu0 0
    %740 = vmatprep.subr.bf16.mxu0 0
    %741 = vmatpush1.bf16.msra.mxu0 0
    %742 = vmatprep.subr.bf16.mxu0 0
    %743 = vmatpush1.bf16.msra.mxu0 0
    %744 = vmatprep.subr.bf16.mxu0 0
    %745 = vmatpush1.bf16.msra.mxu0 0
    %746 = vmatprep.subr.bf16.mxu0 0
    %747 = vmatpush1.bf16.msra.mxu0 0
    %748 = vmatprep.subr.bf16.mxu0 0
    %749 = vmatpush1.bf16.msra.mxu0 0
    %750 = vmatprep.subr.bf16.mxu0 0
    %751 = vmatpush1.bf16.msra.mxu0 0
    %752 = vmatprep.subr.bf16.mxu0 0
    %753 = vmatpush1.bf16.msra.mxu0 0
    %754 = vmatprep.subr.bf16.mxu0 0
    %755 = vmatpush1.bf16.msra.mxu0 0
    %756 = vmatprep.mubr.bf16.mxu0 0
    %757 = vmatmul.mubr.bf16.gmra.mrb[0].mxu0 %v722
    %v758 = vpop.f32.mrb[0].mxu0
    %v759 = vadd.f32 0.0, %v758
    %v760 = vpop.f32.mrb[0].mxu0
    %v761 = vpop.f32.mrb[0].mxu0
    %v762 = vadd.f32 0.0, %v761
    %v763 = vpop.f32.mrb[0].mxu0
    %764 = vdwg.mxu0
    %v765 = vrcp.pop %v712
    %v766 = vmul.f32 %v759, %v765
    %v767 = vrcp.pop %v715
    %v768 = vmul.f32 %v762, %v767
    %769 = vrot.lane.b32.xlu0 %v518, 64
    %v770 = vpop.permute.xlu0 %769
    %771 = vrot.lane.b32.xlu0 %v519, 64
    %v772 = vpop.permute.xlu0 %771
    %v774 = vsel %vm521, %v770, 0
    %v777 = vsel %vm521, %v772, 0
    %779 = vmatprep.subr.bf16.mxu0 0
    %780 = vmatpush1.bf16.xpose.msra.mxu0 %v777
    %781 = vmatprep.subr.bf16.mxu0 0
    %782 = vmatpush1.bf16.xpose.msra.mxu0 0
    %783 = vmatprep.subr.bf16.mxu0 0
    %784 = vmatpush1.bf16.xpose.msra.mxu0 0
    %785 = vmatprep.subr.bf16.mxu0 0
    %786 = vmatpush1.bf16.xpose.msra.mxu0 0
    %787 = vmatprep.subr.bf16.mxu0 0
    %788 = vmatpush1.bf16.xpose.msra.mxu0 0
    %789 = vmatprep.subr.bf16.mxu0 0
    %790 = vmatpush1.bf16.xpose.msra.mxu0 0
    %791 = vmatprep.subr.bf16.mxu0 0
    %792 = vmatpush1.bf16.xpose.msra.mxu0 0
    %793 = vmatprep.subr.bf16.mxu0 0
    %794 = vmatpush1.bf16.xpose.msra.mxu0 0
    %795 = vmatprep.subr.bf16.mxu0 0
    %796 = vmatpush1.bf16.xpose.msra.mxu0 0
    %797 = vmatprep.subr.bf16.mxu0 0
    %798 = vmatpush1.bf16.xpose.msra.mxu0 0
    %799 = vmatprep.subr.bf16.mxu0 0
    %800 = vmatpush1.bf16.xpose.msra.mxu0 0
    %801 = vmatprep.subr.bf16.mxu0 0
    %802 = vmatpush1.bf16.xpose.msra.mxu0 0
    %803 = vmatprep.subr.bf16.mxu0 0
    %804 = vmatpush1.bf16.xpose.msra.mxu0 0
    %805 = vmatprep.subr.bf16.mxu0 0
    %806 = vmatpush1.bf16.xpose.msra.mxu0 0
    %807 = vmatprep.subr.bf16.mxu0 0
    %808 = vmatpush1.bf16.xpose.msra.mxu0 0
    %809 = vmatprep.subr.bf16.mxu0 0
    %810 = vmatpush1.bf16.xpose.msra.mxu0 0
    %811 = vmatprep.mubr.bf16.mxu0 0
    %812 = vmatmul.mubr.bf16.gmra.mrb[0].mxu0 %v774
    %v813 = vpop.f32.mrb[0].mxu0
    %v814 = vadd.f32 0.0, %v813
    %v815 = vpop.f32.mrb[0].mxu0
    %v816 = vpop.f32.mrb[0].mxu0
    %v817 = vadd.f32 0.0, %v816
    %v818 = vpop.f32.mrb[0].mxu0
    %819 = vdwg.mxu0
    %v820 = vmul.f32 %v814, 0.17677669
    %v821 = vmul.f32 %v817, 0.17677669
    %v822 = vadd.f32 %v820, %v254
    %v823 = vadd.f32 %v821, %v255
    %v824 = vsel %vm573, %v822, -inf
    %825 = vmax.xlane.f32.xlu0 %v824
    %v826 = vpop.xlane.xlu0 %825
    %v827 = vsel %vm573, %v823, -inf
    %828 = vmax.xlane.f32.xlu0 %v827
    %v829 = vpop.xlane.xlu0 %828
    %v830 = vsub.f32 %v822, %v826
    %v831 = vsub.f32 %v823, %v829
    %v832 = vmul.f32 %v830, 1.442695
    %v833 = vpow.pop %v832
    %v834 = vmul.f32 %v831, 1.442695
    %v835 = vpow.pop %v834
    %v836 = vsel %vm573, %v833, 0.0
    %837 = vadd.xlane.f32.xlu0 %v836
    %v838 = vpop.xlane.xlu0 %837
    %v839 = vsel %vm573, %v835, 0.0
    %840 = vadd.xlane.f32.xlu0 %v839
    %v841 = vpop.xlane.xlu0 %840
    %v842 = vpack.c.bf16 %v835, %v833
    %843 = vrot.lane.b32.xlu0 %v520, 64
    %v844 = vpop.permute.xlu0 %843
    %v847 = vsel %vm573, %v842, 0
    %849 = vmatprep.subr.bf16.mxu0 0
    %850 = vmatpush1.bf16.msra.mxu0 %v844
    %851 = vmatprep.subr.bf16.mxu0 0
    %852 = vmatpush1.bf16.msra.mxu0 0
    %853 = vmatprep.subr.bf16.mxu0 0
    %854 = vmatpush1.bf16.msra.mxu0 0
    %855 = vmatprep.subr.bf16.mxu0 0
    %856 = vmatpush1.bf16.msra.mxu0 0
    %857 = vmatprep.subr.bf16.mxu0 0
    %858 = vmatpush1.bf16.msra.mxu0 0
    %859 = vmatprep.subr.bf16.mxu0 0
    %860 = vmatpush1.bf16.msra.mxu0 0
    %861 = vmatprep.subr.bf16.mxu0 0
    %862 = vmatpush1.bf16.msra.mxu0 0
    %863 = vmatprep.subr.bf16.mxu0 0
    %864 = vmatpush1.bf16.msra.mxu0 0
    %865 = vmatprep.subr.bf16.mxu0 0
    %866 = vmatpush1.bf16.msra.mxu0 0
    %867 = vmatprep.subr.bf16.mxu0 0
    %868 = vmatpush1.bf16.msra.mxu0 0
    %869 = vmatprep.subr.bf16.mxu0 0
    %870 = vmatpush1.bf16.msra.mxu0 0
    %871 = vmatprep.subr.bf16.mxu0 0
    %872 = vmatpush1.bf16.msra.mxu0 0
    %873 = vmatprep.subr.bf16.mxu0 0
    %874 = vmatpush1.bf16.msra.mxu0 0
    %875 = vmatprep.subr.bf16.mxu0 0
    %876 = vmatpush1.bf16.msra.mxu0 0
    %877 = vmatprep.subr.bf16.mxu0 0
    %878 = vmatpush1.bf16.msra.mxu0 0
    %879 = vmatprep.subr.bf16.mxu0 0
    %880 = vmatpush1.bf16.msra.mxu0 0
    %881 = vmatprep.mubr.bf16.mxu0 0
    %882 = vmatmul.mubr.bf16.gmra.mrb[0].mxu0 %v847
    %v883 = vpop.f32.mrb[0].mxu0
    %v884 = vadd.f32 0.0, %v883
    %v885 = vpop.f32.mrb[0].mxu0
    %v886 = vpop.f32.mrb[0].mxu0
    %v887 = vadd.f32 0.0, %v886
    %v888 = vpop.f32.mrb[0].mxu0
    %889 = vdwg.mxu0
    %v890 = vrcp.pop %v838
    %v891 = vmul.f32 %v884, %v890
    %v892 = vrcp.pop %v841
    %v893 = vmul.f32 %v887, %v892
    %894 = vrot.lane.b32.xlu0 %v518, 32
    %v895 = vpop.permute.xlu0 %894
    %896 = vrot.lane.b32.xlu0 %v519, 32
    %v897 = vpop.permute.xlu0 %896
    %v899 = vsel %vm521, %v895, 0
    %v902 = vsel %vm521, %v897, 0
    %904 = vmatprep.subr.bf16.mxu0 0
    %905 = vmatpush1.bf16.xpose.msra.mxu0 %v902
    %906 = vmatprep.subr.bf16.mxu0 0
    %907 = vmatpush1.bf16.xpose.msra.mxu0 0
    %908 = vmatprep.subr.bf16.mxu0 0
    %909 = vmatpush1.bf16.xpose.msra.mxu0 0
    %910 = vmatprep.subr.bf16.mxu0 0
    %911 = vmatpush1.bf16.xpose.msra.mxu0 0
    %912 = vmatprep.subr.bf16.mxu0 0
    %913 = vmatpush1.bf16.xpose.msra.mxu0 0
    %914 = vmatprep.subr.bf16.mxu0 0
    %915 = vmatpush1.bf16.xpose.msra.mxu0 0
    %916 = vmatprep.subr.bf16.mxu0 0
    %917 = vmatpush1.bf16.xpose.msra.mxu0 0
    %918 = vmatprep.subr.bf16.mxu0 0
    %919 = vmatpush1.bf16.xpose.msra.mxu0 0
    %920 = vmatprep.subr.bf16.mxu0 0
    %921 = vmatpush1.bf16.xpose.msra.mxu0 0
    %922 = vmatprep.subr.bf16.mxu0 0
    %923 = vmatpush1.bf16.xpose.msra.mxu0 0
    %924 = vmatprep.subr.bf16.mxu0 0
    %925 = vmatpush1.bf16.xpose.msra.mxu0 0
    %926 = vmatprep.subr.bf16.mxu0 0
    %927 = vmatpush1.bf16.xpose.msra.mxu0 0
    %928 = vmatprep.subr.bf16.mxu0 0
    %929 = vmatpush1.bf16.xpose.msra.mxu0 0
    %930 = vmatprep.subr.bf16.mxu0 0
    %931 = vmatpush1.bf16.xpose.msra.mxu0 0
    %932 = vmatprep.subr.bf16.mxu0 0
    %933 = vmatpush1.bf16.xpose.msra.mxu0 0
    %934 = vmatprep.subr.bf16.mxu0 0
    %935 = vmatpush1.bf16.xpose.msra.mxu0 0
    %936 = vmatprep.mubr.bf16.mxu0 0
    %937 = vmatmul.mubr.bf16.gmra.mrb[0].mxu0 %v899
    %v938 = vpop.f32.mrb[0].mxu0
    %v939 = vadd.f32 0.0, %v938
    %v940 = vpop.f32.mrb[0].mxu0
    %v941 = vpop.f32.mrb[0].mxu0
    %v942 = vadd.f32 0.0, %v941
    %v943 = vpop.f32.mrb[0].mxu0
    %944 = vdwg.mxu0
    %v945 = vmul.f32 %v939, 0.17677669
    %v946 = vmul.f32 %v942, 0.17677669
    %v947 = vadd.f32 %v945, %v254
    %v948 = vadd.f32 %v946, %v255
    %v949 = vsel %vm573, %v947, -inf
    %950 = vmax.xlane.f32.xlu0 %v949
    %v951 = vpop.xlane.xlu0 %950
    %v952 = vsel %vm573, %v948, -inf
    %953 = vmax.xlane.f32.xlu0 %v952
    %v954 = vpop.xlane.xlu0 %953
    %v955 = vsub.f32 %v947, %v951
    %v956 = vsub.f32 %v948, %v954
    %v957 = vmul.f32 %v955, 1.442695
    %v958 = vpow.pop %v957
    %v959 = vmul.f32 %v956, 1.442695
    %v960 = vpow.pop %v959
    %v961 = vsel %vm573, %v958, 0.0
    %962 = vadd.xlane.f32.xlu0 %v961
    %v963 = vpop.xlane.xlu0 %962
    %v964 = vsel %vm573, %v960, 0.0
    %965 = vadd.xlane.f32.xlu0 %v964
    %v966 = vpop.xlane.xlu0 %965
    %v967 = vpack.c.bf16 %v960, %v958
    %968 = vrot.lane.b32.xlu0 %v520, 32
    %v969 = vpop.permute.xlu0 %968
    %v972 = vsel %vm573, %v967, 0
    %974 = vmatprep.subr.bf16.mxu0 0
    %975 = vmatpush1.bf16.msra.mxu0 %v969
    %976 = vmatprep.subr.bf16.mxu0 0
    %977 = vmatpush1.bf16.msra.mxu0 0
    %978 = vmatprep.subr.bf16.mxu0 0
    %979 = vmatpush1.bf16.msra.mxu0 0
    %980 = vmatprep.subr.bf16.mxu0 0
    %981 = vmatpush1.bf16.msra.mxu0 0
    %982 = vmatprep.subr.bf16.mxu0 0
    %983 = vmatpush1.bf16.msra.mxu0 0
    %984 = vmatprep.subr.bf16.mxu0 0
    %985 = vmatpush1.bf16.msra.mxu0 0
    %986 = vmatprep.subr.bf16.mxu0 0
    %987 = vmatpush1.bf16.msra.mxu0 0
    %988 = vmatprep.subr.bf16.mxu0 0
    %989 = vmatpush1.bf16.msra.mxu0 0
    %990 = vmatprep.subr.bf16.mxu0 0
    %991 = vmatpush1.bf16.msra.mxu0 0
    %992 = vmatprep.subr.bf16.mxu0 0
    %993 = vmatpush1.bf16.msra.mxu0 0
    %994 = vmatprep.subr.bf16.mxu0 0
    %995 = vmatpush1.bf16.msra.mxu0 0
    %996 = vmatprep.subr.bf16.mxu0 0
    %997 = vmatpush1.bf16.msra.mxu0 0
    %998 = vmatprep.subr.bf16.mxu0 0
    %999 = vmatpush1.bf16.msra.mxu0 0
    %1000 = vmatprep.subr.bf16.mxu0 0
    %1001 = vmatpush1.bf16.msra.mxu0 0
    %1002 = vmatprep.subr.bf16.mxu0 0
    %1003 = vmatpush1.bf16.msra.mxu0 0
    %1004 = vmatprep.subr.bf16.mxu0 0
    %1005 = vmatpush1.bf16.msra.mxu0 0
    %1006 = vmatprep.mubr.bf16.mxu0 0
    %1007 = vmatmul.mubr.bf16.gmra.mrb[0].mxu0 %v972
    %v1008 = vpop.f32.mrb[0].mxu0
    %v1009 = vadd.f32 0.0, %v1008
    %v1010 = vpop.f32.mrb[0].mxu0
    %v1011 = vpop.f32.mrb[0].mxu0
    %v1012 = vadd.f32 0.0, %v1011
    %v1013 = vpop.f32.mrb[0].mxu0
    %1014 = vdwg.mxu0
    %v1015 = vrcp.pop %v963
    %v1016 = vmul.f32 %v1009, %v1015
    %v1017 = vrcp.pop %v966
    %v1018 = vmul.f32 %v1012, %v1017
    %1021 = vrot.lane.b32.xlu0 %v766, 32
    %v1022 = vpop.permute.xlu0 %1021
    %1023 = vrot.lane.b32.xlu0 %v768, 32
    %v1024 = vpop.permute.xlu0 %1023
    %1029 = vrot.lane.b32.xlu0 %v891, 64
    %v1030 = vpop.permute.xlu0 %1029
    %1031 = vrot.lane.b32.xlu0 %v893, 64
    %v1032 = vpop.permute.xlu0 %1031
    %1037 = vrot.lane.b32.xlu0 %v1016, 96
    %v1038 = vpop.permute.xlu0 %1037
    %1039 = vrot.lane.b32.xlu0 %v1018, 96
    %v1040 = vpop.permute.xlu0 %1039
    %v1043 = vsel %vm521, %v638, %v1022
    %v1044 = vsel %vm521, %v640, %v1024
    %vm1045 = vcmask 523264
    %v1046 = vsel %vm1045, %v1043, %v1030
    %v1047 = vsel %vm1045, %v1044, %v1032
    %vm1048 = vcmask 785408
    %v1049 = vsel %vm1048, %v1046, %v1038
    %v1050 = vsel %vm1048, %v1047, %v1040
    %v1051 = vpack.c.bf16 %v1050, %v1049
    %v1052 = vld [vmem:[#allocation8] sm:$0xf]
    %v1053 = vld [vmem:[#allocation8 + $0x4] sm:$0xf]
    %v1054 = vld [vmem:[#allocation8 + $0x8] sm:$0xf]
    %v1055 = vld [vmem:[#allocation8 + $0xc] sm:$0xf]
    %v1056 = vld [vmem:[#allocation8 + $0x10] sm:$0xf]
    %v1057 = vld [vmem:[#allocation8 + $0x14] sm:$0xf]
    %v1058 = vld [vmem:[#allocation8 + $0x18] sm:$0xf]
    %v1059 = vld [vmem:[#allocation8 + $0x1c] sm:$0xf]
    %v1060 = vld [vmem:[#allocation8 + $0x20] sm:$0xf]
    %v1061 = vld [vmem:[#allocation8 + $0x24] sm:$0xf]
    %v1062 = vld [vmem:[#allocation8 + $0x28] sm:$0xf]
    %v1063 = vld [vmem:[#allocation8 + $0x2c] sm:$0xf]
    %v1064 = vld [vmem:[#allocation8 + $0x30] sm:$0xf]
    %v1065 = vld [vmem:[#allocation8 + $0x34] sm:$0xf]
    %v1066 = vld [vmem:[#allocation8 + $0x38] sm:$0xf]
    %v1067 = vld [vmem:[#allocation8 + $0x3c] sm:$0xf]
    %v1068 = vld [vmem:[#allocation10] sm:$0x1]
    %v1070 = vlaneseq
    %v1071 = vshrl.u32 %v1070, 7
    %v1072 = vsub.s32 0, %v1071
    %v1073 = vrot.slane %v1068, %v1072
    %v1091 = vunpack.c.l.b16 %v1052
    %v1092 = vunpack.c.l.b16 %v1053
    %v1093 = vunpack.c.l.b16 %v1054
    %v1094 = vunpack.c.l.b16 %v1055
    %v1095 = vunpack.c.l.b16 %v1056
    %v1096 = vunpack.c.l.b16 %v1057
    %v1097 = vunpack.c.l.b16 %v1058
    %v1098 = vunpack.c.l.b16 %v1059
    %v1099 = vunpack.c.l.b16 %v1060
    %v1100 = vunpack.c.l.b16 %v1061
    %v1101 = vunpack.c.l.b16 %v1062
    %v1102 = vunpack.c.l.b16 %v1063
    %v1103 = vunpack.c.l.b16 %v1064
    %v1104 = vunpack.c.l.b16 %v1065
    %v1105 = vunpack.c.l.b16 %v1066
    %v1106 = vunpack.c.l.b16 %v1067
    %v1107 = vpack.c.b16 %v1092, %v1091
    %v1108 = vpack.c.b16 %v1094, %v1093
    %v1109 = vpack.c.b16 %v1096, %v1095
    %v1110 = vpack.c.b16 %v1098, %v1097
    %v1111 = vpack.c.b16 %v1100, %v1099
    %v1112 = vpack.c.b16 %v1102, %v1101
    %v1113 = vpack.c.b16 %v1104, %v1103
    %v1114 = vpack.c.b16 %v1106, %v1105
    %1123 = vmatprep.subr.bf16.mxu0 0
    %1124 = vmatpush1.bf16.msra.mxu0 %v1107
    %1125 = vmatprep.subr.bf16.mxu0 0
    %1126 = vmatpush1.bf16.msra.mxu0 %v1108
    %1127 = vmatprep.subr.bf16.mxu0 0
    %1128 = vmatpush1.bf16.msra.mxu0 %v1109
    %1129 = vmatprep.subr.bf16.mxu0 0
    %1130 = vmatpush1.bf16.msra.mxu0 %v1110
    %1131 = vmatprep.subr.bf16.mxu0 0
    %1132 = vmatpush1.bf16.msra.mxu0 %v1111
    %1133 = vmatprep.subr.bf16.mxu0 0
    %1134 = vmatpush1.bf16.msra.mxu0 %v1112
    %1135 = vmatprep.subr.bf16.mxu0 0
    %1136 = vmatpush1.bf16.msra.mxu0 %v1113
    %1137 = vmatprep.subr.bf16.mxu0 0
    %1138 = vmatpush1.bf16.msra.mxu0 %v1114
    %1139 = vmatprep.subr.bf16.mxu0 0
    %1140 = vmatpush1.bf16.msra.mxu0 0
    %1141 = vmatprep.subr.bf16.mxu0 0
    %1142 = vmatpush1.bf16.msra.mxu0 0
    %1143 = vmatprep.subr.bf16.mxu0 0
    %1144 = vmatpush1.bf16.msra.mxu0 0
    %1145 = vmatprep.subr.bf16.mxu0 0
    %1146 = vmatpush1.bf16.msra.mxu0 0
    %1147 = vmatprep.subr.bf16.mxu0 0
    %1148 = vmatpush1.bf16.msra.mxu0 0
    %1149 = vmatprep.subr.bf16.mxu0 0
    %1150 = vmatpush1.bf16.msra.mxu0 0
    %1151 = vmatprep.subr.bf16.mxu0 0
    %1152 = vmatpush1.bf16.msra.mxu0 0
    %1153 = vmatprep.subr.bf16.mxu0 0
    %1154 = vmatpush1.bf16.msra.mxu0 0
    %1155 = vmatprep.mubr.bf16.mxu0 0
    %1156 = vmatmul.mubr.bf16.gmra.mrb[0].mxu0 %v1051
    %v1157 = vpop.f32.mrb[0].mxu0
    %v1158 = vadd.f32 %v1073, %v1157
    %v1159 = vpop.f32.mrb[0].mxu0
    %v1160 = vpop.f32.mrb[0].mxu0
    %v1161 = vadd.f32 %v1073, %v1160
    %v1162 = vpop.f32.mrb[0].mxu0
    %1163 = vdwg.mxu0
    %v1164 = vadd.f32 %v252, %v1158
    %v1165 = vadd.f32 %v253, %v1161
    %v1166 = vld [vmem:[%s9] sm:$0x1]
    %v1167 = vld [vmem:[%s10] sm:$0x1]
    %1168 = vadd.xlane.f32.xlu0 %v1164
    %v1169 = vpop.xlane.xlu0 %1168
    %1170 = vadd.xlane.f32.xlu0 %v1165
    %v1171 = vpop.xlane.xlu0 %1170
    %v1172 = vmul.f32 %v1169, %v219
    %v1173 = vmul.f32 %v1171, %v219
    %v1174 = vsub.f32 %v1164, %v1172
    %v1175 = vsub.f32 %v1165, %v1173
    %v1176 = vmul.f32 %v1174, %v1174
    %v1177 = vmul.f32 %v1175, %v1175
    %1178 = vadd.xlane.f32.xlu0 %v1176
    %v1179 = vpop.xlane.xlu0 %1178
    %1180 = vadd.xlane.f32.xlu0 %v1177
    %v1181 = vpop.xlane.xlu0 %1180
    %v1182 = vmul.f32 %v1179, %v219
    %v1183 = vmul.f32 %v1181, %v219
    %v1184 = vadd.f32 %v1182, 1e-12
    %v1185 = vadd.f32 %v1183, 1e-12
    %v1186 = vrsqrt.pop %v1184
    %v1187 = vrsqrt.pop %v1185
    %v1188 = vmul.f32 %v1174, %v1186
    %v1189 = vmul.f32 %v1175, %v1187
    %v1191 = vlaneseq
    %v1192 = vshrl.u32 %v1191, 7
    %v1193 = vsub.s32 0, %v1192
    %v1194 = vrot.slane %v1166, %v1193
    %v1196 = vmul.f32 %v1188, %v1194
    %v1197 = vmul.f32 %v1189, %v1194
    %v1199 = vlaneseq
    %v1200 = vshrl.u32 %v1199, 7
    %v1201 = vsub.s32 0, %v1200
    %v1202 = vrot.slane %v1167, %v1201
    %v1204 = vadd.f32 %v1196, %v1202
    %v1205 = vadd.f32 %v1197, %v1202
    %v1206 = vpack.c.bf16 %v1205, %v1204
    %v1207 = vld [vmem:[%s11] sm:$0xff]
    %v1208 = vld [vmem:[%s11 + $0x8] sm:$0xff]
    %v1209 = vld [vmem:[%s11 + $0x10] sm:$0xff]
    %v1210 = vld [vmem:[%s11 + $0x18] sm:$0xff]
    %v1211 = vld [vmem:[%s11 + $0x20] sm:$0xff]
    %v1212 = vld [vmem:[%s11 + $0x28] sm:$0xff]
    %v1213 = vld [vmem:[%s11 + $0x30] sm:$0xff]
    %v1214 = vld [vmem:[%s11 + $0x38] sm:$0xff]
    %v1215 = vld [vmem:[%s11 + $0x40] sm:$0xff]
    %v1216 = vld [vmem:[%s11 + $0x48] sm:$0xff]
    %v1217 = vld [vmem:[%s11 + $0x50] sm:$0xff]
    %v1218 = vld [vmem:[%s11 + $0x58] sm:$0xff]
    %v1219 = vld [vmem:[%s11 + $0x60] sm:$0xff]
    %v1220 = vld [vmem:[%s11 + $0x68] sm:$0xff]
    %v1221 = vld [vmem:[%s11 + $0x70] sm:$0xff]
    %v1222 = vld [vmem:[%s11 + $0x78] sm:$0xff]
    %v1223 = vld [vmem:[#allocation11] sm:$0x3]
    %v1225 = vlaneseq
    %v1226 = vshrl.u32 %v1225, 7
    %v1227 = vsub.s32 0, %v1226
    %v1228 = vrot.slane %v1223, %v1227
    %v1229 = vlaneseq
    %v1230 = vshrl.u32 %v1229, 7
    %v1231 = vsub.s32 1, %v1230
    %v1232 = vrot.slane %v1223, %v1231
    %v1251 = vunpack.c.l.b16 %v1207
    %v1252 = vunpack.c.h.b16 %v1207
    %v1253 = vunpack.c.l.b16 %v1208
    %v1254 = vunpack.c.h.b16 %v1208
    %v1255 = vunpack.c.l.b16 %v1209
    %v1256 = vunpack.c.h.b16 %v1209
    %v1257 = vunpack.c.l.b16 %v1210
    %v1258 = vunpack.c.h.b16 %v1210
    %v1259 = vunpack.c.l.b16 %v1211
    %v1260 = vunpack.c.h.b16 %v1211
    %v1261 = vunpack.c.l.b16 %v1212
    %v1262 = vunpack.c.h.b16 %v1212
    %v1263 = vunpack.c.l.b16 %v1213
    %v1264 = vunpack.c.h.b16 %v1213
    %v1265 = vunpack.c.l.b16 %v1214
    %v1266 = vunpack.c.h.b16 %v1214
    %v1267 = vunpack.c.l.b16 %v1215
    %v1268 = vunpack.c.h.b16 %v1215
    %v1269 = vunpack.c.l.b16 %v1216
    %v1270 = vunpack.c.h.b16 %v1216
    %v1271 = vunpack.c.l.b16 %v1217
    %v1272 = vunpack.c.h.b16 %v1217
    %v1273 = vunpack.c.l.b16 %v1218
    %v1274 = vunpack.c.h.b16 %v1218
    %v1275 = vunpack.c.l.b16 %v1219
    %v1276 = vunpack.c.h.b16 %v1219
    %v1277 = vunpack.c.l.b16 %v1220
    %v1278 = vunpack.c.h.b16 %v1220
    %v1279 = vunpack.c.l.b16 %v1221
    %v1280 = vunpack.c.h.b16 %v1221
    %v1281 = vunpack.c.l.b16 %v1222
    %v1282 = vunpack.c.h.b16 %v1222
    %v1283 = vpack.c.b16 %v1253, %v1251
    %v1284 = vpack.c.b16 %v1254, %v1252
    %v1285 = vpack.c.b16 %v1257, %v1255
    %v1286 = vpack.c.b16 %v1258, %v1256
    %v1287 = vpack.c.b16 %v1261, %v1259
    %v1288 = vpack.c.b16 %v1262, %v1260
    %v1289 = vpack.c.b16 %v1265, %v1263
    %v1290 = vpack.c.b16 %v1266, %v1264
    %v1291 = vpack.c.b16 %v1269, %v1267
    %v1292 = vpack.c.b16 %v1270, %v1268
    %v1293 = vpack.c.b16 %v1273, %v1271
    %v1294 = vpack.c.b16 %v1274, %v1272
    %v1295 = vpack.c.b16 %v1277, %v1275
    %v1296 = vpack.c.b16 %v1278, %v1276
    %v1297 = vpack.c.b16 %v1281, %v1279
    %v1298 = vpack.c.b16 %v1282, %v1280
    %1315 = vmatprep.subr.bf16.mxu0 %v1284
    %1316 = vmatpush1.bf16.msra.mxu0 %v1283
    %1317 = vmatprep.subr.bf16.mxu0 %v1286
    %1318 = vmatpush1.bf16.msra.mxu0 %v1285
    %1319 = vmatprep.subr.bf16.mxu0 %v1288
    %1320 = vmatpush1.bf16.msra.mxu0 %v1287
    %1321 = vmatprep.subr.bf16.mxu0 %v1290
    %1322 = vmatpush1.bf16.msra.mxu0 %v1289
    %1323 = vmatprep.subr.bf16.mxu0 %v1292
    %1324 = vmatpush1.bf16.msra.mxu0 %v1291
    %1325 = vmatprep.subr.bf16.mxu0 %v1294
    %1326 = vmatpush1.bf16.msra.mxu0 %v1293
    %1327 = vmatprep.subr.bf16.mxu0 %v1296
    %1328 = vmatpush1.bf16.msra.mxu0 %v1295
    %1329 = vmatprep.subr.bf16.mxu0 %v1298
    %1330 = vmatpush1.bf16.msra.mxu0 %v1297
    %1331 = vmatprep.subr.bf16.mxu0 0
    %1332 = vmatpush1.bf16.msra.mxu0 0
    %1333 = vmatprep.subr.bf16.mxu0 0
    %1334 = vmatpush1.bf16.msra.mxu0 0
    %1335 = vmatprep.subr.bf16.mxu0 0
    %1336 = vmatpush1.bf16.msra.mxu0 0
    %1337 = vmatprep.subr.bf16.mxu0 0
    %1338 = vmatpush1.bf16.msra.mxu0 0
    %1339 = vmatprep.subr.bf16.mxu0 0
    %1340 = vmatpush1.bf16.msra.mxu0 0
    %1341 = vmatprep.subr.bf16.mxu0 0
    %1342 = vmatpush1.bf16.msra.mxu0 0
    %1343 = vmatprep.subr.bf16.mxu0 0
    %1344 = vmatpush1.bf16.msra.mxu0 0
    %1345 = vmatprep.subr.bf16.mxu0 0
    %1346 = vmatpush1.bf16.msra.mxu0 0
    %1347 = vmatprep.mubr.bf16.mxu0 0
    %1348 = vmatmul.mubr.bf16.gmra.mrb[0].mxu0 %v1206
    %v1349 = vpop.f32.mrb[0].mxu0
    %v1350 = vadd.f32 %v1228, %v1349
    %v1351 = vpop.f32.mrb[0].mxu0
    %v1352 = vadd.f32 %v1232, %v1351
    %v1353 = vpop.f32.mrb[0].mxu0
    %v1354 = vadd.f32 %v1228, %v1353
    %v1355 = vpop.f32.mrb[0].mxu0
    %v1356 = vadd.f32 %v1232, %v1355
    %1357 = vdwg.mxu0
    %v1358 = vmul.f32 %v1350, 0.5
    %v1359 = vmul.f32 %v1352, 0.5
    %v1360 = vmul.f32 %v1354, 0.5
    %v1361 = vmul.f32 %v1356, 0.5
    %v1362 = vmul.f32 %v1350, 0.70710677
    %v1363 = vmul.f32 %v1352, 0.70710677
    %v1364 = vmul.f32 %v1354, 0.70710677
    %v1365 = vmul.f32 %v1356, 0.70710677
    %v1366 = verf.f32.pop %v1362
    %v1367 = verf.f32.pop %v1363
    %v1368 = verf.f32.pop %v1364
    %v1369 = verf.f32.pop %v1365
    %v1370 = vadd.f32 %v1366, 1.0
    %v1371 = vadd.f32 %v1367, 1.0
    %v1372 = vadd.f32 %v1368, 1.0
    %v1373 = vadd.f32 %v1369, 1.0
    %v1374 = vmul.f32 %v1358, %v1370
    %v1375 = vmul.f32 %v1359, %v1371
    %v1376 = vmul.f32 %v1360, %v1372
    %v1377 = vmul.f32 %v1361, %v1373
    %v1378 = vpack.c.bf16 %v1376, %v1374
    %v1379 = vpack.c.bf16 %v1377, %v1375
    %v1380 = vld [vmem:[#allocation13] sm:$0xf]
    %v1381 = vld [vmem:[#allocation13 + $0x4] sm:$0xf]
    %v1382 = vld [vmem:[#allocation13 + $0x8] sm:$0xf]
    %v1383 = vld [vmem:[#allocation13 + $0xc] sm:$0xf]
    %v1384 = vld [vmem:[#allocation13 + $0x10] sm:$0xf]
    %v1385 = vld [vmem:[#allocation13 + $0x14] sm:$0xf]
    %v1386 = vld [vmem:[#allocation13 + $0x18] sm:$0xf]
    %v1387 = vld [vmem:[#allocation13 + $0x1c] sm:$0xf]
    %v1388 = vld [vmem:[#allocation13 + $0x20] sm:$0xf]
    %v1389 = vld [vmem:[#allocation13 + $0x24] sm:$0xf]
    %v1390 = vld [vmem:[#allocation13 + $0x28] sm:$0xf]
    %v1391 = vld [vmem:[#allocation13 + $0x2c] sm:$0xf]
    %v1392 = vld [vmem:[#allocation13 + $0x30] sm:$0xf]
    %v1393 = vld [vmem:[#allocation13 + $0x34] sm:$0xf]
    %v1394 = vld [vmem:[#allocation13 + $0x38] sm:$0xf]
    %v1395 = vld [vmem:[#allocation13 + $0x3c] sm:$0xf]
    %v1396 = vld [vmem:[#allocation13 + $0x40] sm:$0xf]
    %v1397 = vld [vmem:[#allocation13 + $0x44] sm:$0xf]
    %v1398 = vld [vmem:[#allocation13 + $0x48] sm:$0xf]
    %v1399 = vld [vmem:[#allocation13 + $0x4c] sm:$0xf]
    %v1400 = vld [vmem:[#allocation13 + $0x50] sm:$0xf]
    %v1401 = vld [vmem:[#allocation13 + $0x54] sm:$0xf]
    %v1402 = vld [vmem:[#allocation13 + $0x58] sm:$0xf]
    %v1403 = vld [vmem:[#allocation13 + $0x5c] sm:$0xf]
    %v1404 = vld [vmem:[#allocation13 + $0x60] sm:$0xf]
    %v1405 = vld [vmem:[#allocation13 + $0x64] sm:$0xf]
    %v1406 = vld [vmem:[#allocation13 + $0x68] sm:$0xf]
    %v1407 = vld [vmem:[#allocation13 + $0x6c] sm:$0xf]
    %v1408 = vld [vmem:[#allocation13 + $0x70] sm:$0xf]
    %v1409 = vld [vmem:[#allocation13 + $0x74] sm:$0xf]
    %v1410 = vld [vmem:[#allocation13 + $0x78] sm:$0xf]
    %v1411 = vld [vmem:[#allocation13 + $0x7c] sm:$0xf]
    %v1412 = vld [vmem:[#allocation14] sm:$0x1]
    %v1414 = vlaneseq
    %v1415 = vshrl.u32 %v1414, 7
    %v1416 = vsub.s32 0, %v1415
    %v1417 = vrot.slane %v1412, %v1416
    %v1451 = vunpack.c.l.b16 %v1380
    %v1452 = vunpack.c.l.b16 %v1381
    %v1453 = vunpack.c.l.b16 %v1382
    %v1454 = vunpack.c.l.b16 %v1383
    %v1455 = vunpack.c.l.b16 %v1384
    %v1456 = vunpack.c.l.b16 %v1385
    %v1457 = vunpack.c.l.b16 %v1386
    %v1458 = vunpack.c.l.b16 %v1387
    %v1459 = vunpack.c.l.b16 %v1388
    %v1460 = vunpack.c.l.b16 %v1389
    %v1461 = vunpack.c.l.b16 %v1390
    %v1462 = vunpack.c.l.b16 %v1391
    %v1463 = vunpack.c.l.b16 %v1392
    %v1464 = vunpack.c.l.b16 %v1393
    %v1465 = vunpack.c.l.b16 %v1394
    %v1466 = vunpack.c.l.b16 %v1395
    %v1467 = vunpack.c.l.b16 %v1396
    %v1468 = vunpack.c.l.b16 %v1397
    %v1469 = vunpack.c.l.b16 %v1398
    %v1470 = vunpack.c.l.b16 %v1399
    %v1471 = vunpack.c.l.b16 %v1400
    %v1472 = vunpack.c.l.b16 %v1401
    %v1473 = vunpack.c.l.b16 %v1402
    %v1474 = vunpack.c.l.b16 %v1403
    %v1475 = vunpack.c.l.b16 %v1404
    %v1476 = vunpack.c.l.b16 %v1405
    %v1477 = vunpack.c.l.b16 %v1406
    %v1478 = vunpack.c.l.b16 %v1407
    %v1479 = vunpack.c.l.b16 %v1408
    %v1480 = vunpack.c.l.b16 %v1409
    %v1481 = vunpack.c.l.b16 %v1410
    %v1482 = vunpack.c.l.b16 %v1411
    %v1483 = vpack.c.b16 %v1452, %v1451
    %v1484 = vpack.c.b16 %v1454, %v1453
    %v1485 = vpack.c.b16 %v1456, %v1455
    %v1486 = vpack.c.b16 %v1458, %v1457
    %v1487 = vpack.c.b16 %v1460, %v1459
    %v1488 = vpack.c.b16 %v1462, %v1461
    %v1489 = vpack.c.b16 %v1464, %v1463
    %v1490 = vpack.c.b16 %v1466, %v1465
    %v1491 = vpack.c.b16 %v1468, %v1467
    %v1492 = vpack.c.b16 %v1470, %v1469
    %v1493 = vpack.c.b16 %v1472, %v1471
    %v1494 = vpack.c.b16 %v1474, %v1473
    %v1495 = vpack.c.b16 %v1476, %v1475
    %v1496 = vpack.c.b16 %v1478, %v1477
    %v1497 = vpack.c.b16 %v1480, %v1479
    %v1498 = vpack.c.b16 %v1482, %v1481
    %1515 = vmatprep.subr.bf16.mxu0 0
    %1516 = vmatpush1.bf16.msra.mxu0 %v1483
    %1517 = vmatprep.subr.bf16.mxu0 0
    %1518 = vmatpush1.bf16.msra.mxu0 %v1484
    %1519 = vmatprep.subr.bf16.mxu0 0
    %1520 = vmatpush1.bf16.msra.mxu0 %v1485
    %1521 = vmatprep.subr.bf16.mxu0 0
    %1522 = vmatpush1.bf16.msra.mxu0 %v1486
    %1523 = vmatprep.subr.bf16.mxu0 0
    %1524 = vmatpush1.bf16.msra.mxu0 %v1487
    %1525 = vmatprep.subr.bf16.mxu0 0
    %1526 = vmatpush1.bf16.msra.mxu0 %v1488
    %1527 = vmatprep.subr.bf16.mxu0 0
    %1528 = vmatpush1.bf16.msra.mxu0 %v1489
    %1529 = vmatprep.subr.bf16.mxu0 0
    %1530 = vmatpush1.bf16.msra.mxu0 %v1490
    %1531 = vmatprep.subr.bf16.mxu0 0
    %1532 = vmatpush1.bf16.msra.mxu0 %v1491
    %1533 = vmatprep.subr.bf16.mxu0 0
    %1534 = vmatpush1.bf16.msra.mxu0 %v1492
    %1535 = vmatprep.subr.bf16.mxu0 0
    %1536 = vmatpush1.bf16.msra.mxu0 %v1493
    %1537 = vmatprep.subr.bf16.mxu0 0
    %1538 = vmatpush1.bf16.msra.mxu0 %v1494
    %1539 = vmatprep.subr.bf16.mxu0 0
    %1540 = vmatpush1.bf16.msra.mxu0 %v1495
    %1541 = vmatprep.subr.bf16.mxu0 0
    %1542 = vmatpush1.bf16.msra.mxu0 %v1496
    %1543 = vmatprep.subr.bf16.mxu0 0
    %1544 = vmatpush1.bf16.msra.mxu0 %v1497
    %1545 = vmatprep.subr.bf16.mxu0 0
    %1546 = vmatpush1.bf16.msra.mxu0 %v1498
    %1547 = vmatprep.mubr.bf16.mxu0 %v1379
    %1548 = vmatmul.mubr.bf16.gmra.mrb[0].mxu0 %v1378
    %v1549 = vpop.f32.mrb[0].mxu0
    %v1550 = vadd.f32 %v1417, %v1549
    %v1551 = vpop.f32.mrb[0].mxu0
    %v1552 = vpop.f32.mrb[0].mxu0
    %v1553 = vadd.f32 %v1417, %v1552
    %v1554 = vpop.f32.mrb[0].mxu0
    %1555 = vdwg.mxu0
    %v1556 = vadd.f32 %v1204, %v1550
    %v1557 = vadd.f32 %v1205, %v1553
    %v1558 = vld [vmem:[#allocation16] sm:$0x1]
    %v1559 = vld [vmem:[#allocation17] sm:$0x1]
    %1560 = vadd.xlane.f32.xlu0 %v1556
    %v1561 = vpop.xlane.xlu0 %1560
    %1562 = vadd.xlane.f32.xlu0 %v1557
    %v1563 = vpop.xlane.xlu0 %1562
    %v1564 = vmul.f32 %v1561, %v219
    %v1565 = vmul.f32 %v1563, %v219
    %v1566 = vsub.f32 %v1556, %v1564
    %v1567 = vsub.f32 %v1557, %v1565
    %v1568 = vmul.f32 %v1566, %v1566
    %v1569 = vmul.f32 %v1567, %v1567
    %1570 = vadd.xlane.f32.xlu0 %v1568
    %v1571 = vpop.xlane.xlu0 %1570
    %1572 = vadd.xlane.f32.xlu0 %v1569
    %v1573 = vpop.xlane.xlu0 %1572
    %v1574 = vmul.f32 %v1571, %v219
    %v1575 = vmul.f32 %v1573, %v219
    %v1576 = vadd.f32 %v1574, 1e-12
    %v1577 = vadd.f32 %v1575, 1e-12
    %v1578 = vrsqrt.pop %v1576
    %v1579 = vrsqrt.pop %v1577
    %v1580 = vmul.f32 %v1566, %v1578
    %v1581 = vmul.f32 %v1567, %v1579
    %v1583 = vlaneseq
    %v1584 = vshrl.u32 %v1583, 7
    %v1585 = vsub.s32 0, %v1584
    %v1586 = vrot.slane %v1558, %v1585
    %v1588 = vmul.f32 %v1580, %v1586
    %v1589 = vmul.f32 %v1581, %v1586
    %v1591 = vlaneseq
    %v1592 = vshrl.u32 %v1591, 7
    %v1593 = vsub.s32 0, %v1592
    %v1594 = vrot.slane %v1559, %v1593
    %v1596 = vadd.f32 %v1588, %v1594
    %v1597 = vadd.f32 %v1589, %v1594
    %v1598 = vpack.c.bf16 %v1597, %v1596
    %s1599 = scalar_lea.vmem [#allocation5], 192
    %v1600 = vld [vmem:[%s1599] sm:$0xff]
    %v1601 = vld [vmem:[%s1599 + $0x8] sm:$0xf]
    %v1602 = vld [vmem:[%s1599 + $0xc] sm:$0xff]
    %v1603 = vld [vmem:[%s1599 + $0x14] sm:$0xf]
    %v1604 = vld [vmem:[%s1599 + $0x18] sm:$0xff]
    %v1605 = vld [vmem:[%s1599 + $0x20] sm:$0xf]
    %v1606 = vld [vmem:[%s1599 + $0x24] sm:$0xff]
    %v1607 = vld [vmem:[%s1599 + $0x2c] sm:$0xf]
    %v1608 = vld [vmem:[%s1599 + $0x30] sm:$0xff]
    %v1609 = vld [vmem:[%s1599 + $0x38] sm:$0xf]
    %v1610 = vld [vmem:[%s1599 + $0x3c] sm:$0xff]
    %v1611 = vld [vmem:[%s1599 + $0x44] sm:$0xf]
    %v1612 = vld [vmem:[%s1599 + $0x48] sm:$0xff]
    %v1613 = vld [vmem:[%s1599 + $0x50] sm:$0xf]
    %v1614 = vld [vmem:[%s1599 + $0x54] sm:$0xff]
    %v1615 = vld [vmem:[%s1599 + $0x5c] sm:$0xf]
    %v1616 = vld [vmem:[%s1599 + $0x60] sm:$0xff]
    %v1617 = vld [vmem:[%s1599 + $0x68] sm:$0xf]
    %v1618 = vld [vmem:[%s1599 + $0x6c] sm:$0xff]
    %v1619 = vld [vmem:[%s1599 + $0x74] sm:$0xf]
    %v1620 = vld [vmem:[%s1599 + $0x78] sm:$0xff]
    %v1621 = vld [vmem:[%s1599 + $0x80] sm:$0xf]
    %v1622 = vld [vmem:[%s1599 + $0x84] sm:$0xff]
    %v1623 = vld [vmem:[%s1599 + $0x8c] sm:$0xf]
    %v1624 = vld [vmem:[%s1599 + $0x90] sm:$0xff]
    %v1625 = vld [vmem:[%s1599 + $0x98] sm:$0xf]
    %v1626 = vld [vmem:[%s1599 + $0x9c] sm:$0xff]
    %v1627 = vld [vmem:[%s1599 + $0xa4] sm:$0xf]
    %v1628 = vld [vmem:[%s1599 + $0xa8] sm:$0xff]
    %v1629 = vld [vmem:[%s1599 + $0xb0] sm:$0xf]
    %v1630 = vld [vmem:[%s1599 + $0xb4] sm:$0xff]
    %v1631 = vld [vmem:[%s1599 + $0xbc] sm:$0xf]
    %s1632 = scalar_lea.vmem [#allocation7], 3
    %v1633 = vld [vmem:[%s1632] sm:$0x7]
    %v1635 = vlaneseq
    %v1636 = vshrl.u32 %v1635, 7
    %v1637 = vsub.s32 0, %v1636
    %v1638 = vrot.slane %v1633, %v1637
    %v1639 = vlaneseq
    %v1640 = vshrl.u32 %v1639, 7
    %v1641 = vsub.s32 1, %v1640
    %v1642 = vrot.slane %v1633, %v1641
    %v1643 = vlaneseq
    %v1644 = vshrl.u32 %v1643, 7
    %v1645 = vsub.s32 2, %v1644
    %v1646 = vrot.slane %v1633, %v1645
    %v1682 = vunpack.c.l.b16 %v1600
    %v1683 = vunpack.c.h.b16 %v1600
    %v1684 = vunpack.c.l.b16 %v1601
    %v1685 = vunpack.c.l.b16 %v1602
    %v1686 = vunpack.c.h.b16 %v1602
    %v1687 = vunpack.c.l.b16 %v1603
    %v1688 = vunpack.c.l.b16 %v1604
    %v1689 = vunpack.c.h.b16 %v1604
    %v1690 = vunpack.c.l.b16 %v1605
    %v1691 = vunpack.c.l.b16 %v1606
    %v1692 = vunpack.c.h.b16 %v1606
    %v1693 = vunpack.c.l.b16 %v1607
    %v1694 = vunpack.c.l.b16 %v1608
    %v1695 = vunpack.c.h.b16 %v1608
    %v1696 = vunpack.c.l.b16 %v1609
    %v1697 = vunpack.c.l.b16 %v1610
    %v1698 = vunpack.c.h.b16 %v1610
    %v1699 = vunpack.c.l.b16 %v1611
    %v1700 = vunpack.c.l.b16 %v1612
    %v1701 = vunpack.c.h.b16 %v1612
    %v1702 = vunpack.c.l.b16 %v1613
    %v1703 = vunpack.c.l.b16 %v1614
    %v1704 = vunpack.c.h.b16 %v1614
    %v1705 = vunpack.c.l.b16 %v1615
    %v1706 = vunpack.c.l.b16 %v1616
    %v1707 = vunpack.c.h.b16 %v1616
    %v1708 = vunpack.c.l.b16 %v1617
    %v1709 = vunpack.c.l.b16 %v1618
    %v1710 = vunpack.c.h.b16 %v1618
    %v1711 = vunpack.c.l.b16 %v1619
    %v1712 = vunpack.c.l.b16 %v1620
    %v1713 = vunpack.c.h.b16 %v1620
    %v1714 = vunpack.c.l.b16 %v1621
    %v1715 = vunpack.c.l.b16 %v1622
    %v1716 = vunpack.c.h.b16 %v1622
    %v1717 = vunpack.c.l.b16 %v1623
    %v1718 = vunpack.c.l.b16 %v1624
    %v1719 = vunpack.c.h.b16 %v1624
    %v1720 = vunpack.c.l.b16 %v1625
    %v1721 = vunpack.c.l.b16 %v1626
    %v1722 = vunpack.c.h.b16 %v1626
    %v1723 = vunpack.c.l.b16 %v1627
    %v1724 = vunpack.c.l.b16 %v1628
    %v1725 = vunpack.c.h.b16 %v1628
    %v1726 = vunpack.c.l.b16 %v1629
    %v1727 = vunpack.c.l.b16 %v1630
    %v1728 = vunpack.c.h.b16 %v1630
    %v1729 = vunpack.c.l.b16 %v1631
    %v1730 = vpack.c.b16 %v1685, %v1682
    %v1731 = vpack.c.b16 %v1686, %v1683
    %v1732 = vpack.c.b16 %v1687, %v1684
    %v1733 = vpack.c.b16 %v1691, %v1688
    %v1734 = vpack.c.b16 %v1692, %v1689
    %v1735 = vpack.c.b16 %v1693, %v1690
    %v1736 = vpack.c.b16 %v1697, %v1694
    %v1737 = vpack.c.b16 %v1698, %v1695
    %v1738 = vpack.c.b16 %v1699, %v1696
    %v1739 = vpack.c.b16 %v1703, %v1700
    %v1740 = vpack.c.b16 %v1704, %v1701
    %v1741 = vpack.c.b16 %v1705, %v1702
    %v1742 = vpack.c.b16 %v1709, %v1706
    %v1743 = vpack.c.b16 %v1710, %v1707
    %v1744 = vpack.c.b16 %v1711, %v1708
    %v1745 = vpack.c.b16 %v1715, %v1712
    %v1746 = vpack.c.b16 %v1716, %v1713
    %v1747 = vpack.c.b16 %v1717, %v1714
    %v1748 = vpack.c.b16 %v1721, %v1718
    %v1749 = vpack.c.b16 %v1722, %v1719
    %v1750 = vpack.c.b16 %v1723, %v1720
    %v1751 = vpack.c.b16 %v1727, %v1724
    %v1752 = vpack.c.b16 %v1728, %v1725
    %v1753 = vpack.c.b16 %v1729, %v1726
    %1778 = vmatprep.subr.bf16.mxu0 %v1731
    %1779 = vmatpush1.bf16.msra.mxu0 %v1730
    %1780 = vmatprep.subr.bf16.mxu0 %v1734
    %1781 = vmatpush1.bf16.msra.mxu0 %v1733
    %1782 = vmatprep.subr.bf16.mxu0 %v1737
    %1783 = vmatpush1.bf16.msra.mxu0 %v1736
    %1784 = vmatprep.subr.bf16.mxu0 %v1740
    %1785 = vmatpush1.bf16.msra.mxu0 %v1739
    %1786 = vmatprep.subr.bf16.mxu0 %v1743
    %1787 = vmatpush1.bf16.msra.mxu0 %v1742
    %1788 = vmatprep.subr.bf16.mxu0 %v1746
    %1789 = vmatpush1.bf16.msra.mxu0 %v1745
    %1790 = vmatprep.subr.bf16.mxu0 %v1749
    %1791 = vmatpush1.bf16.msra.mxu0 %v1748
    %1792 = vmatprep.subr.bf16.mxu0 %v1752
    %1793 = vmatpush1.bf16.msra.mxu0 %v1751
    %1794 = vmatprep.subr.bf16.mxu0 0
    %1795 = vmatpush1.bf16.msra.mxu0 0
    %1796 = vmatprep.subr.bf16.mxu0 0
    %1797 = vmatpush1.bf16.msra.mxu0 0
    %1798 = vmatprep.subr.bf16.mxu0 0
    %1799 = vmatpush1.bf16.msra.mxu0 0
    %1800 = vmatprep.subr.bf16.mxu0 0
    %1801 = vmatpush1.bf16.msra.mxu0 0
    %1802 = vmatprep.subr.bf16.mxu0 0
    %1803 = vmatpush1.bf16.msra.mxu0 0
    %1804 = vmatprep.subr.bf16.mxu0 0
    %1805 = vmatpush1.bf16.msra.mxu0 0
    %1806 = vmatprep.subr.bf16.mxu0 0
    %1807 = vmatpush1.bf16.msra.mxu0 0
    %1808 = vmatprep.subr.bf16.mxu0 0
    %1809 = vmatpush1.bf16.msra.mxu0 0
    %1810 = vmatprep.mubr.bf16.mxu0 0
    %1811 = vmatmul.mubr.bf16.gmra.mrb[0].mxu0 %v1598
    %v1812 = vpop.f32.mrb[0].mxu0
    %v1813 = vadd.f32 %v1638, %v1812
    %v1814 = vpop.f32.mrb[0].mxu0
    %v1815 = vadd.f32 %v1642, %v1814
    %v1816 = vpop.f32.mrb[0].mxu0
    %v1817 = vadd.f32 %v1638, %v1816
    %v1818 = vpop.f32.mrb[0].mxu0
    %v1819 = vadd.f32 %v1642, %v1818
    %1820 = vdwg.mxu0
    %1821 = vmatprep.subr.bf16.mxu0 0
    %1822 = vmatpush1.bf16.msra.mxu0 %v1732
    %1823 = vmatprep.subr.bf16.mxu0 0
    %1824 = vmatpush1.bf16.msra.mxu0 %v1735
    %1825 = vmatprep.subr.bf16.mxu0 0
    %1826 = vmatpush1.bf16.msra.mxu0 %v1738
    %1827 = vmatprep.subr.bf16.mxu0 0
    %1828 = vmatpush1.bf16.msra.mxu0 %v1741
    %1829 = vmatprep.subr.bf16.mxu0 0
    %1830 = vmatpush1.bf16.msra.mxu0 %v1744
    %1831 = vmatprep.subr.bf16.mxu0 0
    %1832 = vmatpush1.bf16.msra.mxu0 %v1747
    %1833 = vmatprep.subr.bf16.mxu0 0
    %1834 = vmatpush1.bf16.msra.mxu0 %v1750
    %1835 = vmatprep.subr.bf16.mxu0 0
    %1836 = vmatpush1.bf16.msra.mxu0 %v1753
    %1837 = vmatprep.subr.bf16.mxu0 0
    %1838 = vmatpush1.bf16.msra.mxu0 0
    %1839 = vmatprep.subr.bf16.mxu0 0
    %1840 = vmatpush1.bf16.msra.mxu0 0
    %1841 = vmatprep.subr.bf16.mxu0 0
    %1842 = vmatpush1.bf16.msra.mxu0 0
    %1843 = vmatprep.subr.bf16.mxu0 0
    %1844 = vmatpush1.bf16.msra.mxu0 0
    %1845 = vmatprep.subr.bf16.mxu0 0
    %1846 = vmatpush1.bf16.msra.mxu0 0
    %1847 = vmatprep.subr.bf16.mxu0 0
    %1848 = vmatpush1.bf16.msra.mxu0 0
    %1849 = vmatprep.subr.bf16.mxu0 0
    %1850 = vmatpush1.bf16.msra.mxu0 0
    %1851 = vmatprep.subr.bf16.mxu0 0
    %1852 = vmatpush1.bf16.msra.mxu0 0
    %1853 = vmatprep.mubr.bf16.mxu0 0
    %1854 = vmatmul.mubr.bf16.gmra.mrb[0].mxu0 %v1598
    %v1855 = vpop.f32.mrb[0].mxu0
    %v1856 = vadd.f32 %v1646, %v1855
    %v1857 = vpop.f32.mrb[0].mxu0
    %v1858 = vpop.f32.mrb[0].mxu0
    %v1859 = vadd.f32 %v1646, %v1858
    %v1860 = vpop.f32.mrb[0].mxu0
    %1861 = vdwg.mxu0
    %v1862 = vpack.c.bf16 %v1817, %v1813
    %v1863 = vpack.c.bf16 %v1819, %v1815
    %v1864 = vpack.c.bf16 %v1859, %v1856
    %v1866 = vsel %vm521, %v1862, 0
    %v1869 = vsel %vm521, %v1863, 0
    %1871 = vmatprep.subr.bf16.mxu0 0
    %1872 = vmatpush1.bf16.xpose.msra.mxu0 %v1869
    %1873 = vmatprep.subr.bf16.mxu0 0
    %1874 = vmatpush1.bf16.xpose.msra.mxu0 0
    %1875 = vmatprep.subr.bf16.mxu0 0
    %1876 = vmatpush1.bf16.xpose.msra.mxu0 0
    %1877 = vmatprep.subr.bf16.mxu0 0
    %1878 = vmatpush1.bf16.xpose.msra.mxu0 0
    %1879 = vmatprep.subr.bf16.mxu0 0
    %1880 = vmatpush1.bf16.xpose.msra.mxu0 0
    %1881 = vmatprep.subr.bf16.mxu0 0
    %1882 = vmatpush1.bf16.xpose.msra.mxu0 0
    %1883 = vmatprep.subr.bf16.mxu0 0
    %1884 = vmatpush1.bf16.xpose.msra.mxu0 0
    %1885 = vmatprep.subr.bf16.mxu0 0
    %1886 = vmatpush1.bf16.xpose.msra.mxu0 0
    %1887 = vmatprep.subr.bf16.mxu0 0
    %1888 = vmatpush1.bf16.xpose.msra.mxu0 0
    %1889 = vmatprep.subr.bf16.mxu0 0
    %1890 = vmatpush1.bf16.xpose.msra.mxu0 0
    %1891 = vmatprep.subr.bf16.mxu0 0
    %1892 = vmatpush1.bf16.xpose.msra.mxu0 0
    %1893 = vmatprep.subr.bf16.mxu0 0
    %1894 = vmatpush1.bf16.xpose.msra.mxu0 0
    %1895 = vmatprep.subr.bf16.mxu0 0
    %1896 = vmatpush1.bf16.xpose.msra.mxu0 0
    %1897 = vmatprep.subr.bf16.mxu0 0
    %1898 = vmatpush1.bf16.xpose.msra.mxu0 0
    %1899 = vmatprep.subr.bf16.mxu0 0
    %1900 = vmatpush1.bf16.xpose.msra.mxu0 0
    %1901 = vmatprep.subr.bf16.mxu0 0
    %1902 = vmatpush1.bf16.xpose.msra.mxu0 0
    %1903 = vmatprep.mubr.bf16.mxu0 0
    %1904 = vmatmul.mubr.bf16.gmra.mrb[0].mxu0 %v1866
    %v1905 = vpop.f32.mrb[0].mxu0
    %v1906 = vadd.f32 0.0, %v1905
    %v1907 = vpop.f32.mrb[0].mxu0
    %v1908 = vpop.f32.mrb[0].mxu0
    %v1909 = vadd.f32 0.0, %v1908
    %v1910 = vpop.f32.mrb[0].mxu0
    %1911 = vdwg.mxu0
    %v1912 = vmul.f32 %v1906, 0.17677669
    %v1913 = vmul.f32 %v1909, 0.17677669
    %v1914 = vadd.f32 %v1912, %v254
    %v1915 = vadd.f32 %v1913, %v255
    %v1916 = vsel %vm573, %v1914, -inf
    %1917 = vmax.xlane.f32.xlu0 %v1916
    %v1918 = vpop.xlane.xlu0 %1917
    %v1919 = vsel %vm573, %v1915, -inf
    %1920 = vmax.xlane.f32.xlu0 %v1919
    %v1921 = vpop.xlane.xlu0 %1920
    %v1922 = vsub.f32 %v1914, %v1918
    %v1923 = vsub.f32 %v1915, %v1921
    %v1924 = vmul.f32 %v1922, 1.442695
    %v1925 = vpow.pop %v1924
    %v1926 = vmul.f32 %v1923, 1.442695
    %v1927 = vpow.pop %v1926
    %v1928 = vsel %vm573, %v1925, 0.0
    %1929 = vadd.xlane.f32.xlu0 %v1928
    %v1930 = vpop.xlane.xlu0 %1929
    %v1931 = vsel %vm573, %v1927, 0.0
    %1932 = vadd.xlane.f32.xlu0 %v1931
    %v1933 = vpop.xlane.xlu0 %1932
    %v1934 = vpack.c.bf16 %v1927, %v1925
    %v1936 = vsel %vm573, %v1934, 0
    %1938 = vmatprep.subr.bf16.mxu0 0
    %1939 = vmatpush1.bf16.msra.mxu0 %v1864
    %1940 = vmatprep.subr.bf16.mxu0 0
    %1941 = vmatpush1.bf16.msra.mxu0 0
    %1942 = vmatprep.subr.bf16.mxu0 0
    %1943 = vmatpush1.bf16.msra.mxu0 0
    %1944 = vmatprep.subr.bf16.mxu0 0
    %1945 = vmatpush1.bf16.msra.mxu0 0
    %1946 = vmatprep.subr.bf16.mxu0 0
    %1947 = vmatpush1.bf16.msra.mxu0 0
    %1948 = vmatprep.subr.bf16.mxu0 0
    %1949 = vmatpush1.bf16.msra.mxu0 0
    %1950 = vmatprep.subr.bf16.mxu0 0
    %1951 = vmatpush1.bf16.msra.mxu0 0
    %1952 = vmatprep.subr.bf16.mxu0 0
    %1953 = vmatpush1.bf16.msra.mxu0 0
    %1954 = vmatprep.subr.bf16.mxu0 0
    %1955 = vmatpush1.bf16.msra.mxu0 0
    %1956 = vmatprep.subr.bf16.mxu0 0
    %1957 = vmatpush1.bf16.msra.mxu0 0
    %1958 = vmatprep.subr.bf16.mxu0 0
    %1959 = vmatpush1.bf16.msra.mxu0 0
    %1960 = vmatprep.subr.bf16.mxu0 0
    %1961 = vmatpush1.bf16.msra.mxu0 0
    %1962 = vmatprep.subr.bf16.mxu0 0
    %1963 = vmatpush1.bf16.msra.mxu0 0
    %1964 = vmatprep.subr.bf16.mxu0 0
    %1965 = vmatpush1.bf16.msra.mxu0 0
    %1966 = vmatprep.subr.bf16.mxu0 0
    %1967 = vmatpush1.bf16.msra.mxu0 0
    %1968 = vmatprep.subr.bf16.mxu0 0
    %1969 = vmatpush1.bf16.msra.mxu0 0
    %1970 = vmatprep.mubr.bf16.mxu0 0
    %1971 = vmatmul.mubr.bf16.gmra.mrb[0].mxu0 %v1936
    %v1972 = vpop.f32.mrb[0].mxu0
    %v1973 = vadd.f32 0.0, %v1972
    %v1974 = vpop.f32.mrb[0].mxu0
    %v1975 = vpop.f32.mrb[0].mxu0
    %v1976 = vadd.f32 0.0, %v1975
    %v1977 = vpop.f32.mrb[0].mxu0
    %1978 = vdwg.mxu0
    %v1979 = vrcp.pop %v1930
    %v1980 = vmul.f32 %v1973, %v1979
    %v1981 = vrcp.pop %v1933
    %v1982 = vmul.f32 %v1976, %v1981
    %1984 = vrot.lane.b32.xlu0 %v1862, 96
    %v1985 = vpop.permute.xlu0 %1984
    %1987 = vrot.lane.b32.xlu0 %v1863, 96
    %v1988 = vpop.permute.xlu0 %1987
    %v1990 = vsel %vm521, %v1985, 0
    %v1993 = vsel %vm521, %v1988, 0
    %1995 = vmatprep.subr.bf16.mxu0 0
    %1996 = vmatpush1.bf16.xpose.msra.mxu0 %v1993
    %1997 = vmatprep.subr.bf16.mxu0 0
    %1998 = vmatpush1.bf16.xpose.msra.mxu0 0
    %1999 = vmatprep.subr.bf16.mxu0 0
    %2000 = vmatpush1.bf16.xpose.msra.mxu0 0
    %2001 = vmatprep.subr.bf16.mxu0 0
    %2002 = vmatpush1.bf16.xpose.msra.mxu0 0
    %2003 = vmatprep.subr.bf16.mxu0 0
    %2004 = vmatpush1.bf16.xpose.msra.mxu0 0
    %2005 = vmatprep.subr.bf16.mxu0 0
    %2006 = vmatpush1.bf16.xpose.msra.mxu0 0
    %2007 = vmatprep.subr.bf16.mxu0 0
    %2008 = vmatpush1.bf16.xpose.msra.mxu0 0
    %2009 = vmatprep.subr.bf16.mxu0 0
    %2010 = vmatpush1.bf16.xpose.msra.mxu0 0
    %2011 = vmatprep.subr.bf16.mxu0 0
    %2012 = vmatpush1.bf16.xpose.msra.mxu0 0
    %2013 = vmatprep.subr.bf16.mxu0 0
    %2014 = vmatpush1.bf16.xpose.msra.mxu0 0
    %2015 = vmatprep.subr.bf16.mxu0 0
    %2016 = vmatpush1.bf16.xpose.msra.mxu0 0
    %2017 = vmatprep.subr.bf16.mxu0 0
    %2018 = vmatpush1.bf16.xpose.msra.mxu0 0
    %2019 = vmatprep.subr.bf16.mxu0 0
    %2020 = vmatpush1.bf16.xpose.msra.mxu0 0
    %2021 = vmatprep.subr.bf16.mxu0 0
    %2022 = vmatpush1.bf16.xpose.msra.mxu0 0
    %2023 = vmatprep.subr.bf16.mxu0 0
    %2024 = vmatpush1.bf16.xpose.msra.mxu0 0
    %2025 = vmatprep.subr.bf16.mxu0 0
    %2026 = vmatpush1.bf16.xpose.msra.mxu0 0
    %2027 = vmatprep.mubr.bf16.mxu0 0
    %2028 = vmatmul.mubr.bf16.gmra.mrb[0].mxu0 %v1990
    %v2029 = vpop.f32.mrb[0].mxu0
    %v2030 = vadd.f32 0.0, %v2029
    %v2031 = vpop.f32.mrb[0].mxu0
    %v2032 = vpop.f32.mrb[0].mxu0
    %v2033 = vadd.f32 0.0, %v2032
    %v2034 = vpop.f32.mrb[0].mxu0
    %2035 = vdwg.mxu0
    %v2036 = vmul.f32 %v2030, 0.17677669
    %v2037 = vmul.f32 %v2033, 0.17677669
    %v2038 = vadd.f32 %v2036, %v254
    %v2039 = vadd.f32 %v2037, %v255
    %v2040 = vsel %vm573, %v2038, -inf
    %2041 = vmax.xlane.f32.xlu0 %v2040
    %v2042 = vpop.xlane.xlu0 %2041
    %v2043 = vsel %vm573, %v2039, -inf
    %2044 = vmax.xlane.f32.xlu0 %v2043
    %v2045 = vpop.xlane.xlu0 %2044
    %v2046 = vsub.f32 %v2038, %v2042
    %v2047 = vsub.f32 %v2039, %v2045
    %v2048 = vmul.f32 %v2046, 1.442695
    %v2049 = vpow.pop %v2048
    %v2050 = vmul.f32 %v2047, 1.442695
    %v2051 = vpow.pop %v2050
    %v2052 = vsel %vm573, %v2049, 0.0
    %2053 = vadd.xlane.f32.xlu0 %v2052
    %v2054 = vpop.xlane.xlu0 %2053
    %v2055 = vsel %vm573, %v2051, 0.0
    %2056 = vadd.xlane.f32.xlu0 %v2055
    %v2057 = vpop.xlane.xlu0 %2056
    %v2058 = vpack.c.bf16 %v2051, %v2049
    %2060 = vrot.lane.b32.xlu0 %v1864, 96
    %v2061 = vpop.permute.xlu0 %2060
    %v2064 = vsel %vm573, %v2058, 0
    %2066 = vmatprep.subr.bf16.mxu0 0
    %2067 = vmatpush1.bf16.msra.mxu0 %v2061
    %2068 = vmatprep.subr.bf16.mxu0 0
    %2069 = vmatpush1.bf16.msra.mxu0 0
    %2070 = vmatprep.subr.bf16.mxu0 0
    %2071 = vmatpush1.bf16.msra.mxu0 0
    %2072 = vmatprep.subr.bf16.mxu0 0
    %2073 = vmatpush1.bf16.msra.mxu0 0
    %2074 = vmatprep.subr.bf16.mxu0 0
    %2075 = vmatpush1.bf16.msra.mxu0 0
    %2076 = vmatprep.subr.bf16.mxu0 0
    %2077 = vmatpush1.bf16.msra.mxu0 0
    %2078 = vmatprep.subr.bf16.mxu0 0
    %2079 = vmatpush1.bf16.msra.mxu0 0
    %2080 = vmatprep.subr.bf16.mxu0 0
    %2081 = vmatpush1.bf16.msra.mxu0 0
    %2082 = vmatprep.subr.bf16.mxu0 0
    %2083 = vmatpush1.bf16.msra.mxu0 0
    %2084 = vmatprep.subr.bf16.mxu0 0
    %2085 = vmatpush1.bf16.msra.mxu0 0
    %2086 = vmatprep.subr.bf16.mxu0 0
    %2087 = vmatpush1.bf16.msra.mxu0 0
    %2088 = vmatprep.subr.bf16.mxu0 0
    %2089 = vmatpush1.bf16.msra.mxu0 0
    %2090 = vmatprep.subr.bf16.mxu0 0
    %2091 = vmatpush1.bf16.msra.mxu0 0
    %2092 = vmatprep.subr.bf16.mxu0 0
    %2093 = vmatpush1.bf16.msra.mxu0 0
    %2094 = vmatprep.subr.bf16.mxu0 0
    %2095 = vmatpush1.bf16.msra.mxu0 0
    %2096 = vmatprep.subr.bf16.mxu0 0
    %2097 = vmatpush1.bf16.msra.mxu0 0
    %2098 = vmatprep.mubr.bf16.mxu0 0
    %2099 = vmatmul.mubr.bf16.gmra.mrb[0].mxu0 %v2064
    %v2100 = vpop.f32.mrb[0].mxu0
    %v2101 = vadd.f32 0.0, %v2100
    %v2102 = vpop.f32.mrb[0].mxu0
    %v2103 = vpop.f32.mrb[0].mxu0
    %v2104 = vadd.f32 0.0, %v2103
    %v2105 = vpop.f32.mrb[0].mxu0
    %2106 = vdwg.mxu0
    %v2107 = vrcp.pop %v2054
    %v2108 = vmul.f32 %v2101, %v2107
    %v2109 = vrcp.pop %v2057
    %v2110 = vmul.f32 %v2104, %v2109
    %2111 = vrot.lane.b32.xlu0 %v1862, 64
    %v2112 = vpop.permute.xlu0 %2111
    %2113 = vrot.lane.b32.xlu0 %v1863, 64
    %v2114 = vpop.permute.xlu0 %2113
    %v2116 = vsel %vm521, %v2112, 0
    %v2119 = vsel %vm521, %v2114, 0
    %2121 = vmatprep.subr.bf16.mxu0 0
    %2122 = vmatpush1.bf16.xpose.msra.mxu0 %v2119
    %2123 = vmatprep.subr.bf16.mxu0 0
    %2124 = vmatpush1.bf16.xpose.msra.mxu0 0
    %2125 = vmatprep.subr.bf16.mxu0 0
    %2126 = vmatpush1.bf16.xpose.msra.mxu0 0
    %2127 = vmatprep.subr.bf16.mxu0 0
    %2128 = vmatpush1.bf16.xpose.msra.mxu0 0
    %2129 = vmatprep.subr.bf16.mxu0 0
    %2130 = vmatpush1.bf16.xpose.msra.mxu0 0
    %2131 = vmatprep.subr.bf16.mxu0 0
    %2132 = vmatpush1.bf16.xpose.msra.mxu0 0
    %2133 = vmatprep.subr.bf16.mxu0 0
    %2134 = vmatpush1.bf16.xpose.msra.mxu0 0
    %2135 = vmatprep.subr.bf16.mxu0 0
    %2136 = vmatpush1.bf16.xpose.msra.mxu0 0
    %2137 = vmatprep.subr.bf16.mxu0 0
    %2138 = vmatpush1.bf16.xpose.msra.mxu0 0
    %2139 = vmatprep.subr.bf16.mxu0 0
    %2140 = vmatpush1.bf16.xpose.msra.mxu0 0
    %2141 = vmatprep.subr.bf16.mxu0 0
    %2142 = vmatpush1.bf16.xpose.msra.mxu0 0
    %2143 = vmatprep.subr.bf16.mxu0 0
    %2144 = vmatpush1.bf16.xpose.msra.mxu0 0
    %2145 = vmatprep.subr.bf16.mxu0 0
    %2146 = vmatpush1.bf16.xpose.msra.mxu0 0
    %2147 = vmatprep.subr.bf16.mxu0 0
    %2148 = vmatpush1.bf16.xpose.msra.mxu0 0
    %2149 = vmatprep.subr.bf16.mxu0 0
    %2150 = vmatpush1.bf16.xpose.msra.mxu0 0
    %2151 = vmatprep.subr.bf16.mxu0 0
    %2152 = vmatpush1.bf16.xpose.msra.mxu0 0
    %2153 = vmatprep.mubr.bf16.mxu0 0
    %2154 = vmatmul.mubr.bf16.gmra.mrb[0].mxu0 %v2116
    %v2155 = vpop.f32.mrb[0].mxu0
    %v2156 = vadd.f32 0.0, %v2155
    %v2157 = vpop.f32.mrb[0].mxu0
    %v2158 = vpop.f32.mrb[0].mxu0
    %v2159 = vadd.f32 0.0, %v2158
    %v2160 = vpop.f32.mrb[0].mxu0
    %2161 = vdwg.mxu0
    %v2162 = vmul.f32 %v2156, 0.17677669
    %v2163 = vmul.f32 %v2159, 0.17677669
    %v2164 = vadd.f32 %v2162, %v254
    %v2165 = vadd.f32 %v2163, %v255
    %v2166 = vsel %vm573, %v2164, -inf
    %2167 = vmax.xlane.f32.xlu0 %v2166
    %v2168 = vpop.xlane.xlu0 %2167
    %v2169 = vsel %vm573, %v2165, -inf
    %2170 = vmax.xlane.f32.xlu0 %v2169
    %v2171 = vpop.xlane.xlu0 %2170
    %v2172 = vsub.f32 %v2164, %v2168
    %v2173 = vsub.f32 %v2165, %v2171
    %v2174 = vmul.f32 %v2172, 1.442695
    %v2175 = vpow.pop %v2174
    %v2176 = vmul.f32 %v2173, 1.442695
    %v2177 = vpow.pop %v2176
    %v2178 = vsel %vm573, %v2175, 0.0
    %2179 = vadd.xlane.f32.xlu0 %v2178
    %v2180 = vpop.xlane.xlu0 %2179
    %v2181 = vsel %vm573, %v2177, 0.0
    %2182 = vadd.xlane.f32.xlu0 %v2181
    %v2183 = vpop.xlane.xlu0 %2182
    %v2184 = vpack.c.bf16 %v2177, %v2175
    %2185 = vrot.lane.b32.xlu0 %v1864, 64
    %v2186 = vpop.permute.xlu0 %2185
    %v2189 = vsel %vm573, %v2184, 0
    %2191 = vmatprep.subr.bf16.mxu0 0
    %2192 = vmatpush1.bf16.msra.mxu0 %v2186
    %2193 = vmatprep.subr.bf16.mxu0 0
    %2194 = vmatpush1.bf16.msra.mxu0 0
    %2195 = vmatprep.subr.bf16.mxu0 0
    %2196 = vmatpush1.bf16.msra.mxu0 0
    %2197 = vmatprep.subr.bf16.mxu0 0
    %2198 = vmatpush1.bf16.msra.mxu0 0
    %2199 = vmatprep.subr.bf16.mxu0 0
    %2200 = vmatpush1.bf16.msra.mxu0 0
    %2201 = vmatprep.subr.bf16.mxu0 0
    %2202 = vmatpush1.bf16.msra.mxu0 0
    %2203 = vmatprep.subr.bf16.mxu0 0
    %2204 = vmatpush1.bf16.msra.mxu0 0
    %2205 = vmatprep.subr.bf16.mxu0 0
    %2206 = vmatpush1.bf16.msra.mxu0 0
    %2207 = vmatprep.subr.bf16.mxu0 0
    %2208 = vmatpush1.bf16.msra.mxu0 0
    %2209 = vmatprep.subr.bf16.mxu0 0
    %2210 = vmatpush1.bf16.msra.mxu0 0
    %2211 = vmatprep.subr.bf16.mxu0 0
    %2212 = vmatpush1.bf16.msra.mxu0 0
    %2213 = vmatprep.subr.bf16.mxu0 0
    %2214 = vmatpush1.bf16.msra.mxu0 0
    %2215 = vmatprep.subr.bf16.mxu0 0
    %2216 = vmatpush1.bf16.msra.mxu0 0
    %2217 = vmatprep.subr.bf16.mxu0 0
    %2218 = vmatpush1.bf16.msra.mxu0 0
    %2219 = vmatprep.subr.bf16.mxu0 0
    %2220 = vmatpush1.bf16.msra.mxu0 0
    %2221 = vmatprep.subr.bf16.mxu0 0
    %2222 = vmatpush1.bf16.msra.mxu0 0
    %2223 = vmatprep.mubr.bf16.mxu0 0
    %2224 = vmatmul.mubr.bf16.gmra.mrb[0].mxu0 %v2189
    %v2225 = vpop.f32.mrb[0].mxu0
    %v2226 = vadd.f32 0.0, %v2225
    %v2227 = vpop.f32.mrb[0].mxu0
    %v2228 = vpop.f32.mrb[0].mxu0
    %v2229 = vadd.f32 0.0, %v2228
    %v2230 = vpop.f32.mrb[0].mxu0
    %2231 = vdwg.mxu0
    %v2232 = vrcp.pop %v2180
    %v2233 = vmul.f32 %v2226, %v2232
    %v2234 = vrcp.pop %v2183
    %v2235 = vmul.f32 %v2229, %v2234
    %2236 = vrot.lane.b32.xlu0 %v1862, 32
    %v2237 = vpop.permute.xlu0 %2236
    %2238 = vrot.lane.b32.xlu0 %v1863, 32
    %v2239 = vpop.permute.xlu0 %2238
    %v2241 = vsel %vm521, %v2237, 0
    %v2244 = vsel %vm521, %v2239, 0
    %2246 = vmatprep.subr.bf16.mxu0 0
    %2247 = vmatpush1.bf16.xpose.msra.mxu0 %v2244
    %2248 = vmatprep.subr.bf16.mxu0 0
    %2249 = vmatpush1.bf16.xpose.msra.mxu0 0
    %2250 = vmatprep.subr.bf16.mxu0 0
    %2251 = vmatpush1.bf16.xpose.msra.mxu0 0
    %2252 = vmatprep.subr.bf16.mxu0 0
    %2253 = vmatpush1.bf16.xpose.msra.mxu0 0
    %2254 = vmatprep.subr.bf16.mxu0 0
    %2255 = vmatpush1.bf16.xpose.msra.mxu0 0
    %2256 = vmatprep.subr.bf16.mxu0 0
    %2257 = vmatpush1.bf16.xpose.msra.mxu0 0
    %2258 = vmatprep.subr.bf16.mxu0 0
    %2259 = vmatpush1.bf16.xpose.msra.mxu0 0
    %2260 = vmatprep.subr.bf16.mxu0 0
    %2261 = vmatpush1.bf16.xpose.msra.mxu0 0
    %2262 = vmatprep.subr.bf16.mxu0 0
    %2263 = vmatpush1.bf16.xpose.msra.mxu0 0
    %2264 = vmatprep.subr.bf16.mxu0 0
    %2265 = vmatpush1.bf16.xpose.msra.mxu0 0
    %2266 = vmatprep.subr.bf16.mxu0 0
    %2267 = vmatpush1.bf16.xpose.msra.mxu0 0
    %2268 = vmatprep.subr.bf16.mxu0 0
    %2269 = vmatpush1.bf16.xpose.msra.mxu0 0
    %2270 = vmatprep.subr.bf16.mxu0 0
    %2271 = vmatpush1.bf16.xpose.msra.mxu0 0
    %2272 = vmatprep.subr.bf16.mxu0 0
    %2273 = vmatpush1.bf16.xpose.msra.mxu0 0
    %2274 = vmatprep.subr.bf16.mxu0 0
    %2275 = vmatpush1.bf16.xpose.msra.mxu0 0
    %2276 = vmatprep.subr.bf16.mxu0 0
    %2277 = vmatpush1.bf16.xpose.msra.mxu0 0
    %2278 = vmatprep.mubr.bf16.mxu0 0
    %2279 = vmatmul.mubr.bf16.gmra.mrb[0].mxu0 %v2241
    %v2280 = vpop.f32.mrb[0].mxu0
    %v2281 = vadd.f32 0.0, %v2280
    %v2282 = vpop.f32.mrb[0].mxu0
    %v2283 = vpop.f32.mrb[0].mxu0
    %v2284 = vadd.f32 0.0, %v2283
    %v2285 = vpop.f32.mrb[0].mxu0
    %2286 = vdwg.mxu0
    %v2287 = vmul.f32 %v2281, 0.17677669
    %v2288 = vmul.f32 %v2284, 0.17677669
    %v2289 = vadd.f32 %v2287, %v254
    %v2290 = vadd.f32 %v2288, %v255
    %v2291 = vsel %vm573, %v2289, -inf
    %2292 = vmax.xlane.f32.xlu0 %v2291
    %v2293 = vpop.xlane.xlu0 %2292
    %v2294 = vsel %vm573, %v2290, -inf
    %2295 = vmax.xlane.f32.xlu0 %v2294
    %v2296 = vpop.xlane.xlu0 %2295
    %v2297 = vsub.f32 %v2289, %v2293
    %v2298 = vsub.f32 %v2290, %v2296
    %v2299 = vmul.f32 %v2297, 1.442695
    %v2300 = vpow.pop %v2299
    %v2301 = vmul.f32 %v2298, 1.442695
    %v2302 = vpow.pop %v2301
    %v2303 = vsel %vm573, %v2300, 0.0
    %2304 = vadd.xlane.f32.xlu0 %v2303
    %v2305 = vpop.xlane.xlu0 %2304
    %v2306 = vsel %vm573, %v2302, 0.0
    %2307 = vadd.xlane.f32.xlu0 %v2306
    %v2308 = vpop.xlane.xlu0 %2307
    %v2309 = vpack.c.bf16 %v2302, %v2300
    %2310 = vrot.lane.b32.xlu0 %v1864, 32
    %v2311 = vpop.permute.xlu0 %2310
    %v2314 = vsel %vm573, %v2309, 0
    %2316 = vmatprep.subr.bf16.mxu0 0
    %2317 = vmatpush1.bf16.msra.mxu0 %v2311
    %2318 = vmatprep.subr.bf16.mxu0 0
    %2319 = vmatpush1.bf16.msra.mxu0 0
    %2320 = vmatprep.subr.bf16.mxu0 0
    %2321 = vmatpush1.bf16.msra.mxu0 0
    %2322 = vmatprep.subr.bf16.mxu0 0
    %2323 = vmatpush1.bf16.msra.mxu0 0
    %2324 = vmatprep.subr.bf16.mxu0 0
    %2325 = vmatpush1.bf16.msra.mxu0 0
    %2326 = vmatprep.subr.bf16.mxu0 0
    %2327 = vmatpush1.bf16.msra.mxu0 0
    %2328 = vmatprep.subr.bf16.mxu0 0
    %2329 = vmatpush1.bf16.msra.mxu0 0
    %2330 = vmatprep.subr.bf16.mxu0 0
    %2331 = vmatpush1.bf16.msra.mxu0 0
    %2332 = vmatprep.subr.bf16.mxu0 0
    %2333 = vmatpush1.bf16.msra.mxu0 0
    %2334 = vmatprep.subr.bf16.mxu0 0
    %2335 = vmatpush1.bf16.msra.mxu0 0
    %2336 = vmatprep.subr.bf16.mxu0 0
    %2337 = vmatpush1.bf16.msra.mxu0 0
    %2338 = vmatprep.subr.bf16.mxu0 0
    %2339 = vmatpush1.bf16.msra.mxu0 0
    %2340 = vmatprep.subr.bf16.mxu0 0
    %2341 = vmatpush1.bf16.msra.mxu0 0
    %2342 = vmatprep.subr.bf16.mxu0 0
    %2343 = vmatpush1.bf16.msra.mxu0 0
    %2344 = vmatprep.subr.bf16.mxu0 0
    %2345 = vmatpush1.bf16.msra.mxu0 0
    %2346 = vmatprep.subr.bf16.mxu0 0
    %2347 = vmatpush1.bf16.msra.mxu0 0
    %2348 = vmatprep.mubr.bf16.mxu0 0
    %2349 = vmatmul.mubr.bf16.gmra.mrb[0].mxu0 %v2314
    %v2350 = vpop.f32.mrb[0].mxu0
    %v2351 = vadd.f32 0.0, %v2350
    %v2352 = vpop.f32.mrb[0].mxu0
    %v2353 = vpop.f32.mrb[0].mxu0
    %v2354 = vadd.f32 0.0, %v2353
    %v2355 = vpop.f32.mrb[0].mxu0
    %2356 = vdwg.mxu0
    %v2357 = vrcp.pop %v2305
    %v2358 = vmul.f32 %v2351, %v2357
    %v2359 = vrcp.pop %v2308
    %v2360 = vmul.f32 %v2354, %v2359
    %2363 = vrot.lane.b32.xlu0 %v2108, 32
    %v2364 = vpop.permute.xlu0 %2363
    %2365 = vrot.lane.b32.xlu0 %v2110, 32
    %v2366 = vpop.permute.xlu0 %2365
    %2371 = vrot.lane.b32.xlu0 %v2233, 64
    %v2372 = vpop.permute.xlu0 %2371
    %2373 = vrot.lane.b32.xlu0 %v2235, 64
    %v2374 = vpop.permute.xlu0 %2373
    %2379 = vrot.lane.b32.xlu0 %v2358, 96
    %v2380 = vpop.permute.xlu0 %2379
    %2381 = vrot.lane.b32.xlu0 %v2360, 96
    %v2382 = vpop.permute.xlu0 %2381
    %v2385 = vsel %vm521, %v1980, %v2364
    %v2386 = vsel %vm521, %v1982, %v2366
    %v2387 = vsel %vm1045, %v2385, %v2372
    %v2388 = vsel %vm1045, %v2386, %v2374
    %v2389 = vsel %vm1048, %v2387, %v2380
    %v2390 = vsel %vm1048, %v2388, %v2382
    %v2391 = vpack.c.bf16 %v2390, %v2389
    %s2392 = scalar_lea.vmem [#allocation8], 64
    %v2393 = vld [vmem:[%s2392] sm:$0xf]
    %v2394 = vld [vmem:[%s2392 + $0x4] sm:$0xf]
    %v2395 = vld [vmem:[%s2392 + $0x8] sm:$0xf]
    %v2396 = vld [vmem:[%s2392 + $0xc] sm:$0xf]
    %v2397 = vld [vmem:[%s2392 + $0x10] sm:$0xf]
    %v2398 = vld [vmem:[%s2392 + $0x14] sm:$0xf]
    %v2399 = vld [vmem:[%s2392 + $0x18] sm:$0xf]
    %v2400 = vld [vmem:[%s2392 + $0x1c] sm:$0xf]
    %v2401 = vld [vmem:[%s2392 + $0x20] sm:$0xf]
    %v2402 = vld [vmem:[%s2392 + $0x24] sm:$0xf]
    %v2403 = vld [vmem:[%s2392 + $0x28] sm:$0xf]
    %v2404 = vld [vmem:[%s2392 + $0x2c] sm:$0xf]
    %v2405 = vld [vmem:[%s2392 + $0x30] sm:$0xf]
    %v2406 = vld [vmem:[%s2392 + $0x34] sm:$0xf]
    %v2407 = vld [vmem:[%s2392 + $0x38] sm:$0xf]
    %v2408 = vld [vmem:[%s2392 + $0x3c] sm:$0xf]
    %s2409 = scalar_lea.vmem [#allocation10], 1
    %v2410 = vld [vmem:[%s2409] sm:$0x1]
    %v2412 = vlaneseq
    %v2413 = vshrl.u32 %v2412, 7
    %v2414 = vsub.s32 0, %v2413
    %v2415 = vrot.slane %v2410, %v2414
    %v2433 = vunpack.c.l.b16 %v2393
    %v2434 = vunpack.c.l.b16 %v2394
    %v2435 = vunpack.c.l.b16 %v2395
    %v2436 = vunpack.c.l.b16 %v2396
    %v2437 = vunpack.c.l.b16 %v2397
    %v2438 = vunpack.c.l.b16 %v2398
    %v2439 = vunpack.c.l.b16 %v2399
    %v2440 = vunpack.c.l.b16 %v2400
    %v2441 = vunpack.c.l.b16 %v2401
    %v2442 = vunpack.c.l.b16 %v2402
    %v2443 = vunpack.c.l.b16 %v2403
    %v2444 = vunpack.c.l.b16 %v2404
    %v2445 = vunpack.c.l.b16 %v2405
    %v2446 = vunpack.c.l.b16 %v2406
    %v2447 = vunpack.c.l.b16 %v2407
    %v2448 = vunpack.c.l.b16 %v2408
    %v2449 = vpack.c.b16 %v2434, %v2433
    %v2450 = vpack.c.b16 %v2436, %v2435
    %v2451 = vpack.c.b16 %v2438, %v2437
    %v2452 = vpack.c.b16 %v2440, %v2439
    %v2453 = vpack.c.b16 %v2442, %v2441
    %v2454 = vpack.c.b16 %v2444, %v2443
    %v2455 = vpack.c.b16 %v2446, %v2445
    %v2456 = vpack.c.b16 %v2448, %v2447
    %2465 = vmatprep.subr.bf16.mxu0 0
    %2466 = vmatpush1.bf16.msra.mxu0 %v2449
    %2467 = vmatprep.subr.bf16.mxu0 0
    %2468 = vmatpush1.bf16.msra.mxu0 %v2450
    %2469 = vmatprep.subr.bf16.mxu0 0
    %2470 = vmatpush1.bf16.msra.mxu0 %v2451
    %2471 = vmatprep.subr.bf16.mxu0 0
    %2472 = vmatpush1.bf16.msra.mxu0 %v2452
    %2473 = vmatprep.subr.bf16.mxu0 0
    %2474 = vmatpush1.bf16.msra.mxu0 %v2453
    %2475 = vmatprep.subr.bf16.mxu0 0
    %2476 = vmatpush1.bf16.msra.mxu0 %v2454
    %2477 = vmatprep.subr.bf16.mxu0 0
    %2478 = vmatpush1.bf16.msra.mxu0 %v2455
    %2479 = vmatprep.subr.bf16.mxu0 0
    %2480 = vmatpush1.bf16.msra.mxu0 %v2456
    %2481 = vmatprep.subr.bf16.mxu0 0
    %2482 = vmatpush1.bf16.msra.mxu0 0
    %2483 = vmatprep.subr.bf16.mxu0 0
    %2484 = vmatpush1.bf16.msra.mxu0 0
    %2485 = vmatprep.subr.bf16.mxu0 0
    %2486 = vmatpush1.bf16.msra.mxu0 0
    %2487 = vmatprep.subr.bf16.mxu0 0
    %2488 = vmatpush1.bf16.msra.mxu0 0
    %2489 = vmatprep.subr.bf16.mxu0 0
    %2490 = vmatpush1.bf16.msra.mxu0 0
    %2491 = vmatprep.subr.bf16.mxu0 0
    %2492 = vmatpush1.bf16.msra.mxu0 0
    %2493 = vmatprep.subr.bf16.mxu0 0
    %2494 = vmatpush1.bf16.msra.mxu0 0
    %2495 = vmatprep.subr.bf16.mxu0 0
    %2496 = vmatpush1.bf16.msra.mxu0 0
    %2497 = vmatprep.mubr.bf16.mxu0 0
    %2498 = vmatmul.mubr.bf16.gmra.mrb[0].mxu0 %v2391
    %v2499 = vpop.f32.mrb[0].mxu0
    %v2500 = vadd.f32 %v2415, %v2499
    %v2501 = vpop.f32.mrb[0].mxu0
    %v2502 = vpop.f32.mrb[0].mxu0
    %v2503 = vadd.f32 %v2415, %v2502
    %v2504 = vpop.f32.mrb[0].mxu0
    %2505 = vdwg.mxu0
    %v2506 = vadd.f32 %v1596, %v2500
    %v2507 = vadd.f32 %v1597, %v2503
    %s2508 = scalar_lea.vmem %s9, 1
    %v2509 = vld [vmem:[%s2508] sm:$0x1]
    %s2510 = scalar_lea.vmem %s10, 1
    %v2511 = vld [vmem:[%s2510] sm:$0x1]
    %2512 = vadd.xlane.f32.xlu0 %v2506
    %v2513 = vpop.xlane.xlu0 %2512
    %2514 = vadd.xlane.f32.xlu0 %v2507
    %v2515 = vpop.xlane.xlu0 %2514
    %v2516 = vmul.f32 %v2513, %v219
    %v2517 = vmul.f32 %v2515, %v219
    %v2518 = vsub.f32 %v2506, %v2516
    %v2519 = vsub.f32 %v2507, %v2517
    %v2520 = vmul.f32 %v2518, %v2518
    %v2521 = vmul.f32 %v2519, %v2519
    %2522 = vadd.xlane.f32.xlu0 %v2520
    %v2523 = vpop.xlane.xlu0 %2522
    %2524 = vadd.xlane.f32.xlu0 %v2521
    %v2525 = vpop.xlane.xlu0 %2524
    %v2526 = vmul.f32 %v2523, %v219
    %v2527 = vmul.f32 %v2525, %v219
    %v2528 = vadd.f32 %v2526, 1e-12
    %v2529 = vadd.f32 %v2527, 1e-12
    %v2530 = vrsqrt.pop %v2528
    %v2531 = vrsqrt.pop %v2529
    %v2532 = vmul.f32 %v2518, %v2530
    %v2533 = vmul.f32 %v2519, %v2531
    %v2535 = vlaneseq
    %v2536 = vshrl.u32 %v2535, 7
    %v2537 = vsub.s32 0, %v2536
    %v2538 = vrot.slane %v2509, %v2537
    %v2540 = vmul.f32 %v2532, %v2538
    %v2541 = vmul.f32 %v2533, %v2538
    %v2543 = vlaneseq
    %v2544 = vshrl.u32 %v2543, 7
    %v2545 = vsub.s32 0, %v2544
    %v2546 = vrot.slane %v2511, %v2545
    %v2548 = vadd.f32 %v2540, %v2546
    %v2549 = vadd.f32 %v2541, %v2546
    %v2550 = vpack.c.bf16 %v2549, %v2548
    %s2551 = scalar_lea.vmem %s11, 128
    %v2552 = vld [vmem:[%s2551] sm:$0xff]
    %v2553 = vld [vmem:[%s2551 + $0x8] sm:$0xff]
    %v2554 = vld [vmem:[%s2551 + $0x10] sm:$0xff]
    %v2555 = vld [vmem:[%s2551 + $0x18] sm:$0xff]
    %v2556 = vld [vmem:[%s2551 + $0x20] sm:$0xff]
    %v2557 = vld [vmem:[%s2551 + $0x28] sm:$0xff]
    %v2558 = vld [vmem:[%s2551 + $0x30] sm:$0xff]
    %v2559 = vld [vmem:[%s2551 + $0x38] sm:$0xff]
    %v2560 = vld [vmem:[%s2551 + $0x40] sm:$0xff]
    %v2561 = vld [vmem:[%s2551 + $0x48] sm:$0xff]
    %v2562 = vld [vmem:[%s2551 + $0x50] sm:$0xff]
    %v2563 = vld [vmem:[%s2551 + $0x58] sm:$0xff]
    %v2564 = vld [vmem:[%s2551 + $0x60] sm:$0xff]
    %v2565 = vld [vmem:[%s2551 + $0x68] sm:$0xff]
    %v2566 = vld [vmem:[%s2551 + $0x70] sm:$0xff]
    %v2567 = vld [vmem:[%s2551 + $0x78] sm:$0xff]
    %s2568 = scalar_lea.vmem [#allocation11], 2
    %v2569 = vld [vmem:[%s2568] sm:$0x3]
    %v2571 = vlaneseq
    %v2572 = vshrl.u32 %v2571, 7
    %v2573 = vsub.s32 0, %v2572
    %v2574 = vrot.slane %v2569, %v2573
    %v2575 = vlaneseq
    %v2576 = vshrl.u32 %v2575, 7
    %v2577 = vsub.s32 1, %v2576
    %v2578 = vrot.slane %v2569, %v2577
    %v2597 = vunpack.c.l.b16 %v2552
    %v2598 = vunpack.c.h.b16 %v2552
    %v2599 = vunpack.c.l.b16 %v2553
    %v2600 = vunpack.c.h.b16 %v2553
    %v2601 = vunpack.c.l.b16 %v2554
    %v2602 = vunpack.c.h.b16 %v2554
    %v2603 = vunpack.c.l.b16 %v2555
    %v2604 = vunpack.c.h.b16 %v2555
    %v2605 = vunpack.c.l.b16 %v2556
    %v2606 = vunpack.c.h.b16 %v2556
    %v2607 = vunpack.c.l.b16 %v2557
    %v2608 = vunpack.c.h.b16 %v2557
    %v2609 = vunpack.c.l.b16 %v2558
    %v2610 = vunpack.c.h.b16 %v2558
    %v2611 = vunpack.c.l.b16 %v2559
    %v2612 = vunpack.c.h.b16 %v2559
    %v2613 = vunpack.c.l.b16 %v2560
    %v2614 = vunpack.c.h.b16 %v2560
    %v2615 = vunpack.c.l.b16 %v2561
    %v2616 = vunpack.c.h.b16 %v2561
    %v2617 = vunpack.c.l.b16 %v2562
    %v2618 = vunpack.c.h.b16 %v2562
    %v2619 = vunpack.c.l.b16 %v2563
    %v2620 = vunpack.c.h.b16 %v2563
    %v2621 = vunpack.c.l.b16 %v2564
    %v2622 = vunpack.c.h.b16 %v2564
    %v2623 = vunpack.c.l.b16 %v2565
    %v2624 = vunpack.c.h.b16 %v2565
    %v2625 = vunpack.c.l.b16 %v2566
    %v2626 = vunpack.c.h.b16 %v2566
    %v2627 = vunpack.c.l.b16 %v2567
    %v2628 = vunpack.c.h.b16 %v2567
    %v2629 = vpack.c.b16 %v2599, %v2597
    %v2630 = vpack.c.b16 %v2600, %v2598
    %v2631 = vpack.c.b16 %v2603, %v2601
    %v2632 = vpack.c.b16 %v2604, %v2602
    %v2633 = vpack.c.b16 %v2607, %v2605
    %v2634 = vpack.c.b16 %v2608, %v2606
    %v2635 = vpack.c.b16 %v2611, %v2609
    %v2636 = vpack.c.b16 %v2612, %v2610
    %v2637 = vpack.c.b16 %v2615, %v2613
    %v2638 = vpack.c.b16 %v2616, %v2614
    %v2639 = vpack.c.b16 %v2619, %v2617
    %v2640 = vpack.c.b16 %v2620, %v2618
    %v2641 = vpack.c.b16 %v2623, %v2621
    %v2642 = vpack.c.b16 %v2624, %v2622
    %v2643 = vpack.c.b16 %v2627, %v2625
    %v2644 = vpack.c.b16 %v2628, %v2626
    %2661 = vmatprep.subr.bf16.mxu0 %v2630
    %2662 = vmatpush1.bf16.msra.mxu0 %v2629
    %2663 = vmatprep.subr.bf16.mxu0 %v2632
    %2664 = vmatpush1.bf16.msra.mxu0 %v2631
    %2665 = vmatprep.subr.bf16.mxu0 %v2634
    %2666 = vmatpush1.bf16.msra.mxu0 %v2633
    %2667 = vmatprep.subr.bf16.mxu0 %v2636
    %2668 = vmatpush1.bf16.msra.mxu0 %v2635
    %2669 = vmatprep.subr.bf16.mxu0 %v2638
    %2670 = vmatpush1.bf16.msra.mxu0 %v2637
    %2671 = vmatprep.subr.bf16.mxu0 %v2640
    %2672 = vmatpush1.bf16.msra.mxu0 %v2639
    %2673 = vmatprep.subr.bf16.mxu0 %v2642
    %2674 = vmatpush1.bf16.msra.mxu0 %v2641
    %2675 = vmatprep.subr.bf16.mxu0 %v2644
    %2676 = vmatpush1.bf16.msra.mxu0 %v2643
    %2677 = vmatprep.subr.bf16.mxu0 0
    %2678 = vmatpush1.bf16.msra.mxu0 0
    %2679 = vmatprep.subr.bf16.mxu0 0
    %2680 = vmatpush1.bf16.msra.mxu0 0
    %2681 = vmatprep.subr.bf16.mxu0 0
    %2682 = vmatpush1.bf16.msra.mxu0 0
    %2683 = vmatprep.subr.bf16.mxu0 0
    %2684 = vmatpush1.bf16.msra.mxu0 0
    %2685 = vmatprep.subr.bf16.mxu0 0
    %2686 = vmatpush1.bf16.msra.mxu0 0
    %2687 = vmatprep.subr.bf16.mxu0 0
    %2688 = vmatpush1.bf16.msra.mxu0 0
    %2689 = vmatprep.subr.bf16.mxu0 0
    %2690 = vmatpush1.bf16.msra.mxu0 0
    %2691 = vmatprep.subr.bf16.mxu0 0
    %2692 = vmatpush1.bf16.msra.mxu0 0
    %2693 = vmatprep.mubr.bf16.mxu0 0
    %2694 = vmatmul.mubr.bf16.gmra.mrb[0].mxu0 %v2550
    %v2695 = vpop.f32.mrb[0].mxu0
    %v2696 = vadd.f32 %v2574, %v2695
    %v2697 = vpop.f32.mrb[0].mxu0
    %v2698 = vadd.f32 %v2578, %v2697
    %v2699 = vpop.f32.mrb[0].mxu0
    %v2700 = vadd.f32 %v2574, %v2699
    %v2701 = vpop.f32.mrb[0].mxu0
    %v2702 = vadd.f32 %v2578, %v2701
    %2703 = vdwg.mxu0
    %v2704 = vmul.f32 %v2696, 0.5
    %v2705 = vmul.f32 %v2698, 0.5
    %v2706 = vmul.f32 %v2700, 0.5
    %v2707 = vmul.f32 %v2702, 0.5
    %v2708 = vmul.f32 %v2696, 0.70710677
    %v2709 = vmul.f32 %v2698, 0.70710677
    %v2710 = vmul.f32 %v2700, 0.70710677
    %v2711 = vmul.f32 %v2702, 0.70710677
    %v2712 = verf.f32.pop %v2708
    %v2713 = verf.f32.pop %v2709
    %v2714 = verf.f32.pop %v2710
    %v2715 = verf.f32.pop %v2711
    %v2716 = vadd.f32 %v2712, 1.0
    %v2717 = vadd.f32 %v2713, 1.0
    %v2718 = vadd.f32 %v2714, 1.0
    %v2719 = vadd.f32 %v2715, 1.0
    %v2720 = vmul.f32 %v2704, %v2716
    %v2721 = vmul.f32 %v2705, %v2717
    %v2722 = vmul.f32 %v2706, %v2718
    %v2723 = vmul.f32 %v2707, %v2719
    %v2724 = vpack.c.bf16 %v2722, %v2720
    %v2725 = vpack.c.bf16 %v2723, %v2721
    %s2726 = scalar_lea.vmem [#allocation13], 128
    %v2727 = vld [vmem:[%s2726] sm:$0xf]
    %v2728 = vld [vmem:[%s2726 + $0x4] sm:$0xf]
    %v2729 = vld [vmem:[%s2726 + $0x8] sm:$0xf]
    %v2730 = vld [vmem:[%s2726 + $0xc] sm:$0xf]
    %v2731 = vld [vmem:[%s2726 + $0x10] sm:$0xf]
    %v2732 = vld [vmem:[%s2726 + $0x14] sm:$0xf]
    %v2733 = vld [vmem:[%s2726 + $0x18] sm:$0xf]
    %v2734 = vld [vmem:[%s2726 + $0x1c] sm:$0xf]
    %v2735 = vld [vmem:[%s2726 + $0x20] sm:$0xf]
    %v2736 = vld [vmem:[%s2726 + $0x24] sm:$0xf]
    %v2737 = vld [vmem:[%s2726 + $0x28] sm:$0xf]
    %v2738 = vld [vmem:[%s2726 + $0x2c] sm:$0xf]
    %v2739 = vld [vmem:[%s2726 + $0x30] sm:$0xf]
    %v2740 = vld [vmem:[%s2726 + $0x34] sm:$0xf]
    %v2741 = vld [vmem:[%s2726 + $0x38] sm:$0xf]
    %v2742 = vld [vmem:[%s2726 + $0x3c] sm:$0xf]
    %v2743 = vld [vmem:[%s2726 + $0x40] sm:$0xf]
    %v2744 = vld [vmem:[%s2726 + $0x44] sm:$0xf]
    %v2745 = vld [vmem:[%s2726 + $0x48] sm:$0xf]
    %v2746 = vld [vmem:[%s2726 + $0x4c] sm:$0xf]
    %v2747 = vld [vmem:[%s2726 + $0x50] sm:$0xf]
    %v2748 = vld [vmem:[%s2726 + $0x54] sm:$0xf]
    %v2749 = vld [vmem:[%s2726 + $0x58] sm:$0xf]
    %v2750 = vld [vmem:[%s2726 + $0x5c] sm:$0xf]
    %v2751 = vld [vmem:[%s2726 + $0x60] sm:$0xf]
    %v2752 = vld [vmem:[%s2726 + $0x64] sm:$0xf]
    %v2753 = vld [vmem:[%s2726 + $0x68] sm:$0xf]
    %v2754 = vld [vmem:[%s2726 + $0x6c] sm:$0xf]
    %v2755 = vld [vmem:[%s2726 + $0x70] sm:$0xf]
    %v2756 = vld [vmem:[%s2726 + $0x74] sm:$0xf]
    %v2757 = vld [vmem:[%s2726 + $0x78] sm:$0xf]
    %v2758 = vld [vmem:[%s2726 + $0x7c] sm:$0xf]
    %s2759 = scalar_lea.vmem [#allocation14], 1
    %v2760 = vld [vmem:[%s2759] sm:$0x1]
    %v2762 = vlaneseq
    %v2763 = vshrl.u32 %v2762, 7
    %v2764 = vsub.s32 0, %v2763
    %v2765 = vrot.slane %v2760, %v2764
    %v2799 = vunpack.c.l.b16 %v2727
    %v2800 = vunpack.c.l.b16 %v2728
    %v2801 = vunpack.c.l.b16 %v2729
    %v2802 = vunpack.c.l.b16 %v2730
    %v2803 = vunpack.c.l.b16 %v2731
    %v2804 = vunpack.c.l.b16 %v2732
    %v2805 = vunpack.c.l.b16 %v2733
    %v2806 = vunpack.c.l.b16 %v2734
    %v2807 = vunpack.c.l.b16 %v2735
    %v2808 = vunpack.c.l.b16 %v2736
    %v2809 = vunpack.c.l.b16 %v2737
    %v2810 = vunpack.c.l.b16 %v2738
    %v2811 = vunpack.c.l.b16 %v2739
    %v2812 = vunpack.c.l.b16 %v2740
    %v2813 = vunpack.c.l.b16 %v2741
    %v2814 = vunpack.c.l.b16 %v2742
    %v2815 = vunpack.c.l.b16 %v2743
    %v2816 = vunpack.c.l.b16 %v2744
    %v2817 = vunpack.c.l.b16 %v2745
    %v2818 = vunpack.c.l.b16 %v2746
    %v2819 = vunpack.c.l.b16 %v2747
    %v2820 = vunpack.c.l.b16 %v2748
    %v2821 = vunpack.c.l.b16 %v2749
    %v2822 = vunpack.c.l.b16 %v2750
    %v2823 = vunpack.c.l.b16 %v2751
    %v2824 = vunpack.c.l.b16 %v2752
    %v2825 = vunpack.c.l.b16 %v2753
    %v2826 = vunpack.c.l.b16 %v2754
    %v2827 = vunpack.c.l.b16 %v2755
    %v2828 = vunpack.c.l.b16 %v2756
    %v2829 = vunpack.c.l.b16 %v2757
    %v2830 = vunpack.c.l.b16 %v2758
    %v2831 = vpack.c.b16 %v2800, %v2799
    %v2832 = vpack.c.b16 %v2802, %v2801
    %v2833 = vpack.c.b16 %v2804, %v2803
    %v2834 = vpack.c.b16 %v2806, %v2805
    %v2835 = vpack.c.b16 %v2808, %v2807
    %v2836 = vpack.c.b16 %v2810, %v2809
    %v2837 = vpack.c.b16 %v2812, %v2811
    %v2838 = vpack.c.b16 %v2814, %v2813
    %v2839 = vpack.c.b16 %v2816, %v2815
    %v2840 = vpack.c.b16 %v2818, %v2817
    %v2841 = vpack.c.b16 %v2820, %v2819
    %v2842 = vpack.c.b16 %v2822, %v2821
    %v2843 = vpack.c.b16 %v2824, %v2823
    %v2844 = vpack.c.b16 %v2826, %v2825
    %v2845 = vpack.c.b16 %v2828, %v2827
    %v2846 = vpack.c.b16 %v2830, %v2829
    %2863 = vmatprep.subr.bf16.mxu0 0
    %2864 = vmatpush1.bf16.msra.mxu0 %v2831
    %2865 = vmatprep.subr.bf16.mxu0 0
    %2866 = vmatpush1.bf16.msra.mxu0 %v2832
    %2867 = vmatprep.subr.bf16.mxu0 0
    %2868 = vmatpush1.bf16.msra.mxu0 %v2833
    %2869 = vmatprep.subr.bf16.mxu0 0
    %2870 = vmatpush1.bf16.msra.mxu0 %v2834
    %2871 = vmatprep.subr.bf16.mxu0 0
    %2872 = vmatpush1.bf16.msra.mxu0 %v2835
    %2873 = vmatprep.subr.bf16.mxu0 0
    %2874 = vmatpush1.bf16.msra.mxu0 %v2836
    %2875 = vmatprep.subr.bf16.mxu0 0
    %2876 = vmatpush1.bf16.msra.mxu0 %v2837
    %2877 = vmatprep.subr.bf16.mxu0 0
    %2878 = vmatpush1.bf16.msra.mxu0 %v2838
    %2879 = vmatprep.subr.bf16.mxu0 0
    %2880 = vmatpush1.bf16.msra.mxu0 %v2839
    %2881 = vmatprep.subr.bf16.mxu0 0
    %2882 = vmatpush1.bf16.msra.mxu0 %v2840
    %2883 = vmatprep.subr.bf16.mxu0 0
    %2884 = vmatpush1.bf16.msra.mxu0 %v2841
    %2885 = vmatprep.subr.bf16.mxu0 0
    %2886 = vmatpush1.bf16.msra.mxu0 %v2842
    %2887 = vmatprep.subr.bf16.mxu0 0
    %2888 = vmatpush1.bf16.msra.mxu0 %v2843
    %2889 = vmatprep.subr.bf16.mxu0 0
    %2890 = vmatpush1.bf16.msra.mxu0 %v2844
    %2891 = vmatprep.subr.bf16.mxu0 0
    %2892 = vmatpush1.bf16.msra.mxu0 %v2845
    %2893 = vmatprep.subr.bf16.mxu0 0
    %2894 = vmatpush1.bf16.msra.mxu0 %v2846
    %2895 = vmatprep.mubr.bf16.mxu0 %v2725
    %2896 = vmatmul.mubr.bf16.gmra.mrb[0].mxu0 %v2724
    %v2897 = vpop.f32.mrb[0].mxu0
    %v2898 = vadd.f32 %v2765, %v2897
    %v2899 = vpop.f32.mrb[0].mxu0
    %v2900 = vpop.f32.mrb[0].mxu0
    %v2901 = vadd.f32 %v2765, %v2900
    %v2902 = vpop.f32.mrb[0].mxu0
    %2903 = vdwg.mxu0
    %v2904 = vadd.f32 %v2548, %v2898
    %v2905 = vadd.f32 %v2549, %v2901
    %s2906 = scalar_lea.vmem [#allocation16], 1
    %v2907 = vld [vmem:[%s2906] sm:$0x1]
    %s2908 = scalar_lea.vmem [#allocation17], 1
    %v2909 = vld [vmem:[%s2908] sm:$0x1]
    %2910 = vadd.xlane.f32.xlu0 %v2904
    %v2911 = vpop.xlane.xlu0 %2910
    %2912 = vadd.xlane.f32.xlu0 %v2905
    %v2913 = vpop.xlane.xlu0 %2912
    %v2914 = vmul.f32 %v2911, %v219
    %v2915 = vmul.f32 %v2913, %v219
    %v2916 = vsub.f32 %v2904, %v2914
    %v2917 = vsub.f32 %v2905, %v2915
    %v2918 = vmul.f32 %v2916, %v2916
    %v2919 = vmul.f32 %v2917, %v2917
    %2920 = vadd.xlane.f32.xlu0 %v2918
    %v2921 = vpop.xlane.xlu0 %2920
    %2922 = vadd.xlane.f32.xlu0 %v2919
    %v2923 = vpop.xlane.xlu0 %2922
    %v2924 = vmul.f32 %v2921, %v219
    %v2925 = vmul.f32 %v2923, %v219
    %v2926 = vadd.f32 %v2924, 1e-12
    %v2927 = vadd.f32 %v2925, 1e-12
    %v2928 = vrsqrt.pop %v2926
    %v2929 = vrsqrt.pop %v2927
    %v2930 = vmul.f32 %v2916, %v2928
    %v2931 = vmul.f32 %v2917, %v2929
    %v2933 = vlaneseq
    %v2934 = vshrl.u32 %v2933, 7
    %v2935 = vsub.s32 0, %v2934
    %v2936 = vrot.slane %v2907, %v2935
    %v2938 = vmul.f32 %v2930, %v2936
    %v2939 = vmul.f32 %v2931, %v2936
    %v2941 = vlaneseq
    %v2942 = vshrl.u32 %v2941, 7
    %v2943 = vsub.s32 0, %v2942
    %v2944 = vrot.slane %v2909, %v2943
    %v2946 = vadd.f32 %v2938, %v2944
    %v2947 = vadd.f32 %v2939, %v2944
    %v2948 = vpack.c.bf16 %v2947, %v2946
    %v2949 = vld [vmem:[%s17] sm:$0xf]
    %v2950 = vld [vmem:[%s17 + $0x4] sm:$0xf]
    %v2951 = vld [vmem:[%s17 + $0x8] sm:$0xf]
    %v2952 = vld [vmem:[%s17 + $0xc] sm:$0xf]
    %v2953 = vld [vmem:[%s17 + $0x10] sm:$0xf]
    %v2954 = vld [vmem:[%s17 + $0x14] sm:$0xf]
    %v2955 = vld [vmem:[%s17 + $0x18] sm:$0xf]
    %v2956 = vld [vmem:[%s17 + $0x1c] sm:$0xf]
    %v2957 = vld [vmem:[%s17 + $0x20] sm:$0xf]
    %v2958 = vld [vmem:[%s17 + $0x24] sm:$0xf]
    %v2959 = vld [vmem:[%s17 + $0x28] sm:$0xf]
    %v2960 = vld [vmem:[%s17 + $0x2c] sm:$0xf]
    %v2961 = vld [vmem:[%s17 + $0x30] sm:$0xf]
    %v2962 = vld [vmem:[%s17 + $0x34] sm:$0xf]
    %v2963 = vld [vmem:[%s17 + $0x38] sm:$0xf]
    %v2964 = vld [vmem:[%s17 + $0x3c] sm:$0xf]
    %v2965 = vld [vmem:[#allocation19] sm:$0x1]
    %v2967 = vlaneseq
    %v2968 = vshrl.u32 %v2967, 7
    %v2969 = vsub.s32 0, %v2968
    %v2970 = vrot.slane %v2965, %v2969
    %v2988 = vunpack.c.l.b16 %v2949
    %v2989 = vunpack.c.l.b16 %v2950
    %v2990 = vunpack.c.l.b16 %v2951
    %v2991 = vunpack.c.l.b16 %v2952
    %v2992 = vunpack.c.l.b16 %v2953
    %v2993 = vunpack.c.l.b16 %v2954
    %v2994 = vunpack.c.l.b16 %v2955
    %v2995 = vunpack.c.l.b16 %v2956
    %v2996 = vunpack.c.l.b16 %v2957
    %v2997 = vunpack.c.l.b16 %v2958
    %v2998 = vunpack.c.l.b16 %v2959
    %v2999 = vunpack.c.l.b16 %v2960
    %v3000 = vunpack.c.l.b16 %v2961
    %v3001 = vunpack.c.l.b16 %v2962
    %v3002 = vunpack.c.l.b16 %v2963
    %v3003 = vunpack.c.l.b16 %v2964
    %v3004 = vpack.c.b16 %v2989, %v2988
    %v3005 = vpack.c.b16 %v2991, %v2990
    %v3006 = vpack.c.b16 %v2993, %v2992
    %v3007 = vpack.c.b16 %v2995, %v2994
    %v3008 = vpack.c.b16 %v2997, %v2996
    %v3009 = vpack.c.b16 %v2999, %v2998
    %v3010 = vpack.c.b16 %v3001, %v3000
    %v3011 = vpack.c.b16 %v3003, %v3002
    %3020 = vmatprep.subr.bf16.mxu0 0
    %3021 = vmatpush1.bf16.msra.mxu0 %v3004
    %3022 = vmatprep.subr.bf16.mxu0 0
    %3023 = vmatpush1.bf16.msra.mxu0 %v3005
    %3024 = vmatprep.subr.bf16.mxu0 0
    %3025 = vmatpush1.bf16.msra.mxu0 %v3006
    %3026 = vmatprep.subr.bf16.mxu0 0
    %3027 = vmatpush1.bf16.msra.mxu0 %v3007
    %3028 = vmatprep.subr.bf16.mxu0 0
    %3029 = vmatpush1.bf16.msra.mxu0 %v3008
    %3030 = vmatprep.subr.bf16.mxu0 0
    %3031 = vmatpush1.bf16.msra.mxu0 %v3009
    %3032 = vmatprep.subr.bf16.mxu0 0
    %3033 = vmatpush1.bf16.msra.mxu0 %v3010
    %3034 = vmatprep.subr.bf16.mxu0 0
    %3035 = vmatpush1.bf16.msra.mxu0 %v3011
    %3036 = vmatprep.subr.bf16.mxu0 0
    %3037 = vmatpush1.bf16.msra.mxu0 0
    %3038 = vmatprep.subr.bf16.mxu0 0
    %3039 = vmatpush1.bf16.msra.mxu0 0
    %3040 = vmatprep.subr.bf16.mxu0 0
    %3041 = vmatpush1.bf16.msra.mxu0 0
    %3042 = vmatprep.subr.bf16.mxu0 0
    %3043 = vmatpush1.bf16.msra.mxu0 0
    %3044 = vmatprep.subr.bf16.mxu0 0
    %3045 = vmatpush1.bf16.msra.mxu0 0
    %3046 = vmatprep.subr.bf16.mxu0 0
    %3047 = vmatpush1.bf16.msra.mxu0 0
    %3048 = vmatprep.subr.bf16.mxu0 0
    %3049 = vmatpush1.bf16.msra.mxu0 0
    %3050 = vmatprep.subr.bf16.mxu0 0
    %3051 = vmatpush1.bf16.msra.mxu0 0
    %3052 = vmatprep.mubr.bf16.mxu0 0
    %3053 = vmatmul.mubr.bf16.gmra.mrb[0].mxu0 %v2948
    %v3054 = vpop.f32.mrb[0].mxu0
    %v3055 = vadd.f32 %v2970, %v3054
    %v3056 = vpop.f32.mrb[0].mxu0
    %v3057 = vpop.f32.mrb[0].mxu0
    %v3058 = vadd.f32 %v2970, %v3057
    %v3059 = vpop.f32.mrb[0].mxu0
    %3060 = vdwg.mxu0
    %3061 = vst [vmem:[%s19] sm:$0xff] %v3055
    %3062 = vst [vmem:[%s19 + $0x8] sm:$0xff] %v3058
    %3063 = vmax.xlane.f32.xlu0 %v3055
    %v3064 = vpop.xlane.xlu0 %3063
    %3065 = vmax.xlane.f32.xlu0 %v3058
    %v3066 = vpop.xlane.xlu0 %3065
    %v3067 = vsub.f32 %v3055, %v3064
    %v3068 = vsub.f32 %v3058, %v3066
    %v3069 = vmul.f32 %v3067, 1.442695
    %v3070 = vpow.pop %v3069
    %v3071 = vmul.f32 %v3068, 1.442695
    %v3072 = vpow.pop %v3071
    %3073 = vadd.xlane.f32.xlu0 %v3070
    %v3074 = vpop.xlane.xlu0 %3073
    %3075 = vadd.xlane.f32.xlu0 %v3072
    %v3076 = vpop.xlane.xlu0 %3075
    %v3077 = vlog2.pop %v3074
    %v3078 = vmul.f32 %v3077, 0.6931472
    %v3079 = vlog2.pop %v3076
    %v3080 = vmul.f32 %v3079, 0.6931472
    %v3081 = vadd.f32 %v3078, %v3064
    %v3082 = vadd.f32 %v3080, %v3066
    %v3083 = vsub.f32 %v3055, %v3081
    %v3084 = vsub.f32 %v3058, %v3082
    %v3085 = vlaneseq
    %v3086 = vand.u32 %v3085, 127
    %v3087 = vld [vmem:[%s2] sm:$0xff]
    %v3088 = vld [vmem:[%s2 + $0x8] sm:$0xff]
    %3089 = vset.pattern.permute.xlu0 0
    %3090 = vperm.xlu0 %3089, %v3087
    %v3091 = vpop.permute.xlu0 %3090
    %3092 = vset.pattern.permute.xlu0 0
    %3093 = vperm.xlu0 %3092, %v3088
    %v3094 = vpop.permute.xlu0 %3093
    %vm3095 = vcmp.eq.s32.totalorder %v3091, %v3086
    %vm3096 = vcmp.eq.s32.totalorder %v3094, %v3086
    %v3097 = vsel %vm3095, 1, 0
    %v3098 = vsel %vm3096, 1, 0
    %v3099 = vcvt.s32.f32 %v3097
    %v3100 = vcvt.s32.f32 %v3098
    %v3101 = vmul.f32 %v3099, %v3083
    %v3102 = vmul.f32 %v3100, %v3084
    %3103 = vadd.xlane.f32.xlu0 %v3101
    %v3104 = vpop.xlane.xlu0 %3103
    %3105 = vadd.xlane.f32.xlu0 %v3102
    %v3106 = vpop.xlane.xlu0 %3105
    %vm3107 = vcmask 7168
    %v3108 = vsel %vm3107, %v3104, 0.0
    %v3109 = vsel %vm3107, %v3106, 0.0
    %v3110 = vadd.f32 %v3108, %v3109
    %3111 = vadd.xlane.f32.xlu0 %v3110
    %v3112 = vpop.xlane.xlu0 %3111
    %v3113 = vrot.slane %v3112, 4
    %v3114 = vadd.f32 %v3112, %v3113
    %v3115 = vrot.slane %v3114, 2
    %v3116 = vadd.f32 %v3114, %v3115
    %v3117 = vrot.slane %v3116, 1
    %v3118 = vadd.f32 %v3116, %v3117
    %s3119 = vtos %v3118
    %s3120 = ssub.f32 0.0, %s3119
    %s3121 = scalar_lea.smem [#allocation20], 0
    %3122 = sst [smem:[%s3121]] %s3120
    // Predicated region
    $region122: #{bert_forward.1} parent=1 // pred_check
      _
    $region123: #{bert_forward.1} parent=1 // pred_check_branch
      %3124 = sbr.rel (0) target = $region125
    $region124: #{bert_forward.1} parent=1 // pred_region
      _
    $region125: #{bert_forward.1} parent=1 // pred_fallthru
      _
    // Predicated region
    $region126: #{bert_forward.1} parent=1 // pred_check
      _
    $region127: #{bert_forward.1} parent=1 // pred_check_branch
      %3126 = sbr.rel (0) target = $region129
    $region128: #{bert_forward.1} parent=1 // pred_region
      %s3128 = ssub.s32 16, 16
      %3129 = vsyncadd [#allocation4], %s3128
      %3132 = dma.smem_to_hbm [#allocation20], 16, %s20, [#allocation4]
    $region129: #{bert_forward.1} parent=1 // pred_fallthru
      _
    // Predicated region
    $region130: #{bert_forward.1} parent=1 // pred_check
      _
    $region131: #{bert_forward.1} parent=1 // pred_check_branch
      %3134 = sbr.rel (0) target = $region133
    $region132: #{bert_forward.1} parent=1 // pred_region
      _
    $region133: #{bert_forward.1} parent=1 // pred_fallthru
      _
    // Predicated region
    $region134: #{bert_forward.1} parent=1 // pred_check
      _
    $region135: #{bert_forward.1} parent=1 // pred_check_branch
      %3136 = sbr.rel (0) target = $region137
    $region136: #{bert_forward.1} parent=1 // pred_region
      %3137 = dma.done [#allocation4], 16
    $region137: #{bert_forward.1} parent=1 // pred_fallthru
      _
    %3138 = sfence
    %3139 = vsyncpa [#allocation3], 1
    %3140 = vsyncpa [#allocation6], 1
    %3141 = vsyncpa [#allocation9], 1
    %3142 = vsyncpa [#allocation12], 1
    %3143 = vsyncpa [#allocation15], 1
    %3144 = vsyncpa [#allocation18], 1
    %3145 = vsyncpa [#allocation4], 1

</llo_original>
